<compile_context>
chip_gen: v7x
topology: tpu7x:2x2x1
jax: 0.10.0
libtpu: 0.0.40
codegen_flags: <defaults>
</compile_context>

<pallas_src>
import functools

import jax
import jax.numpy as jnp
import numpy as np
from jax.experimental import pallas as pl
from jax.experimental.pallas import tpu as pltpu


def _psdp_kernel(xc_ref, xt_ref, xb_ref, dw_ref, pw_ref, pb_ref, o_ref, *,
                 dilations, C1, C2, th, W, pmax, hb, fuse_dtype):
    # xc_ref: (C1, th, W)   body rows of this tile
    # xt_ref: (C1, hb, W)   rows just above the body (clamped at the image top)
    # xb_ref: (C1, hb, W)   rows just below the body (clamped at the image bottom)
    # dw_ref: (num_d*9, C1) depthwise weights, row = (di, kh, kw)
    # pw_ref: (C2, num_d*C1) pointwise fuse weights (already in fuse_dtype)
    # pb_ref: (C2, 1)       pointwise bias (f32)
    # o_ref : (C2, th*W)    lane-dense output tile
    t = pl.program_id(1)
    num_t = pl.num_programs(1)

    xc = xc_ref[...].astype(jnp.float32)
    top = xt_ref[...].astype(jnp.float32)
    bot = xb_ref[...].astype(jnp.float32)

    # Halo rows outside the image are conv zero-padding: mask the clamped loads.
    top = top * (t > 0).astype(jnp.float32)
    bot = bot * (t < num_t - 1).astype(jnp.float32)

    # Assemble the zero-margined window once per tile:
    #   rows: [pmax halo | th body | pmax halo], cols: [pmax zeros | W | pmax zeros]
    rows = jnp.concatenate([top[:, hb - pmax:, :], xc, bot[:, :pmax, :]], axis=1)
    zcol = jnp.zeros((C1, th + 2 * pmax, pmax), jnp.float32)
    win = jnp.concatenate([zcol, rows, zcol], axis=2)          # (C1, th+2p, W+2p)

    w_all = dw_ref[...]                                        # (num_d*9, C1)
    pw = pw_ref[...]                                           # (C2, num_d*C1)

    # Seed the fuse accumulator with the bias (epilogue becomes a pure cast).
    acc_out = jnp.broadcast_to(pb_ref[...], (C2, th * W)).astype(jnp.float32)
    for di, d in enumerate(dilations):
        acc = None
        for kw in range(3):
            w0 = pmax - d + kw * d
            xw = win[:, :, w0:w0 + W]                          # lane shift (hoisted)
            for kh in range(3):
                h0 = pmax - d + kh * d
                patch = xw[:, h0:h0 + th, :]                   # sublane shift only
                wrow = w_all[di * 9 + kh * 3 + kw]             # (C1,)
                tap = patch * wrow[:, None, None]
                acc = tap if acc is None else acc + tap
        # Per-dilation fuse on the MXU: (C2, C1) x (C1, th*W) — lane-dense rhs,
        # f32 accumulation, no branch concat.
        branch = acc.reshape(C1, th * W).astype(fuse_dtype)
        pw_d = pw[:, di * C1:(di + 1) * C1]
        acc_out = acc_out + jax.lax.dot_general(
            pw_d, branch,
            dimension_numbers=(((1,), (0,)), ((), ())),
            preferred_element_type=jnp.float32)

    o_ref[...] = acc_out.astype(o_ref.dtype)


def _pick_tile_rows(Hp, W, C1, C2, hb, itemsize, tile_rows, vmem_budget_bytes):
    """Pick a row-tile height: divides Hp, multiple of hb, lane-dense output."""
    def ok(th):
        return Hp % th == 0 and th % hb == 0 and ((th * W) % 128 == 0 or th == Hp)

    if tile_rows is not None:
        th = int(tile_rows)
        if not ok(th):
            raise ValueError(
                f"tile_rows={th} must divide padded H={Hp}, be a multiple of {hb} "
                f"and give a lane-dense output tile (tile_rows*W % 128 == 0) "
                f"unless it covers all rows")
        return th

    cands = [th for th in range(hb, Hp + 1, hb) if ok(th)]     # Hp is always valid

    def footprint(th):  # double-buffered per-tile input + output bytes
        return 2 * ((C1 * th * W + 2 * C1 * hb * W) + C2 * th * W) * itemsize

    fitting = [th for th in cands if footprint(th) <= vmem_budget_bytes]
    return max(fitting) if fitting else min(cands)


def psdp_pallas(x, dw, pw, pb, dilations=(1, 3, 5), *, tile_rows=None,
                fuse_dtype=jnp.bfloat16, vmem_budget_bytes=6 * 1024 * 1024,
                vmem_limit_bytes=None):
    """x: (B, C1, H, W); dw: (num_d, C1, 3, 3); pw: (C2, num_d*C1); pb: (C2,)."""
    B, C1, H, W = x.shape
    num_d = len(dilations)
    C2 = pw.shape[0]
    pmax = int(max(dilations))
    hb = ((pmax + 7) // 8) * 8                 # halo block rows (sublane aligned)

    # Pad H (bottom, zeros == conv zero padding) to a multiple of hb so every
    # row-block index is aligned; the extra rows are dropped from the output.
    Hp = ((H + hb - 1) // hb) * hb
    if Hp != H:
        x = jnp.pad(x, ((0, 0), (0, 0), (0, Hp - H), (0, 0)))

    itemsize = jnp.dtype(x.dtype).itemsize
    th = _pick_tile_rows(Hp, W, C1, C2, hb, itemsize, tile_rows, vmem_budget_bytes)
    num_t = Hp // th
    r = th // hb
    last_hb_block = Hp // hb - 1

    # Flatten depthwise weights so each row is one (dilation, kh, kw) tap.
    dw_flat = jnp.transpose(dw, (0, 2, 3, 1)).reshape(num_d * 9, C1).astype(jnp.float32)
    pw_c = pw.astype(fuse_dtype)
    pb2 = pb.reshape(C2, 1).astype(jnp.float32)

    kernel = functools.partial(
        _psdp_kernel, dilations=tuple(int(d) for d in dilations),
        C1=C1, C2=C2, th=th, W=W, pmax=pmax, hb=hb, fuse_dtype=fuse_dtype)

    out_flat = pl.pallas_call(
        kernel,
        out_shape=jax.ShapeDtypeStruct((B, C2, Hp * W), x.dtype),
        grid_spec=pltpu.PrefetchScalarGridSpec(
            num_scalar_prefetch=0,
            grid=(B, num_t),
            in_specs=[
                # body rows [t*th, (t+1)*th)
                pl.BlockSpec((None, C1, th, W), lambda b, t: (b, 0, t, 0)),
                # hb rows just above the body (clamped at the top; masked in-kernel)
                pl.BlockSpec((None, C1, hb, W),
                             lambda b, t: (b, 0, jnp.maximum(t * r - 1, 0), 0)),
                # hb rows just below the body (clamped at the bottom; masked in-kernel)
                pl.BlockSpec((None, C1, hb, W),
                             lambda b, t: (b, 0, jnp.minimum((t + 1) * r, last_hb_block), 0)),
                pl.BlockSpec((num_d * 9, C1), lambda b, t: (0, 0)),
                pl.BlockSpec((C2, num_d * C1), lambda b, t: (0, 0)),
                pl.BlockSpec((C2, 1), lambda b, t: (0, 0)),
            ],
            out_specs=pl.BlockSpec((None, C2, th * W), lambda b, t: (b, 0, t)),
        ),
        compiler_params=pltpu.CompilerParams(
            dimension_semantics=("parallel", "parallel"),
            vmem_limit_bytes=vmem_limit_bytes,
        ),
    )(x, x, x, dw_flat, pw_c, pb2)

    out = out_flat.reshape(B, C2, Hp, W)
    if Hp != H:
        out = out[:, :, :H, :]
    return out


def psdp_reference(x, dw, pw, pb, dilations=(1, 3, 5)):
    """Pure-JAX reference (lax conv) for correctness checking."""
    B, C1, H, W = x.shape
    outs = []
    for di, d in enumerate(dilations):
        y = jax.lax.conv_general_dilated(
            x,
            dw[di][:, None, :, :],               # (C1, 1, 3, 3) depthwise
            window_strides=(1, 1),
            padding=[(d, d), (d, d)],
            rhs_dilation=(d, d),
            feature_group_count=C1,
            dimension_numbers=("NCHW", "OIHW", "NCHW"),
        )
        outs.append(y)
    cat = jnp.concatenate(outs, axis=1)          # (B, num_d*C1, H, W)
    out = jnp.einsum("oc,bchw->bohw", pw, cat) + pb[None, :, None, None]
    return out


def _check(name, got, ref, rtol, atol):
    if not np.allclose(np.asarray(got), np.asarray(ref), rtol=rtol, atol=atol):
        err = np.max(np.abs(np.asarray(got) - np.asarray(ref)))
        raise AssertionError(f"{name}: Pallas PSDP mismatch vs reference (max abs err {err})")


if __name__ == "__main__":
    key = jax.random.PRNGKey(0)
    B, C1, C2, H, W = 2, 4, 8, 16, 16
    dilations = (1, 3, 5)
    num_d = len(dilations)

    k1, k2, k3, k4 = jax.random.split(key, 4)
    x = jax.random.normal(k1, (B, C1, H, W), dtype=jnp.float32)
    dw = jax.random.normal(k2, (num_d, C1, 3, 3), dtype=jnp.float32) * 0.2
    pw = jax.random.normal(k3, (C2, num_d * C1), dtype=jnp.float32) * 0.1
    pb = jax.random.normal(k4, (C2,), dtype=jnp.float32) * 0.05

    ref = jax.block_until_ready(psdp_reference(x, dw, pw, pb, dilations))

    # (1) auto tile size (single row tile at this size), f32 fuse — tight check.
    out_a = jax.block_until_ready(
        psdp_pallas(x, dw, pw, pb, dilations, fuse_dtype=jnp.float32))
    _check("auto-tile/f32", out_a, ref, rtol=1e-4, atol=1e-4)

    # (2) explicit 2-way row tiling (exercises halo loads + edge masking), f32 fuse.
    out_b = jax.block_until_ready(
        psdp_pallas(x, dw, pw, pb, dilations, tile_rows=8, fuse_dtype=jnp.float32))
    _check("tiled/f32", out_b, ref, rtol=1e-4, atol=1e-4)

    # (3) default bf16 MXU fuse (f32 accumulation), tiled — bf16-level tolerance.
    out_c = jax.block_until_ready(
        psdp_pallas(x, dw, pw, pb, dilations, tile_rows=8))
    _check("tiled/bf16", out_c, ref, rtol=2e-2, atol=2e-2)

    print("KERNEL_OK")
</pallas_src>

<mosaic_0001>
module attributes {stable_mosaic.version = 11 : i64} {
  func.func @_psdp_kernel(%arg0: i32, %arg1: i32, %arg2: memref<1x4x16x16xf32, #tpu.memory_space<vmem>>, %arg3: memref<1x4x8x16xf32, #tpu.memory_space<vmem>>, %arg4: memref<1x4x8x16xf32, #tpu.memory_space<vmem>>, %arg5: memref<27x4xf32, #tpu.memory_space<vmem>>, %arg6: memref<8x12xf32, #tpu.memory_space<vmem>>, %arg7: memref<8x1xf32, #tpu.memory_space<vmem>>, %arg8: memref<1x8x256xf32, #tpu.memory_space<vmem>>) attributes {dimension_semantics = [#tpu.dimension_semantics<parallel>, #tpu.dimension_semantics<parallel>], iteration_bounds = array<i64: 2, 1>, scalar_prefetch = 0 : i64, scratch_operands = 0 : i64, tpu.core_type = #tpu.core_type<tc>, window_params = [{transform_indices = @transform_0, window_bounds = array<i64: 1, 4, 16, 16>}, {transform_indices = @transform_1, window_bounds = array<i64: 1, 4, 8, 16>}, {transform_indices = @transform_2, window_bounds = array<i64: 1, 4, 8, 16>}, {pipeline_mode = #tpu.pipeline_mode<synchronous>, transform_indices = @transform_3, window_bounds = array<i64: 27, 4>}, {pipeline_mode = #tpu.pipeline_mode<synchronous>, transform_indices = @transform_4, window_bounds = array<i64: 8, 12>}, {pipeline_mode = #tpu.pipeline_mode<synchronous>, transform_indices = @transform_5, window_bounds = array<i64: 8, 1>}, {transform_indices = @transform_6, window_bounds = array<i64: 1, 8, 256>}]} {
    %c0 = arith.constant 0 : index
    %c0_0 = arith.constant 0 : index
    %c0_1 = arith.constant 0 : index
    %c0_2 = arith.constant 0 : index
    %0 = vector.load %arg2[%c0, %c0_0, %c0_1, %c0_2] : memref<1x4x16x16xf32, #tpu.memory_space<vmem>>, vector<1x4x16x16xf32>
    %1 = vector.shape_cast %0 : vector<1x4x16x16xf32> to vector<4x16x16xf32>
    %c0_3 = arith.constant 0 : index
    %c0_4 = arith.constant 0 : index
    %c0_5 = arith.constant 0 : index
    %c0_6 = arith.constant 0 : index
    %2 = vector.load %arg3[%c0_3, %c0_4, %c0_5, %c0_6] : memref<1x4x8x16xf32, #tpu.memory_space<vmem>>, vector<1x4x8x16xf32>
    %3 = vector.shape_cast %2 : vector<1x4x8x16xf32> to vector<4x8x16xf32>
    %c0_7 = arith.constant 0 : index
    %c0_8 = arith.constant 0 : index
    %c0_9 = arith.constant 0 : index
    %c0_10 = arith.constant 0 : index
    %4 = vector.load %arg4[%c0_7, %c0_8, %c0_9, %c0_10] : memref<1x4x8x16xf32, #tpu.memory_space<vmem>>, vector<1x4x8x16xf32>
    %5 = vector.shape_cast %4 : vector<1x4x8x16xf32> to vector<4x8x16xf32>
    %c0_i32 = arith.constant 0 : i32
    %6 = arith.cmpi sgt, %arg1, %c0_i32 : i32
    %7 = arith.extui %6 : i1 to i32
    %8 = arith.sitofp %7 : i32 to f32
    %9 = vector.broadcast %8 : f32 to vector<4x8x16xf32>
    %10 = arith.mulf %3, %9 : vector<4x8x16xf32>
    %c0_i32_11 = arith.constant 0 : i32
    %11 = arith.cmpi slt, %arg1, %c0_i32_11 : i32
    %12 = arith.extui %11 : i1 to i32
    %13 = arith.sitofp %12 : i32 to f32
    %14 = vector.broadcast %13 : f32 to vector<4x8x16xf32>
    %15 = arith.mulf %5, %14 : vector<4x8x16xf32>
    %16 = vector.extract_strided_slice %10 {offsets = [0, 3, 0], sizes = [4, 5, 16], strides = [1, 1, 1]} : vector<4x8x16xf32> to vector<4x5x16xf32>
    %17 = vector.extract_strided_slice %15 {offsets = [0, 0, 0], sizes = [4, 5, 16], strides = [1, 1, 1]} : vector<4x8x16xf32> to vector<4x5x16xf32>
    %18 = tpu.concatenate %16, %1, %17 in 1 : vector<4x5x16xf32>, vector<4x16x16xf32>, vector<4x5x16xf32> -> vector<4x26x16xf32>
    %cst = arith.constant 0.000000e+00 : f32
    %19 = vector.broadcast %cst : f32 to vector<4x26x5xf32>
    %20 = tpu.concatenate %19, %18, %19 in 2 : vector<4x26x5xf32>, vector<4x26x16xf32>, vector<4x26x5xf32> -> vector<4x26x26xf32>
    %c0_12 = arith.constant 0 : index
    %c0_13 = arith.constant 0 : index
    %21 = vector.load %arg5[%c0_12, %c0_13] : memref<27x4xf32, #tpu.memory_space<vmem>>, vector<27x4xf32>
    %c0_14 = arith.constant 0 : index
    %c0_15 = arith.constant 0 : index
    %22 = vector.load %arg6[%c0_14, %c0_15] : memref<8x12xf32, #tpu.memory_space<vmem>>, vector<8x12xf32>
    %c0_16 = arith.constant 0 : index
    %c0_17 = arith.constant 0 : index
    %23 = vector.load %arg7[%c0_16, %c0_17] : memref<8x1xf32, #tpu.memory_space<vmem>>, vector<8x1xf32>
    %24 = vector.shape_cast %23 : vector<8x1xf32> to vector<8x1xf32>
    %25 = vector.broadcast %24 : vector<8x1xf32> to vector<8x256xf32>
    %26 = vector.extract_strided_slice %20 {offsets = [0, 0, 4], sizes = [4, 26, 16], strides = [1, 1, 1]} : vector<4x26x26xf32> to vector<4x26x16xf32>
    %27 = vector.extract_strided_slice %26 {offsets = [0, 4, 0], sizes = [4, 16, 16], strides = [1, 1, 1]} : vector<4x26x16xf32> to vector<4x16x16xf32>
    %28 = vector.extract_strided_slice %21 {offsets = [0, 0], sizes = [1, 4], strides = [1, 1]} : vector<27x4xf32> to vector<1x4xf32>
    %29 = vector.shape_cast %28 : vector<1x4xf32> to vector<4xf32>
    %30 = vector.shape_cast %29 : vector<4xf32> to vector<4x1x1xf32>
    %31 = vector.broadcast %30 : vector<4x1x1xf32> to vector<4x16x16xf32>
    %32 = arith.mulf %27, %31 : vector<4x16x16xf32>
    %33 = vector.extract_strided_slice %26 {offsets = [0, 5, 0], sizes = [4, 16, 16], strides = [1, 1, 1]} : vector<4x26x16xf32> to vector<4x16x16xf32>
    %34 = vector.extract_strided_slice %21 {offsets = [3, 0], sizes = [1, 4], strides = [1, 1]} : vector<27x4xf32> to vector<1x4xf32>
    %35 = vector.shape_cast %34 : vector<1x4xf32> to vector<4xf32>
    %36 = vector.shape_cast %35 : vector<4xf32> to vector<4x1x1xf32>
    %37 = vector.broadcast %36 : vector<4x1x1xf32> to vector<4x16x16xf32>
    %38 = arith.mulf %33, %37 : vector<4x16x16xf32>
    %39 = arith.addf %32, %38 : vector<4x16x16xf32>
    %40 = vector.extract_strided_slice %26 {offsets = [0, 6, 0], sizes = [4, 16, 16], strides = [1, 1, 1]} : vector<4x26x16xf32> to vector<4x16x16xf32>
    %41 = vector.extract_strided_slice %21 {offsets = [6, 0], sizes = [1, 4], strides = [1, 1]} : vector<27x4xf32> to vector<1x4xf32>
    %42 = vector.shape_cast %41 : vector<1x4xf32> to vector<4xf32>
    %43 = vector.shape_cast %42 : vector<4xf32> to vector<4x1x1xf32>
    %44 = vector.broadcast %43 : vector<4x1x1xf32> to vector<4x16x16xf32>
    %45 = arith.mulf %40, %44 : vector<4x16x16xf32>
    %46 = arith.addf %39, %45 : vector<4x16x16xf32>
    %47 = vector.extract_strided_slice %20 {offsets = [0, 0, 5], sizes = [4, 26, 16], strides = [1, 1, 1]} : vector<4x26x26xf32> to vector<4x26x16xf32>
    %48 = vector.extract_strided_slice %47 {offsets = [0, 4, 0], sizes = [4, 16, 16], strides = [1, 1, 1]} : vector<4x26x16xf32> to vector<4x16x16xf32>
    %49 = vector.extract_strided_slice %21 {offsets = [1, 0], sizes = [1, 4], strides = [1, 1]} : vector<27x4xf32> to vector<1x4xf32>
    %50 = vector.shape_cast %49 : vector<1x4xf32> to vector<4xf32>
    %51 = vector.shape_cast %50 : vector<4xf32> to vector<4x1x1xf32>
    %52 = vector.broadcast %51 : vector<4x1x1xf32> to vector<4x16x16xf32>
    %53 = arith.mulf %48, %52 : vector<4x16x16xf32>
    %54 = arith.addf %46, %53 : vector<4x16x16xf32>
    %55 = vector.extract_strided_slice %47 {offsets = [0, 5, 0], sizes = [4, 16, 16], strides = [1, 1, 1]} : vector<4x26x16xf32> to vector<4x16x16xf32>
    %56 = vector.extract_strided_slice %21 {offsets = [4, 0], sizes = [1, 4], strides = [1, 1]} : vector<27x4xf32> to vector<1x4xf32>
    %57 = vector.shape_cast %56 : vector<1x4xf32> to vector<4xf32>
    %58 = vector.shape_cast %57 : vector<4xf32> to vector<4x1x1xf32>
    %59 = vector.broadcast %58 : vector<4x1x1xf32> to vector<4x16x16xf32>
    %60 = arith.mulf %55, %59 : vector<4x16x16xf32>
    %61 = arith.addf %54, %60 : vector<4x16x16xf32>
    %62 = vector.extract_strided_slice %47 {offsets = [0, 6, 0], sizes = [4, 16, 16], strides = [1, 1, 1]} : vector<4x26x16xf32> to vector<4x16x16xf32>
    %63 = vector.extract_strided_slice %21 {offsets = [7, 0], sizes = [1, 4], strides = [1, 1]} : vector<27x4xf32> to vector<1x4xf32>
    %64 = vector.shape_cast %63 : vector<1x4xf32> to vector<4xf32>
    %65 = vector.shape_cast %64 : vector<4xf32> to vector<4x1x1xf32>
    %66 = vector.broadcast %65 : vector<4x1x1xf32> to vector<4x16x16xf32>
    %67 = arith.mulf %62, %66 : vector<4x16x16xf32>
    %68 = arith.addf %61, %67 : vector<4x16x16xf32>
    %69 = vector.extract_strided_slice %20 {offsets = [0, 0, 6], sizes = [4, 26, 16], strides = [1, 1, 1]} : vector<4x26x26xf32> to vector<4x26x16xf32>
    %70 = vector.extract_strided_slice %69 {offsets = [0, 4, 0], sizes = [4, 16, 16], strides = [1, 1, 1]} : vector<4x26x16xf32> to vector<4x16x16xf32>
    %71 = vector.extract_strided_slice %21 {offsets = [2, 0], sizes = [1, 4], strides = [1, 1]} : vector<27x4xf32> to vector<1x4xf32>
    %72 = vector.shape_cast %71 : vector<1x4xf32> to vector<4xf32>
    %73 = vector.shape_cast %72 : vector<4xf32> to vector<4x1x1xf32>
    %74 = vector.broadcast %73 : vector<4x1x1xf32> to vector<4x16x16xf32>
    %75 = arith.mulf %70, %74 : vector<4x16x16xf32>
    %76 = arith.addf %68, %75 : vector<4x16x16xf32>
    %77 = vector.extract_strided_slice %69 {offsets = [0, 5, 0], sizes = [4, 16, 16], strides = [1, 1, 1]} : vector<4x26x16xf32> to vector<4x16x16xf32>
    %78 = vector.extract_strided_slice %21 {offsets = [5, 0], sizes = [1, 4], strides = [1, 1]} : vector<27x4xf32> to vector<1x4xf32>
    %79 = vector.shape_cast %78 : vector<1x4xf32> to vector<4xf32>
    %80 = vector.shape_cast %79 : vector<4xf32> to vector<4x1x1xf32>
    %81 = vector.broadcast %80 : vector<4x1x1xf32> to vector<4x16x16xf32>
    %82 = arith.mulf %77, %81 : vector<4x16x16xf32>
    %83 = arith.addf %76, %82 : vector<4x16x16xf32>
    %84 = vector.extract_strided_slice %69 {offsets = [0, 6, 0], sizes = [4, 16, 16], strides = [1, 1, 1]} : vector<4x26x16xf32> to vector<4x16x16xf32>
    %85 = vector.extract_strided_slice %21 {offsets = [8, 0], sizes = [1, 4], strides = [1, 1]} : vector<27x4xf32> to vector<1x4xf32>
    %86 = vector.shape_cast %85 : vector<1x4xf32> to vector<4xf32>
    %87 = vector.shape_cast %86 : vector<4xf32> to vector<4x1x1xf32>
    %88 = vector.broadcast %87 : vector<4x1x1xf32> to vector<4x16x16xf32>
    %89 = arith.mulf %84, %88 : vector<4x16x16xf32>
    %90 = arith.addf %83, %89 : vector<4x16x16xf32>
    %91 = vector.shape_cast %90 : vector<4x16x16xf32> to vector<4x256xf32>
    %92 = vector.extract_strided_slice %22 {offsets = [0, 0], sizes = [8, 4], strides = [1, 1]} : vector<8x12xf32> to vector<8x4xf32>
    %cst_18 = arith.constant dense<0.000000e+00> : vector<8x256xf32>
    %93 = tpu.matmul %92, %91, %cst_18 {dimension_numbers = #tpu.dot_dimension_numbers<[1], [0], [0], [1], [0, 0, 1, 1], [], []>} : vector<8x4xf32>, vector<4x256xf32>, vector<8x256xf32> -> vector<8x256xf32>
    %94 = arith.addf %25, %93 : vector<8x256xf32>
    %95 = vector.extract_strided_slice %20 {offsets = [0, 0, 2], sizes = [4, 26, 16], strides = [1, 1, 1]} : vector<4x26x26xf32> to vector<4x26x16xf32>
    %96 = vector.extract_strided_slice %95 {offsets = [0, 2, 0], sizes = [4, 16, 16], strides = [1, 1, 1]} : vector<4x26x16xf32> to vector<4x16x16xf32>
    %97 = vector.extract_strided_slice %21 {offsets = [9, 0], sizes = [1, 4], strides = [1, 1]} : vector<27x4xf32> to vector<1x4xf32>
    %98 = vector.shape_cast %97 : vector<1x4xf32> to vector<4xf32>
    %99 = vector.shape_cast %98 : vector<4xf32> to vector<4x1x1xf32>
    %100 = vector.broadcast %99 : vector<4x1x1xf32> to vector<4x16x16xf32>
    %101 = arith.mulf %96, %100 : vector<4x16x16xf32>
    %102 = vector.extract_strided_slice %95 {offsets = [0, 5, 0], sizes = [4, 16, 16], strides = [1, 1, 1]} : vector<4x26x16xf32> to vector<4x16x16xf32>
    %103 = vector.extract_strided_slice %21 {offsets = [12, 0], sizes = [1, 4], strides = [1, 1]} : vector<27x4xf32> to vector<1x4xf32>
    %104 = vector.shape_cast %103 : vector<1x4xf32> to vector<4xf32>
    %105 = vector.shape_cast %104 : vector<4xf32> to vector<4x1x1xf32>
    %106 = vector.broadcast %105 : vector<4x1x1xf32> to vector<4x16x16xf32>
    %107 = arith.mulf %102, %106 : vector<4x16x16xf32>
    %108 = arith.addf %101, %107 : vector<4x16x16xf32>
    %109 = vector.extract_strided_slice %95 {offsets = [0, 8, 0], sizes = [4, 16, 16], strides = [1, 1, 1]} : vector<4x26x16xf32> to vector<4x16x16xf32>
    %110 = vector.extract_strided_slice %21 {offsets = [15, 0], sizes = [1, 4], strides = [1, 1]} : vector<27x4xf32> to vector<1x4xf32>
    %111 = vector.shape_cast %110 : vector<1x4xf32> to vector<4xf32>
    %112 = vector.shape_cast %111 : vector<4xf32> to vector<4x1x1xf32>
    %113 = vector.broadcast %112 : vector<4x1x1xf32> to vector<4x16x16xf32>
    %114 = arith.mulf %109, %113 : vector<4x16x16xf32>
    %115 = arith.addf %108, %114 : vector<4x16x16xf32>
    %116 = vector.extract_strided_slice %20 {offsets = [0, 0, 5], sizes = [4, 26, 16], strides = [1, 1, 1]} : vector<4x26x26xf32> to vector<4x26x16xf32>
    %117 = vector.extract_strided_slice %116 {offsets = [0, 2, 0], sizes = [4, 16, 16], strides = [1, 1, 1]} : vector<4x26x16xf32> to vector<4x16x16xf32>
    %118 = vector.extract_strided_slice %21 {offsets = [10, 0], sizes = [1, 4], strides = [1, 1]} : vector<27x4xf32> to vector<1x4xf32>
    %119 = vector.shape_cast %118 : vector<1x4xf32> to vector<4xf32>
    %120 = vector.shape_cast %119 : vector<4xf32> to vector<4x1x1xf32>
    %121 = vector.broadcast %120 : vector<4x1x1xf32> to vector<4x16x16xf32>
    %122 = arith.mulf %117, %121 : vector<4x16x16xf32>
    %123 = arith.addf %115, %122 : vector<4x16x16xf32>
    %124 = vector.extract_strided_slice %116 {offsets = [0, 5, 0], sizes = [4, 16, 16], strides = [1, 1, 1]} : vector<4x26x16xf32> to vector<4x16x16xf32>
    %125 = vector.extract_strided_slice %21 {offsets = [13, 0], sizes = [1, 4], strides = [1, 1]} : vector<27x4xf32> to vector<1x4xf32>
    %126 = vector.shape_cast %125 : vector<1x4xf32> to vector<4xf32>
    %127 = vector.shape_cast %126 : vector<4xf32> to vector<4x1x1xf32>
    %128 = vector.broadcast %127 : vector<4x1x1xf32> to vector<4x16x16xf32>
    %129 = arith.mulf %124, %128 : vector<4x16x16xf32>
    %130 = arith.addf %123, %129 : vector<4x16x16xf32>
    %131 = vector.extract_strided_slice %116 {offsets = [0, 8, 0], sizes = [4, 16, 16], strides = [1, 1, 1]} : vector<4x26x16xf32> to vector<4x16x16xf32>
    %132 = vector.extract_strided_slice %21 {offsets = [16, 0], sizes = [1, 4], strides = [1, 1]} : vector<27x4xf32> to vector<1x4xf32>
    %133 = vector.shape_cast %132 : vector<1x4xf32> to vector<4xf32>
    %134 = vector.shape_cast %133 : vector<4xf32> to vector<4x1x1xf32>
    %135 = vector.broadcast %134 : vector<4x1x1xf32> to vector<4x16x16xf32>
    %136 = arith.mulf %131, %135 : vector<4x16x16xf32>
    %137 = arith.addf %130, %136 : vector<4x16x16xf32>
    %138 = vector.extract_strided_slice %20 {offsets = [0, 0, 8], sizes = [4, 26, 16], strides = [1, 1, 1]} : vector<4x26x26xf32> to vector<4x26x16xf32>
    %139 = vector.extract_strided_slice %138 {offsets = [0, 2, 0], sizes = [4, 16, 16], strides = [1, 1, 1]} : vector<4x26x16xf32> to vector<4x16x16xf32>
    %140 = vector.extract_strided_slice %21 {offsets = [11, 0], sizes = [1, 4], strides = [1, 1]} : vector<27x4xf32> to vector<1x4xf32>
    %141 = vector.shape_cast %140 : vector<1x4xf32> to vector<4xf32>
    %142 = vector.shape_cast %141 : vector<4xf32> to vector<4x1x1xf32>
    %143 = vector.broadcast %142 : vector<4x1x1xf32> to vector<4x16x16xf32>
    %144 = arith.mulf %139, %143 : vector<4x16x16xf32>
    %145 = arith.addf %137, %144 : vector<4x16x16xf32>
    %146 = vector.extract_strided_slice %138 {offsets = [0, 5, 0], sizes = [4, 16, 16], strides = [1, 1, 1]} : vector<4x26x16xf32> to vector<4x16x16xf32>
    %147 = vector.extract_strided_slice %21 {offsets = [14, 0], sizes = [1, 4], strides = [1, 1]} : vector<27x4xf32> to vector<1x4xf32>
    %148 = vector.shape_cast %147 : vector<1x4xf32> to vector<4xf32>
    %149 = vector.shape_cast %148 : vector<4xf32> to vector<4x1x1xf32>
    %150 = vector.broadcast %149 : vector<4x1x1xf32> to vector<4x16x16xf32>
    %151 = arith.mulf %146, %150 : vector<4x16x16xf32>
    %152 = arith.addf %145, %151 : vector<4x16x16xf32>
    %153 = vector.extract_strided_slice %138 {offsets = [0, 8, 0], sizes = [4, 16, 16], strides = [1, 1, 1]} : vector<4x26x16xf32> to vector<4x16x16xf32>
    %154 = vector.extract_strided_slice %21 {offsets = [17, 0], sizes = [1, 4], strides = [1, 1]} : vector<27x4xf32> to vector<1x4xf32>
    %155 = vector.shape_cast %154 : vector<1x4xf32> to vector<4xf32>
    %156 = vector.shape_cast %155 : vector<4xf32> to vector<4x1x1xf32>
    %157 = vector.broadcast %156 : vector<4x1x1xf32> to vector<4x16x16xf32>
    %158 = arith.mulf %153, %157 : vector<4x16x16xf32>
    %159 = arith.addf %152, %158 : vector<4x16x16xf32>
    %160 = vector.shape_cast %159 : vector<4x16x16xf32> to vector<4x256xf32>
    %161 = vector.extract_strided_slice %22 {offsets = [0, 4], sizes = [8, 4], strides = [1, 1]} : vector<8x12xf32> to vector<8x4xf32>
    %cst_19 = arith.constant dense<0.000000e+00> : vector<8x256xf32>
    %162 = tpu.matmul %161, %160, %cst_19 {dimension_numbers = #tpu.dot_dimension_numbers<[1], [0], [0], [1], [0, 0, 1, 1], [], []>} : vector<8x4xf32>, vector<4x256xf32>, vector<8x256xf32> -> vector<8x256xf32>
    %163 = arith.addf %94, %162 : vector<8x256xf32>
    %164 = vector.extract_strided_slice %20 {offsets = [0, 0, 0], sizes = [4, 26, 16], strides = [1, 1, 1]} : vector<4x26x26xf32> to vector<4x26x16xf32>
    %165 = vector.extract_strided_slice %164 {offsets = [0, 0, 0], sizes = [4, 16, 16], strides = [1, 1, 1]} : vector<4x26x16xf32> to vector<4x16x16xf32>
    %166 = vector.extract_strided_slice %21 {offsets = [18, 0], sizes = [1, 4], strides = [1, 1]} : vector<27x4xf32> to vector<1x4xf32>
    %167 = vector.shape_cast %166 : vector<1x4xf32> to vector<4xf32>
    %168 = vector.shape_cast %167 : vector<4xf32> to vector<4x1x1xf32>
    %169 = vector.broadcast %168 : vector<4x1x1xf32> to vector<4x16x16xf32>
    %170 = arith.mulf %165, %169 : vector<4x16x16xf32>
    %171 = vector.extract_strided_slice %164 {offsets = [0, 5, 0], sizes = [4, 16, 16], strides = [1, 1, 1]} : vector<4x26x16xf32> to vector<4x16x16xf32>
    %172 = vector.extract_strided_slice %21 {offsets = [21, 0], sizes = [1, 4], strides = [1, 1]} : vector<27x4xf32> to vector<1x4xf32>
    %173 = vector.shape_cast %172 : vector<1x4xf32> to vector<4xf32>
    %174 = vector.shape_cast %173 : vector<4xf32> to vector<4x1x1xf32>
    %175 = vector.broadcast %174 : vector<4x1x1xf32> to vector<4x16x16xf32>
    %176 = arith.mulf %171, %175 : vector<4x16x16xf32>
    %177 = arith.addf %170, %176 : vector<4x16x16xf32>
    %178 = vector.extract_strided_slice %164 {offsets = [0, 10, 0], sizes = [4, 16, 16], strides = [1, 1, 1]} : vector<4x26x16xf32> to vector<4x16x16xf32>
    %179 = vector.extract_strided_slice %21 {offsets = [24, 0], sizes = [1, 4], strides = [1, 1]} : vector<27x4xf32> to vector<1x4xf32>
    %180 = vector.shape_cast %179 : vector<1x4xf32> to vector<4xf32>
    %181 = vector.shape_cast %180 : vector<4xf32> to vector<4x1x1xf32>
    %182 = vector.broadcast %181 : vector<4x1x1xf32> to vector<4x16x16xf32>
    %183 = arith.mulf %178, %182 : vector<4x16x16xf32>
    %184 = arith.addf %177, %183 : vector<4x16x16xf32>
    %185 = vector.extract_strided_slice %20 {offsets = [0, 0, 5], sizes = [4, 26, 16], strides = [1, 1, 1]} : vector<4x26x26xf32> to vector<4x26x16xf32>
    %186 = vector.extract_strided_slice %185 {offsets = [0, 0, 0], sizes = [4, 16, 16], strides = [1, 1, 1]} : vector<4x26x16xf32> to vector<4x16x16xf32>
    %187 = vector.extract_strided_slice %21 {offsets = [19, 0], sizes = [1, 4], strides = [1, 1]} : vector<27x4xf32> to vector<1x4xf32>
    %188 = vector.shape_cast %187 : vector<1x4xf32> to vector<4xf32>
    %189 = vector.shape_cast %188 : vector<4xf32> to vector<4x1x1xf32>
    %190 = vector.broadcast %189 : vector<4x1x1xf32> to vector<4x16x16xf32>
    %191 = arith.mulf %186, %190 : vector<4x16x16xf32>
    %192 = arith.addf %184, %191 : vector<4x16x16xf32>
    %193 = vector.extract_strided_slice %185 {offsets = [0, 5, 0], sizes = [4, 16, 16], strides = [1, 1, 1]} : vector<4x26x16xf32> to vector<4x16x16xf32>
    %194 = vector.extract_strided_slice %21 {offsets = [22, 0], sizes = [1, 4], strides = [1, 1]} : vector<27x4xf32> to vector<1x4xf32>
    %195 = vector.shape_cast %194 : vector<1x4xf32> to vector<4xf32>
    %196 = vector.shape_cast %195 : vector<4xf32> to vector<4x1x1xf32>
    %197 = vector.broadcast %196 : vector<4x1x1xf32> to vector<4x16x16xf32>
    %198 = arith.mulf %193, %197 : vector<4x16x16xf32>
    %199 = arith.addf %192, %198 : vector<4x16x16xf32>
    %200 = vector.extract_strided_slice %185 {offsets = [0, 10, 0], sizes = [4, 16, 16], strides = [1, 1, 1]} : vector<4x26x16xf32> to vector<4x16x16xf32>
    %201 = vector.extract_strided_slice %21 {offsets = [25, 0], sizes = [1, 4], strides = [1, 1]} : vector<27x4xf32> to vector<1x4xf32>
    %202 = vector.shape_cast %201 : vector<1x4xf32> to vector<4xf32>
    %203 = vector.shape_cast %202 : vector<4xf32> to vector<4x1x1xf32>
    %204 = vector.broadcast %203 : vector<4x1x1xf32> to vector<4x16x16xf32>
    %205 = arith.mulf %200, %204 : vector<4x16x16xf32>
    %206 = arith.addf %199, %205 : vector<4x16x16xf32>
    %207 = vector.extract_strided_slice %20 {offsets = [0, 0, 10], sizes = [4, 26, 16], strides = [1, 1, 1]} : vector<4x26x26xf32> to vector<4x26x16xf32>
    %208 = vector.extract_strided_slice %207 {offsets = [0, 0, 0], sizes = [4, 16, 16], strides = [1, 1, 1]} : vector<4x26x16xf32> to vector<4x16x16xf32>
    %209 = vector.extract_strided_slice %21 {offsets = [20, 0], sizes = [1, 4], strides = [1, 1]} : vector<27x4xf32> to vector<1x4xf32>
    %210 = vector.shape_cast %209 : vector<1x4xf32> to vector<4xf32>
    %211 = vector.shape_cast %210 : vector<4xf32> to vector<4x1x1xf32>
    %212 = vector.broadcast %211 : vector<4x1x1xf32> to vector<4x16x16xf32>
    %213 = arith.mulf %208, %212 : vector<4x16x16xf32>
    %214 = arith.addf %206, %213 : vector<4x16x16xf32>
    %215 = vector.extract_strided_slice %207 {offsets = [0, 5, 0], sizes = [4, 16, 16], strides = [1, 1, 1]} : vector<4x26x16xf32> to vector<4x16x16xf32>
    %216 = vector.extract_strided_slice %21 {offsets = [23, 0], sizes = [1, 4], strides = [1, 1]} : vector<27x4xf32> to vector<1x4xf32>
    %217 = vector.shape_cast %216 : vector<1x4xf32> to vector<4xf32>
    %218 = vector.shape_cast %217 : vector<4xf32> to vector<4x1x1xf32>
    %219 = vector.broadcast %218 : vector<4x1x1xf32> to vector<4x16x16xf32>
    %220 = arith.mulf %215, %219 : vector<4x16x16xf32>
    %221 = arith.addf %214, %220 : vector<4x16x16xf32>
    %222 = vector.extract_strided_slice %207 {offsets = [0, 10, 0], sizes = [4, 16, 16], strides = [1, 1, 1]} : vector<4x26x16xf32> to vector<4x16x16xf32>
    %223 = vector.extract_strided_slice %21 {offsets = [26, 0], sizes = [1, 4], strides = [1, 1]} : vector<27x4xf32> to vector<1x4xf32>
    %224 = vector.shape_cast %223 : vector<1x4xf32> to vector<4xf32>
    %225 = vector.shape_cast %224 : vector<4xf32> to vector<4x1x1xf32>
    %226 = vector.broadcast %225 : vector<4x1x1xf32> to vector<4x16x16xf32>
    %227 = arith.mulf %222, %226 : vector<4x16x16xf32>
    %228 = arith.addf %221, %227 : vector<4x16x16xf32>
    %229 = vector.shape_cast %228 : vector<4x16x16xf32> to vector<4x256xf32>
    %230 = vector.extract_strided_slice %22 {offsets = [0, 8], sizes = [8, 4], strides = [1, 1]} : vector<8x12xf32> to vector<8x4xf32>
    %cst_20 = arith.constant dense<0.000000e+00> : vector<8x256xf32>
    %231 = tpu.matmul %230, %229, %cst_20 {dimension_numbers = #tpu.dot_dimension_numbers<[1], [0], [0], [1], [0, 0, 1, 1], [], []>} : vector<8x4xf32>, vector<4x256xf32>, vector<8x256xf32> -> vector<8x256xf32>
    %232 = arith.addf %163, %231 : vector<8x256xf32>
    %c0_21 = arith.constant 0 : index
    %c0_22 = arith.constant 0 : index
    %c0_23 = arith.constant 0 : index
    %233 = vector.load %arg8[%c0_21, %c0_22, %c0_23] : memref<1x8x256xf32, #tpu.memory_space<vmem>>, vector<1x8x256xf32>
    %234 = vector.shape_cast %233 : vector<1x8x256xf32> to vector<8x256xf32>
    %235 = vector.shape_cast %232 : vector<8x256xf32> to vector<1x8x256xf32>
    tpu.vector_store %arg8[%c0_21, %c0_22, %c0_23], %235 {strides = array<i32>} : memref<1x8x256xf32, #tpu.memory_space<vmem>>, vector<1x8x256xf32>,
    return
  }
  func.func @transform_0(%arg0: i32, %arg1: i32) -> (i32, i32, i32, i32) {
    %c0_i32 = arith.constant 0 : i32
    %c0_i32_0 = arith.constant 0 : i32
    %c0_i32_1 = arith.constant 0 : i32
    return %arg0, %c0_i32, %arg1, %c0_i32_0 : i32, i32, i32, i32
  }
  func.func @transform_1(%arg0: i32, %arg1: i32) -> (i32, i32, i32, i32) {
    %c2_i32 = arith.constant 2 : i32
    %0 = arith.muli %arg1, %c2_i32 : i32
    %c1_i32 = arith.constant 1 : i32
    %1 = arith.subi %0, %c1_i32 : i32
    %c0_i32 = arith.constant 0 : i32
    %2 = arith.maxsi %1, %c0_i32 : i32
    %c0_i32_0 = arith.constant 0 : i32
    %c0_i32_1 = arith.constant 0 : i32
    %c0_i32_2 = arith.constant 0 : i32
    return %arg0, %c0_i32_0, %2, %c0_i32_1 : i32, i32, i32, i32
  }
  func.func @transform_2(%arg0: i32, %arg1: i32) -> (i32, i32, i32, i32) {
    %c1_i32 = arith.constant 1 : i32
    %0 = arith.addi %arg1, %c1_i32 : i32
    %c2_i32 = arith.constant 2 : i32
    %1 = arith.muli %0, %c2_i32 : i32
    %c1_i32_0 = arith.constant 1 : i32
    %2 = arith.minsi %1, %c1_i32_0 : i32
    %c0_i32 = arith.constant 0 : i32
    %c0_i32_1 = arith.constant 0 : i32
    %c0_i32_2 = arith.constant 0 : i32
    return %arg0, %c0_i32, %2, %c0_i32_1 : i32, i32, i32, i32
  }
  func.func @transform_3(%arg0: i32, %arg1: i32) -> (i32, i32) {
    %c0_i32 = arith.constant 0 : i32
    %c0_i32_0 = arith.constant 0 : i32
    %c0_i32_1 = arith.constant 0 : i32
    return %c0_i32, %c0_i32_0 : i32, i32
  }
  func.func @transform_4(%arg0: i32, %arg1: i32) -> (i32, i32) {
    %c0_i32 = arith.constant 0 : i32
    %c0_i32_0 = arith.constant 0 : i32
    %c0_i32_1 = arith.constant 0 : i32
    return %c0_i32, %c0_i32_0 : i32, i32
  }
  func.func @transform_5(%arg0: i32, %arg1: i32) -> (i32, i32) {
    %c0_i32 = arith.constant 0 : i32
    %c0_i32_0 = arith.constant 0 : i32
    %c0_i32_1 = arith.constant 0 : i32
    return %c0_i32, %c0_i32_0 : i32, i32
  }
  func.func @transform_6(%arg0: i32, %arg1: i32) -> (i32, i32, i32) {
    %c0_i32 = arith.constant 0 : i32
    %c0_i32_0 = arith.constant 0 : i32
    return %arg0, %c0_i32, %arg1 : i32, i32, i32
  }
}

</mosaic_0001>

<llo_original>
// kernel: tpu_custom_call.1
$region0: #{tpu_custom_call.1}
  #allocation0 [shape = 'u32[]', space=smem, size = 0x4, offset = 0x4, fixed_abs, tag = 'smem constant byte address 0x4 - core index']
  #allocation1 [shape = 'u32[144,128]{1,0:T(1,128)}', space=vmem, size = 0x12000, scoped, tag = 'internal scratch']
  %s0 = inlined_call_operand.hbm [shape: f32[2,4,16,16], index: 0, kind: input, shape index: {}]
  %s1 = inlined_call_operand.hbm [shape: f32[2,4,16,16], index: 1, kind: input, shape index: {}]
  %s2 = inlined_call_operand.hbm [shape: f32[2,4,16,16], index: 2, kind: input, shape index: {}]
  %s3 = inlined_call_operand.vmem [shape: f32[27,4], index: 3, kind: input, shape index: {}]
  %s4 = inlined_call_operand.vmem [shape: f32[8,12], index: 4, kind: input, shape index: {}]
  %s5 = inlined_call_operand.vmem [shape: f32[8,1], index: 5, kind: input, shape index: {}]
  %s6 = inlined_call_operand.hbm [shape: f32[2,8,256], index: 6, kind: output, shape index: {}]
  %s7 = sld [smem:[#allocation0]]
  $region69: #{tpu_custom_call.1} parent=0
    _
  %s9 = ssub.s32 1, %s7
  %s10 = scalar_select 0, %s9, %s7
  $region1: #{tpu_custom_call.1} parent=0
    #allocation2 [shape = 'u8[65536]{0}', space=vmem, size = 0x10000, scoped, tag = 'input window, operand 0']
    #allocation3 [shape = 's32[2]{0}', space=sflag, size = 0x8, scoped, tag = 'scoped memory for tpu_custom_call.1']
    #allocation4 [shape = 's32[2]{0}', space=sflag, size = 0x8, scoped, tag = 'scoped memory for tpu_custom_call.1']
    #allocation5 [shape = 'u8[32768]{0}', space=vmem, size = 0x8000, scoped, tag = 'input window, operand 1']
    #allocation6 [shape = 's32[2]{0}', space=sflag, size = 0x8, scoped, tag = 'scoped memory for tpu_custom_call.1']
    #allocation7 [shape = 'u8[32768]{0}', space=vmem, size = 0x8000, scoped, tag = 'input window, operand 2']
    #allocation8 [shape = 'u8[16384]{0}', space=vmem, size = 0x4000, scoped, tag = 'output window, operand 0']
    %11 = vsyncpa [#allocation3], 0
    %s12 = scalar_lea.sflag [#allocation3], 1
    %13 = vsyncpa %s12, 0
    %14 = vsyncpa [#allocation6], 0
    %s15 = scalar_lea.sflag [#allocation6], 1
    %16 = vsyncpa %s15, 0
    %17 = vsyncpa [#allocation4], 0
    %s18 = scalar_lea.sflag [#allocation4], 1
    %19 = vsyncpa %s18, 0
    loop: start=0, step=1, limit=4
    $region2: #{tpu_custom_call.1} parent=1 // loop_pre_header
      _
    $region3: #{tpu_custom_call.1} parent=1 // loop_header
      %s21 = sphi 0, %s25
      %p22 = scmp.ge.s32.totalorder %s21, 4
      %s28 = sphi 0, %s40
      %s29 = sphi 0, %s36
      %s30 = sphi 0, %s28
      %s31 = sphi 0, %s29
      %s32 = sphi 0, %s30
      %s33 = sphi 0, %s31
      %s45 = sphi 0, %s47
      %s48 = sphi 0, %s45
      %s49 = sphi 0, %s48
      %s65 = sphi 0, %s49
      %s81 = sphi 0, %s83
      %s84 = sphi 0, %s81
      %s85 = sphi 0, %s84
      %s101 = sphi 0, %s85
      %s117 = sphi 0, %s119
      %s120 = sphi 0, %s117
      %s121 = sphi 0, %s120
      %s137 = sphi 0, %s121
      %s141 = sphi 0, %s141
      %s143 = sphi 0, %s141
      %s144 = sphi 0, %s143
      %s158 = sphi 0, %s144
      %s162 = sphi 0, %s162
      %s164 = sphi 0, %s162
      %s165 = sphi 0, %s164
      %s179 = sphi 0, %s165
      %s183 = sphi 0, %s183
      %s185 = sphi 0, %s183
      %s186 = sphi 0, %s185
      %s200 = sphi 0, %s186
      %s208 = sphi 0, %s210
      %s211 = sphi 0, %s208
      %s212 = sphi 0, %s211
      %s228 = sphi 0, %s212
    $region4: #{tpu_custom_call.1} parent=1 // loop_header_branch
      %24 = sbr.rel (%p22) target = $region8
    $region5: #{tpu_custom_call.1} parent=1 // loop_body
      %s26 = ssub.s32 %s21, 1
      %s27 = ssub.s32 %s21, 2
      %s34 = sadd.s32 1, %s29
      %p35 = scmp.ge.s32.totalorder %s34, 1
      %s36 = scalar_select %p35, 0, %s34
      %s37 = sadd.s32 1, %s28
      %s38 = scalar_select %p35, %s37, %s28
      %p39 = scmp.ge.s32.totalorder %s38, 2
      %s40 = scalar_select %p39, 0, %s38
      %s41 = ssub.s32 %s28, %s40
      %s42 = ssub.s32 %s29, %s36
      %s43 = sor.u32 %s41, %s42
      %p44 = scmp.eq.s32.totalorder %s43, 0
      %s46 = sadd.s32 %s45, 1
      %s47 = scalar_select %p44, %s45, %s46
      %p50 = pneg %p44
      %p51 = scmp.eq.s32.totalorder %s21, 1
      %p52 = por %p50, %p51
      %p53 = scmp.ne.s32.totalorder %s45, %s48
      %p54 = scmp.eq.s32.totalorder %s21, 0
      %p55 = por %p53, %p54
      %p56 = scmp.ne.s32.totalorder %s45, %s48
      %p57 = scmp.eq.s32.totalorder %s26, 1
      %p58 = por %p56, %p57
      %p59 = scmp.ne.s32.totalorder %s48, %s49
      %p60 = scmp.eq.s32.totalorder %s26, 0
      %p61 = por %p59, %p60
      %p62 = scmp.ne.s32.totalorder %s48, %s49
      %p63 = scmp.eq.s32.totalorder %s27, 1
      %p64 = por %p62, %p63
      %p66 = scmp.ne.s32.totalorder %s49, %s65
      %p67 = scmp.eq.s32.totalorder %s27, 0
      %p68 = por %p66, %p67
      %s69 = smul.u32 %s29, 2
      %s70 = ssub.s32 %s69, 1
      %p71 = scmp.gt.s32.totalorder %s70, 0
      %s72 = scalar_select %p71, %s70, 0
      %s73 = smul.u32 %s36, 2
      %s74 = ssub.s32 %s73, 1
      %p75 = scmp.gt.s32.totalorder %s74, 0
      %s76 = scalar_select %p75, %s74, 0
      %s77 = ssub.s32 %s28, %s40
      %s78 = ssub.s32 %s72, %s76
      %s79 = sor.u32 %s77, %s78
      %p80 = scmp.eq.s32.totalorder %s79, 0
      %s82 = sadd.s32 %s81, 1
      %s83 = scalar_select %p80, %s81, %s82
      %p86 = pneg %p80
      %p87 = scmp.eq.s32.totalorder %s21, 1
      %p88 = por %p86, %p87
      %p89 = scmp.ne.s32.totalorder %s81, %s84
      %p90 = scmp.eq.s32.totalorder %s21, 0
      %p91 = por %p89, %p90
      %p92 = scmp.ne.s32.totalorder %s81, %s84
      %p93 = scmp.eq.s32.totalorder %s26, 1
      %p94 = por %p92, %p93
      %p95 = scmp.ne.s32.totalorder %s84, %s85
      %p96 = scmp.eq.s32.totalorder %s26, 0
      %p97 = por %p95, %p96
      %p98 = scmp.ne.s32.totalorder %s84, %s85
      %p99 = scmp.eq.s32.totalorder %s27, 1
      %p100 = por %p98, %p99
      %p102 = scmp.ne.s32.totalorder %s85, %s101
      %p103 = scmp.eq.s32.totalorder %s27, 0
      %p104 = por %p102, %p103
      %s105 = sadd.s32 %s29, 1
      %s106 = smul.u32 %s105, 2
      %p107 = scmp.lt.s32.totalorder %s106, 1
      %s108 = scalar_select %p107, %s106, 1
      %s109 = sadd.s32 %s36, 1
      %s110 = smul.u32 %s109, 2
      %p111 = scmp.lt.s32.totalorder %s110, 1
      %s112 = scalar_select %p111, %s110, 1
      %s113 = ssub.s32 %s28, %s40
      %s114 = ssub.s32 %s108, %s112
      %s115 = sor.u32 %s113, %s114
      %p116 = scmp.eq.s32.totalorder %s115, 0
      %s118 = sadd.s32 %s117, 1
      %s119 = scalar_select %p116, %s117, %s118
      %p122 = pneg %p116
      %p123 = scmp.eq.s32.totalorder %s21, 1
      %p124 = por %p122, %p123
      %p125 = scmp.ne.s32.totalorder %s117, %s120
      %p126 = scmp.eq.s32.totalorder %s21, 0
      %p127 = por %p125, %p126
      %p128 = scmp.ne.s32.totalorder %s117, %s120
      %p129 = scmp.eq.s32.totalorder %s26, 1
      %p130 = por %p128, %p129
      %p131 = scmp.ne.s32.totalorder %s120, %s121
      %p132 = scmp.eq.s32.totalorder %s26, 0
      %p133 = por %p131, %p132
      %p134 = scmp.ne.s32.totalorder %s120, %s121
      %p135 = scmp.eq.s32.totalorder %s27, 1
      %p136 = por %p134, %p135
      %p138 = scmp.ne.s32.totalorder %s121, %s137
      %p139 = scmp.eq.s32.totalorder %s27, 0
      %p140 = por %p138, %p139
      %s142 = sadd.s32 %s141, 1
      %p145 = scmp.eq.s32.totalorder %s21, 1
      %p146 = scmp.ne.s32.totalorder %s141, %s143
      %p147 = scmp.eq.s32.totalorder %s21, 0
      %p148 = por %p146, %p147
      %p149 = scmp.ne.s32.totalorder %s141, %s143
      %p150 = scmp.eq.s32.totalorder %s26, 1
      %p151 = por %p149, %p150
      %p152 = scmp.ne.s32.totalorder %s143, %s144
      %p153 = scmp.eq.s32.totalorder %s26, 0
      %p154 = por %p152, %p153
      %p155 = scmp.ne.s32.totalorder %s143, %s144
      %p156 = scmp.eq.s32.totalorder %s27, 1
      %p157 = por %p155, %p156
      %p159 = scmp.ne.s32.totalorder %s144, %s158
      %p160 = scmp.eq.s32.totalorder %s27, 0
      %p161 = por %p159, %p160
      %s163 = sadd.s32 %s162, 1
      %p166 = scmp.eq.s32.totalorder %s21, 1
      %p167 = scmp.ne.s32.totalorder %s162, %s164
      %p168 = scmp.eq.s32.totalorder %s21, 0
      %p169 = por %p167, %p168
      %p170 = scmp.ne.s32.totalorder %s162, %s164
      %p171 = scmp.eq.s32.totalorder %s26, 1
      %p172 = por %p170, %p171
      %p173 = scmp.ne.s32.totalorder %s164, %s165
      %p174 = scmp.eq.s32.totalorder %s26, 0
      %p175 = por %p173, %p174
      %p176 = scmp.ne.s32.totalorder %s164, %s165
      %p177 = scmp.eq.s32.totalorder %s27, 1
      %p178 = por %p176, %p177
      %p180 = scmp.ne.s32.totalorder %s165, %s179
      %p181 = scmp.eq.s32.totalorder %s27, 0
      %p182 = por %p180, %p181
      %s184 = sadd.s32 %s183, 1
      %p187 = scmp.eq.s32.totalorder %s21, 1
      %p188 = scmp.ne.s32.totalorder %s183, %s185
      %p189 = scmp.eq.s32.totalorder %s21, 0
      %p190 = por %p188, %p189
      %p191 = scmp.ne.s32.totalorder %s183, %s185
      %p192 = scmp.eq.s32.totalorder %s26, 1
      %p193 = por %p191, %p192
      %p194 = scmp.ne.s32.totalorder %s185, %s186
      %p195 = scmp.eq.s32.totalorder %s26, 0
      %p196 = por %p194, %p195
      %p197 = scmp.ne.s32.totalorder %s185, %s186
      %p198 = scmp.eq.s32.totalorder %s27, 1
      %p199 = por %p197, %p198
      %p201 = scmp.ne.s32.totalorder %s186, %s200
      %p202 = scmp.eq.s32.totalorder %s27, 0
      %p203 = por %p201, %p202
      %s204 = ssub.s32 %s28, %s40
      %s205 = ssub.s32 %s29, %s36
      %s206 = sor.u32 %s204, %s205
      %p207 = scmp.eq.s32.totalorder %s206, 0
      %s209 = sadd.s32 %s208, 1
      %s210 = scalar_select %p207, %s208, %s209
      %p213 = pneg %p207
      %p214 = scmp.eq.s32.totalorder %s21, 1
      %p215 = por %p213, %p214
      %p216 = scmp.ne.s32.totalorder %s208, %s211
      %p217 = scmp.eq.s32.totalorder %s21, 0
      %p218 = por %p216, %p217
      %p219 = scmp.ne.s32.totalorder %s208, %s211
      %p220 = scmp.eq.s32.totalorder %s26, 1
      %p221 = por %p219, %p220
      %p222 = scmp.ne.s32.totalorder %s211, %s212
      %p223 = scmp.eq.s32.totalorder %s26, 0
      %p224 = por %p222, %p223
      %p225 = scmp.ne.s32.totalorder %s211, %s212
      %p226 = scmp.eq.s32.totalorder %s27, 1
      %p227 = por %p225, %p226
      %p229 = scmp.ne.s32.totalorder %s212, %s228
      %p230 = scmp.eq.s32.totalorder %s27, 0
      %p231 = por %p229, %p230
      %p232 = scmp.le.s32.totalorder 1, %s21
      %p233 = scmp.lt.s32.totalorder %s21, 3
      %p234 = pnand %p232, %p233
      %p235 = pneg %p234
      // Predicated region
      $region9: #{tpu_custom_call.1} parent=5 // pred_check
        _
      $region10: #{tpu_custom_call.1} parent=5 // pred_check_branch
        %237 = sbr.rel (%p234) target = $region12
      $region11: #{tpu_custom_call.1} parent=5 // pred_region
        %s238 = ssub.s32 %s21, 1
        // Predicated region
        $region13: #{tpu_custom_call.1} parent=11 // pred_check
          %p239 = pneg %p154
        $region14: #{tpu_custom_call.1} parent=11 // pred_check_branch
          %241 = sbr.rel (%p239) target = $region16
        $region15: #{tpu_custom_call.1} parent=11 // pred_region
          _
        $region16: #{tpu_custom_call.1} parent=11 // pred_fallthru
          _
        // Predicated region
        $region17: #{tpu_custom_call.1} parent=11 // pred_check
          %p242 = pneg %p175
        $region18: #{tpu_custom_call.1} parent=11 // pred_check_branch
          %244 = sbr.rel (%p242) target = $region20
        $region19: #{tpu_custom_call.1} parent=11 // pred_region
          _
        $region20: #{tpu_custom_call.1} parent=11 // pred_fallthru
          _
        // Predicated region
        $region21: #{tpu_custom_call.1} parent=11 // pred_check
          %p245 = pneg %p196
        $region22: #{tpu_custom_call.1} parent=11 // pred_check_branch
          %247 = sbr.rel (%p245) target = $region24
        $region23: #{tpu_custom_call.1} parent=11 // pred_region
          _
        $region24: #{tpu_custom_call.1} parent=11 // pred_fallthru
          _
      $region12: #{tpu_custom_call.1} parent=5 // pred_fallthru
        _
      %p248 = scmp.lt.s32.totalorder %s21, 2
      // Predicated region
      $region25: #{tpu_custom_call.1} parent=5 // pred_check
        %p249 = pneg %p248
      $region26: #{tpu_custom_call.1} parent=5 // pred_check_branch
        %251 = sbr.rel (%p249) target = $region28
      $region27: #{tpu_custom_call.1} parent=5 // pred_region
        // Predicated region
        $region29: #{tpu_custom_call.1} parent=27 // pred_check
          %p252 = pneg %p55
        $region30: #{tpu_custom_call.1} parent=27 // pred_check_branch
          %254 = sbr.rel (%p252) target = $region32
        $region31: #{tpu_custom_call.1} parent=27 // pred_region
          %s255 = sand.u32 %s45, 1
          %s256 = scalar_lea.sflag [#allocation3], %s255
          %s257 = sand.u32 %s45, 1
          %s258 = smul.addr %s257, 64
          %s259 = scalar_lea.vmem [#allocation2], %s258
          %s260 = smul.u32 2, %s29
          %s262 = ssub.s32 1024, 1024
          %263 = vsyncadd %s256, %s262
          %s264 = smul.addr %s28, 8
          %s265 = sadd.s32 %s260, %s264
          %s266 = smul.addr %s265, 128
          %s267 = scalar_lea.hbm %s0, %s266
          %s268 = sshll.u32 %s259, 4
          %s269 = int_to_ptr.vmem [resolvable:$true] %s268
          %274 = dma.hbm_to_vmem [thread:$0]  %s267, 1024, %s269, %s256, 128, 128, 8
        $region32: #{tpu_custom_call.1} parent=27 // pred_fallthru
          _
        // Predicated region
        $region33: #{tpu_custom_call.1} parent=27 // pred_check
          %p275 = pneg %p91
        $region34: #{tpu_custom_call.1} parent=27 // pred_check_branch
          %277 = sbr.rel (%p275) target = $region36
        $region35: #{tpu_custom_call.1} parent=27 // pred_region
          %s278 = sand.u32 %s21, 1
          %s279 = scalar_lea.sflag [#allocation6], %s278
          %s280 = sand.u32 %s81, 1
          %s281 = smul.addr %s280, 32
          %s282 = scalar_lea.vmem [#allocation5], %s281
          %s283 = smul.u32 %s29, 2
          %s284 = ssub.s32 %s283, 1
          %p285 = scmp.gt.s32.totalorder %s284, 0
          %s286 = scalar_select %p285, %s284, 0
          %s288 = ssub.s32 512, 512
          %289 = vsyncadd %s279, %s288
          %s290 = smul.addr %s28, 8
          %s291 = sadd.s32 %s286, %s290
          %s292 = smul.addr %s291, 128
          %s293 = scalar_lea.hbm %s1, %s292
          %s294 = sshll.u32 %s282, 4
          %s295 = int_to_ptr.vmem [resolvable:$true] %s294
          %300 = dma.hbm_to_vmem [thread:$0]  %s293, 512, %s295, %s279, 256, 128, 8
        $region36: #{tpu_custom_call.1} parent=27 // pred_fallthru
          _
        // Predicated region
        $region37: #{tpu_custom_call.1} parent=27 // pred_check
          %p301 = pneg %p127
        $region38: #{tpu_custom_call.1} parent=27 // pred_check_branch
          %303 = sbr.rel (%p301) target = $region40
        $region39: #{tpu_custom_call.1} parent=27 // pred_region
          %s304 = sand.u32 %s21, 1
          %s305 = scalar_lea.sflag [#allocation6], %s304
          %s306 = sand.u32 %s117, 1
          %s307 = smul.addr %s306, 32
          %s308 = scalar_lea.vmem [#allocation7], %s307
          %s309 = sadd.s32 %s29, 1
          %s310 = smul.u32 %s309, 2
          %p311 = scmp.lt.s32.totalorder %s310, 1
          %s312 = scalar_select %p311, %s310, 1
          %s314 = ssub.s32 512, 512
          %315 = vsyncadd %s305, %s314
          %s316 = smul.addr %s28, 8
          %s317 = sadd.s32 %s312, %s316
          %s318 = smul.addr %s317, 128
          %s319 = scalar_lea.hbm %s2, %s318
          %s320 = sshll.u32 %s308, 4
          %s321 = int_to_ptr.vmem [resolvable:$true] %s320
          %326 = dma.hbm_to_vmem [thread:$0]  %s319, 512, %s321, %s305, 256, 128, 8
        $region40: #{tpu_custom_call.1} parent=27 // pred_fallthru
          _
      $region28: #{tpu_custom_call.1} parent=5 // pred_fallthru
        _
      %p327 = scmp.le.s32.totalorder 1, %s21
      %p328 = scmp.lt.s32.totalorder %s21, 3
      %p329 = pnand %p327, %p328
      %p330 = pneg %p329
      // Predicated region
      $region41: #{tpu_custom_call.1} parent=5 // pred_check
        _
      $region42: #{tpu_custom_call.1} parent=5 // pred_check_branch
        %332 = sbr.rel (%p329) target = $region44
      $region43: #{tpu_custom_call.1} parent=5 // pred_region
        %s333 = ssub.s32 %s21, 1
        %s334 = sand.u32 %s48, 1
        %s335 = scalar_lea.sflag [#allocation3], %s334
        %s336 = sand.u32 %s48, 1
        %s337 = smul.addr %s336, 64
        %s338 = scalar_lea.vmem [#allocation2], %s337
        // Predicated region
        $region45: #{tpu_custom_call.1} parent=43 // pred_check
          %p339 = pneg %p61
        $region46: #{tpu_custom_call.1} parent=43 // pred_check_branch
          %341 = sbr.rel (%p339) target = $region48
        $region47: #{tpu_custom_call.1} parent=43 // pred_region
          %342 = dma.done %s335, 1024
        $region48: #{tpu_custom_call.1} parent=43 // pred_fallthru
          _
        %s343 = sand.u32 %s26, 1
        %s344 = scalar_lea.sflag [#allocation6], %s343
        %s345 = sand.u32 %s84, 1
        %s346 = smul.addr %s345, 32
        %s347 = scalar_lea.vmem [#allocation5], %s346
        // Predicated region
        $region49: #{tpu_custom_call.1} parent=43 // pred_check
          %p348 = pneg %p97
        $region50: #{tpu_custom_call.1} parent=43 // pred_check_branch
          %350 = sbr.rel (%p348) target = $region52
        $region51: #{tpu_custom_call.1} parent=43 // pred_region
          %351 = dma.done %s344, 512
        $region52: #{tpu_custom_call.1} parent=43 // pred_fallthru
          _
        %s352 = sand.u32 %s26, 1
        %s353 = scalar_lea.sflag [#allocation6], %s352
        %s354 = sand.u32 %s120, 1
        %s355 = smul.addr %s354, 32
        %s356 = scalar_lea.vmem [#allocation7], %s355
        // Predicated region
        $region53: #{tpu_custom_call.1} parent=43 // pred_check
          %p357 = pneg %p133
        $region54: #{tpu_custom_call.1} parent=43 // pred_check_branch
          %359 = sbr.rel (%p357) target = $region56
        $region55: #{tpu_custom_call.1} parent=43 // pred_region
          %360 = dma.done %s353, 512
        $region56: #{tpu_custom_call.1} parent=43 // pred_fallthru
          _
        %s361 = sand.u32 %s48, 1
        %s362 = scalar_lea.sflag [#allocation3], %s361
        %s363 = sand.u32 %s48, 1
        %s364 = smul.addr %s363, 64
        %s365 = scalar_lea.vmem [#allocation2], %s364
        %p366 = pneg %p61
        %p367 = pneg %p58
        %s368 = sand.u32 %s26, 1
        %s369 = scalar_lea.sflag [#allocation6], %s368
        %s370 = sand.u32 %s84, 1
        %s371 = smul.addr %s370, 32
        %s372 = scalar_lea.vmem [#allocation5], %s371
        %p373 = pneg %p97
        %p374 = pneg %p94
        %s375 = sand.u32 %s26, 1
        %s376 = scalar_lea.sflag [#allocation6], %s375
        %s377 = sand.u32 %s120, 1
        %s378 = smul.addr %s377, 32
        %s379 = scalar_lea.vmem [#allocation7], %s378
        %p380 = pneg %p133
        %p381 = pneg %p130
        %p382 = pneg %p154
        %p383 = pneg %p151
        %p384 = pneg %p175
        %p385 = pneg %p172
        %p386 = pneg %p196
        %p387 = pneg %p193
        %p388 = pneg %p224
        %p389 = pneg %p221
        %s390 = sand.u32 %s211, 1
        %s391 = scalar_lea.sflag [#allocation4], %s390
        %s392 = sand.u32 %s211, 1
        %s393 = smul.addr %s392, 16
        %s394 = scalar_lea.vmem [#allocation8], %s393
        %s395 = smul.u32 2, %s31
        %s396 = smul.u32 %s31, 2
        %s397 = ssub.s32 %s396, 1
        %p398 = scmp.gt.s32.totalorder %s397, 0
        %s399 = scalar_select %p398, %s397, 0
        %s400 = sadd.s32 %s31, 1
        %s401 = smul.u32 %s400, 2
        %p402 = scmp.lt.s32.totalorder %s401, 1
        %s403 = scalar_select %p402, %s401, 1
        %s404 = smul.u32 2, %s31
        %v405 = vld [vmem:[%s338] sm:$0xff]
        %v406 = vld [vmem:[%s338 + $0x8] sm:$0xff]
        %v407 = vld [vmem:[%s338 + $0x10] sm:$0xff]
        %v408 = vld [vmem:[%s338 + $0x18] sm:$0xff]
        %v409 = vld [vmem:[%s338 + $0x20] sm:$0xff]
        %v410 = vld [vmem:[%s338 + $0x28] sm:$0xff]
        %v411 = vld [vmem:[%s338 + $0x30] sm:$0xff]
        %v412 = vld [vmem:[%s338 + $0x38] sm:$0xff]
        %v413 = vld [vmem:[%s347] sm:$0xff]
        %v414 = vld [vmem:[%s347 + $0x8] sm:$0xff]
        %v415 = vld [vmem:[%s347 + $0x10] sm:$0xff]
        %v416 = vld [vmem:[%s347 + $0x18] sm:$0xff]
        %v417 = vld [vmem:[%s356] sm:$0xff]
        %v418 = vld [vmem:[%s356 + $0x8] sm:$0xff]
        %v419 = vld [vmem:[%s356 + $0x10] sm:$0xff]
        %v420 = vld [vmem:[%s356 + $0x18] sm:$0xff]
        %p421 = scmp.gt.s32.totalorder %s31, 0
        %s422 = scalar_select %p421, 1, 0
        %s423 = scvt.s32.f32 %s422
        %v424 = vstv %s423
        %v425 = vmul.f32 %v413, %v424
        %v426 = vmul.f32 %v414, %v424
        %v427 = vmul.f32 %v415, %v424
        %v428 = vmul.f32 %v416, %v424
        %p429 = scmp.lt.s32.totalorder %s31, 0
        %s430 = scalar_select %p429, 1, 0
        %s431 = scvt.s32.f32 %s430
        %v432 = vstv %s431
        %v433 = vmul.f32 %v417, %v432
        %v434 = vmul.f32 %v418, %v432
        %v435 = vmul.f32 %v419, %v432
        %v436 = vmul.f32 %v420, %v432
        %v441 = vrot.slane %v425, 3
        %v442 = vrot.slane %v426, 3
        %v443 = vrot.slane %v427, 3
        %v444 = vrot.slane %v428, 3
        %vm457 = vcmask 1044480
        %v458 = vrot.slane %v405, 3
        %v459 = vrot.slane %v406, 3
        %v460 = vsel %vm457, %v458, %v459
        %v461 = vrot.slane %v407, 3
        %v462 = vrot.slane %v408, 3
        %v463 = vsel %vm457, %v461, %v462
        %v464 = vrot.slane %v409, 3
        %v465 = vrot.slane %v410, 3
        %v466 = vsel %vm457, %v464, %v465
        %v467 = vrot.slane %v411, 3
        %v468 = vrot.slane %v412, 3
        %v469 = vsel %vm457, %v467, %v468
        %v482 = vrot.slane %v433, 3
        %v483 = vrot.slane %v434, 3
        %v484 = vrot.slane %v435, 3
        %v485 = vrot.slane %v436, 3
        %v490 = vsel %vm457, %v441, %v458
        %v491 = vsel %vm457, %v442, %v461
        %v492 = vsel %vm457, %v443, %v464
        %v493 = vsel %vm457, %v444, %v467
        %v494 = vsel %vm457, %v459, %v482
        %v495 = vsel %vm457, %v462, %v483
        %v496 = vsel %vm457, %v465, %v484
        %v497 = vsel %vm457, %v468, %v485
        %506 = vrot.lane.b32.xlu0 %v490, 5
        %v507 = vpop.permute.xlu0 %506
        %508 = vrot.lane.b32.xlu0 %v460, 5
        %v509 = vpop.permute.xlu0 %508
        %510 = vrot.lane.b32.xlu0 %v494, 5
        %v511 = vpop.permute.xlu0 %510
        %512 = vrot.lane.b32.xlu0 %v482, 5
        %v513 = vpop.permute.xlu0 %512
        %514 = vrot.lane.b32.xlu0 %v491, 5
        %v515 = vpop.permute.xlu0 %514
        %516 = vrot.lane.b32.xlu0 %v463, 5
        %v517 = vpop.permute.xlu0 %516
        %518 = vrot.lane.b32.xlu0 %v495, 5
        %v519 = vpop.permute.xlu0 %518
        %520 = vrot.lane.b32.xlu0 %v483, 5
        %v521 = vpop.permute.xlu0 %520
        %522 = vrot.lane.b32.xlu0 %v492, 5
        %v523 = vpop.permute.xlu0 %522
        %524 = vrot.lane.b32.xlu0 %v466, 5
        %v525 = vpop.permute.xlu0 %524
        %526 = vrot.lane.b32.xlu0 %v496, 5
        %v527 = vpop.permute.xlu0 %526
        %528 = vrot.lane.b32.xlu0 %v484, 5
        %v529 = vpop.permute.xlu0 %528
        %530 = vrot.lane.b32.xlu0 %v493, 5
        %v531 = vpop.permute.xlu0 %530
        %532 = vrot.lane.b32.xlu0 %v469, 5
        %v533 = vpop.permute.xlu0 %532
        %534 = vrot.lane.b32.xlu0 %v497, 5
        %v535 = vpop.permute.xlu0 %534
        %536 = vrot.lane.b32.xlu0 %v485, 5
        %v537 = vpop.permute.xlu0 %536
        %vm554 = vcmask 39936
        %v555 = vsel %vm554, 0.0, %v507
        %v556 = vsel %vm554, 0.0, %v509
        %v557 = vsel %vm554, 0.0, %v511
        %v558 = vsel %vm554, 0.0, %v513
        %v559 = vsel %vm554, 0.0, %v515
        %v560 = vsel %vm554, 0.0, %v517
        %v561 = vsel %vm554, 0.0, %v519
        %v562 = vsel %vm554, 0.0, %v521
        %v563 = vsel %vm554, 0.0, %v523
        %v564 = vsel %vm554, 0.0, %v525
        %v565 = vsel %vm554, 0.0, %v527
        %v566 = vsel %vm554, 0.0, %v529
        %v567 = vsel %vm554, 0.0, %v531
        %v568 = vsel %vm554, 0.0, %v533
        %v569 = vsel %vm554, 0.0, %v535
        %v570 = vsel %vm554, 0.0, %v537
        %vm571 = vcmask 171008
        %v572 = vsel %vm571, %v555, 0.0
        %v573 = vsel %vm571, %v556, 0.0
        %v574 = vsel %vm571, %v557, 0.0
        %v575 = vsel %vm571, %v558, 0.0
        %v576 = vsel %vm571, %v559, 0.0
        %v577 = vsel %vm571, %v560, 0.0
        %v578 = vsel %vm571, %v561, 0.0
        %v579 = vsel %vm571, %v562, 0.0
        %v580 = vsel %vm571, %v563, 0.0
        %v581 = vsel %vm571, %v564, 0.0
        %v582 = vsel %vm571, %v565, 0.0
        %v583 = vsel %vm571, %v566, 0.0
        %v584 = vsel %vm571, %v567, 0.0
        %v585 = vsel %vm571, %v568, 0.0
        %v586 = vsel %vm571, %v569, 0.0
        %v587 = vsel %vm571, %v570, 0.0
        %v588 = vld [vmem:[%s3] sm:$0xff]
        %v589 = vld [vmem:[%s3 + $0x8] sm:$0xff]
        %v590 = vld [vmem:[%s3 + $0x10] sm:$0xff]
        %v591 = vld [vmem:[%s3 + $0x18] sm:$0x7]
        %v592 = vld [vmem:[%s4] sm:$0xff]
        %v593 = vld [vmem:[%s5] sm:$0xff]
        %595 = vset.pattern.permute.xlu0 0
        %596 = vperm.xlu0 %595, %v593
        %v597 = vpop.permute.xlu0 %596
        %v599 = vlaneseq
        %v600 = vshrl.u32 %v599, 7
        %v601 = vsub.s32 0, %v600
        %v602 = vrot.slane %v588, %v601
        %604 = vbcast.lane.b32.xlu0 %v602, 256
        %v605 = vpop.permute.xlu0 %604
        %v606 = vlaneseq
        %v607 = vshrl.u32 %v606, 7
        %v608 = vsub.s32 0, %v607
        %v609 = vrot.slane %v605, %v608
        %v610 = vlaneseq
        %v611 = vshrl.u32 %v610, 7
        %v612 = vsub.s32 1, %v611
        %v613 = vrot.slane %v605, %v612
        %v614 = vlaneseq
        %v615 = vshrl.u32 %v614, 7
        %v616 = vsub.s32 2, %v615
        %v617 = vrot.slane %v605, %v616
        %v618 = vlaneseq
        %v619 = vshrl.u32 %v618, 7
        %v620 = vsub.s32 3, %v619
        %v621 = vrot.slane %v605, %v620
        %v622 = vmul.f32 %v572, %v609
        %v623 = vmul.f32 %v573, %v609
        %v624 = vmul.f32 %v574, %v609
        %v625 = vmul.f32 %v576, %v613
        %v626 = vmul.f32 %v577, %v613
        %v627 = vmul.f32 %v578, %v613
        %v628 = vmul.f32 %v580, %v617
        %v629 = vmul.f32 %v581, %v617
        %v630 = vmul.f32 %v582, %v617
        %v631 = vmul.f32 %v584, %v621
        %v632 = vmul.f32 %v585, %v621
        %v633 = vmul.f32 %v586, %v621
        %v634 = vlaneseq
        %v635 = vshrl.u32 %v634, 7
        %v636 = vsub.s32 3, %v635
        %v637 = vrot.slane %v588, %v636
        %639 = vbcast.lane.b32.xlu0 %v637, 256
        %v640 = vpop.permute.xlu0 %639
        %v641 = vlaneseq
        %v642 = vshrl.u32 %v641, 7
        %v643 = vsub.s32 0, %v642
        %v644 = vrot.slane %v640, %v643
        %v645 = vlaneseq
        %v646 = vshrl.u32 %v645, 7
        %v647 = vsub.s32 1, %v646
        %v648 = vrot.slane %v640, %v647
        %v649 = vlaneseq
        %v650 = vshrl.u32 %v649, 7
        %v651 = vsub.s32 2, %v650
        %v652 = vrot.slane %v640, %v651
        %v653 = vlaneseq
        %v654 = vshrl.u32 %v653, 7
        %v655 = vsub.s32 3, %v654
        %v656 = vrot.slane %v640, %v655
        %v657 = vmul.f32 %v572, %v644
        %v658 = vmul.f32 %v573, %v644
        %v659 = vmul.f32 %v574, %v644
        %v660 = vmul.f32 %v576, %v648
        %v661 = vmul.f32 %v577, %v648
        %v662 = vmul.f32 %v578, %v648
        %v663 = vmul.f32 %v580, %v652
        %v664 = vmul.f32 %v581, %v652
        %v665 = vmul.f32 %v582, %v652
        %v666 = vmul.f32 %v584, %v656
        %v667 = vmul.f32 %v585, %v656
        %v668 = vmul.f32 %v586, %v656
        %vm681 = vcmask 1046528
        %v682 = vrot.slane %v657, 1
        %v683 = vrot.slane %v658, 1
        %v684 = vsel %vm681, %v682, %v683
        %v685 = vrot.slane %v659, 1
        %v686 = vsel %vm681, %v683, %v685
        %v687 = vrot.slane %v660, 1
        %v688 = vrot.slane %v661, 1
        %v689 = vsel %vm681, %v687, %v688
        %v690 = vrot.slane %v662, 1
        %v691 = vsel %vm681, %v688, %v690
        %v692 = vrot.slane %v663, 1
        %v693 = vrot.slane %v664, 1
        %v694 = vsel %vm681, %v692, %v693
        %v695 = vrot.slane %v665, 1
        %v696 = vsel %vm681, %v693, %v695
        %v697 = vrot.slane %v666, 1
        %v698 = vrot.slane %v667, 1
        %v699 = vsel %vm681, %v697, %v698
        %v700 = vrot.slane %v668, 1
        %v701 = vsel %vm681, %v698, %v700
        %v714 = vadd.f32 %v622, %v684
        %v715 = vadd.f32 %v623, %v686
        %v716 = vadd.f32 %v624, %v685
        %v717 = vadd.f32 %v625, %v689
        %v718 = vadd.f32 %v626, %v691
        %v719 = vadd.f32 %v627, %v690
        %v720 = vadd.f32 %v628, %v694
        %v721 = vadd.f32 %v629, %v696
        %v722 = vadd.f32 %v630, %v695
        %v723 = vadd.f32 %v631, %v699
        %v724 = vadd.f32 %v632, %v701
        %v725 = vadd.f32 %v633, %v700
        %v726 = vlaneseq
        %v727 = vshrl.u32 %v726, 7
        %v728 = vsub.s32 6, %v727
        %v729 = vrot.slane %v588, %v728
        %731 = vbcast.lane.b32.xlu0 %v729, 256
        %v732 = vpop.permute.xlu0 %731
        %v733 = vlaneseq
        %v734 = vshrl.u32 %v733, 7
        %v735 = vsub.s32 0, %v734
        %v736 = vrot.slane %v732, %v735
        %v737 = vlaneseq
        %v738 = vshrl.u32 %v737, 7
        %v739 = vsub.s32 1, %v738
        %v740 = vrot.slane %v732, %v739
        %v741 = vlaneseq
        %v742 = vshrl.u32 %v741, 7
        %v743 = vsub.s32 2, %v742
        %v744 = vrot.slane %v732, %v743
        %v745 = vlaneseq
        %v746 = vshrl.u32 %v745, 7
        %v747 = vsub.s32 3, %v746
        %v748 = vrot.slane %v732, %v747
        %v749 = vmul.f32 %v572, %v736
        %v750 = vmul.f32 %v573, %v736
        %v751 = vmul.f32 %v574, %v736
        %v752 = vmul.f32 %v576, %v740
        %v753 = vmul.f32 %v577, %v740
        %v754 = vmul.f32 %v578, %v740
        %v755 = vmul.f32 %v580, %v744
        %v756 = vmul.f32 %v581, %v744
        %v757 = vmul.f32 %v582, %v744
        %v758 = vmul.f32 %v584, %v748
        %v759 = vmul.f32 %v585, %v748
        %v760 = vmul.f32 %v586, %v748
        %vm773 = vcmask 1045504
        %v774 = vrot.slane %v749, 2
        %v775 = vrot.slane %v750, 2
        %v776 = vsel %vm773, %v774, %v775
        %v777 = vrot.slane %v751, 2
        %v778 = vsel %vm773, %v775, %v777
        %v779 = vrot.slane %v752, 2
        %v780 = vrot.slane %v753, 2
        %v781 = vsel %vm773, %v779, %v780
        %v782 = vrot.slane %v754, 2
        %v783 = vsel %vm773, %v780, %v782
        %v784 = vrot.slane %v755, 2
        %v785 = vrot.slane %v756, 2
        %v786 = vsel %vm773, %v784, %v785
        %v787 = vrot.slane %v757, 2
        %v788 = vsel %vm773, %v785, %v787
        %v789 = vrot.slane %v758, 2
        %v790 = vrot.slane %v759, 2
        %v791 = vsel %vm773, %v789, %v790
        %v792 = vrot.slane %v760, 2
        %v793 = vsel %vm773, %v790, %v792
        %v806 = vadd.f32 %v714, %v776
        %v807 = vadd.f32 %v715, %v778
        %v808 = vadd.f32 %v716, %v777
        %v809 = vadd.f32 %v717, %v781
        %v810 = vadd.f32 %v718, %v783
        %v811 = vadd.f32 %v719, %v782
        %v812 = vadd.f32 %v720, %v786
        %v813 = vadd.f32 %v721, %v788
        %v814 = vadd.f32 %v722, %v787
        %v815 = vadd.f32 %v723, %v791
        %v816 = vadd.f32 %v724, %v793
        %v817 = vadd.f32 %v725, %v792
        %v818 = vlaneseq
        %v819 = vshrl.u32 %v818, 7
        %v820 = vsub.s32 1, %v819
        %v821 = vrot.slane %v588, %v820
        %823 = vbcast.lane.b32.xlu0 %v821, 256
        %v824 = vpop.permute.xlu0 %823
        %v825 = vlaneseq
        %v826 = vshrl.u32 %v825, 7
        %v827 = vsub.s32 0, %v826
        %v828 = vrot.slane %v824, %v827
        %v829 = vlaneseq
        %v830 = vshrl.u32 %v829, 7
        %v831 = vsub.s32 1, %v830
        %v832 = vrot.slane %v824, %v831
        %v833 = vlaneseq
        %v834 = vshrl.u32 %v833, 7
        %v835 = vsub.s32 2, %v834
        %v836 = vrot.slane %v824, %v835
        %v837 = vlaneseq
        %v838 = vshrl.u32 %v837, 7
        %v839 = vsub.s32 3, %v838
        %v840 = vrot.slane %v824, %v839
        %v841 = vmul.f32 %v572, %v828
        %v842 = vmul.f32 %v573, %v828
        %v843 = vmul.f32 %v574, %v828
        %v844 = vmul.f32 %v576, %v832
        %v845 = vmul.f32 %v577, %v832
        %v846 = vmul.f32 %v578, %v832
        %v847 = vmul.f32 %v580, %v836
        %v848 = vmul.f32 %v581, %v836
        %v849 = vmul.f32 %v582, %v836
        %v850 = vmul.f32 %v584, %v840
        %v851 = vmul.f32 %v585, %v840
        %v852 = vmul.f32 %v586, %v840
        %865 = vrot.lane.b32.xlu0 %v841, 127
        %v866 = vpop.permute.xlu0 %865
        %867 = vrot.lane.b32.xlu0 %v842, 127
        %v868 = vpop.permute.xlu0 %867
        %869 = vrot.lane.b32.xlu0 %v843, 127
        %v870 = vpop.permute.xlu0 %869
        %871 = vrot.lane.b32.xlu0 %v844, 127
        %v872 = vpop.permute.xlu0 %871
        %873 = vrot.lane.b32.xlu0 %v845, 127
        %v874 = vpop.permute.xlu0 %873
        %875 = vrot.lane.b32.xlu0 %v846, 127
        %v876 = vpop.permute.xlu0 %875
        %877 = vrot.lane.b32.xlu0 %v847, 127
        %v878 = vpop.permute.xlu0 %877
        %879 = vrot.lane.b32.xlu0 %v848, 127
        %v880 = vpop.permute.xlu0 %879
        %881 = vrot.lane.b32.xlu0 %v849, 127
        %v882 = vpop.permute.xlu0 %881
        %883 = vrot.lane.b32.xlu0 %v850, 127
        %v884 = vpop.permute.xlu0 %883
        %885 = vrot.lane.b32.xlu0 %v851, 127
        %v886 = vpop.permute.xlu0 %885
        %887 = vrot.lane.b32.xlu0 %v852, 127
        %v888 = vpop.permute.xlu0 %887
        %v901 = vadd.f32 %v806, %v866
        %v902 = vadd.f32 %v807, %v868
        %v903 = vadd.f32 %v808, %v870
        %v904 = vadd.f32 %v809, %v872
        %v905 = vadd.f32 %v810, %v874
        %v906 = vadd.f32 %v811, %v876
        %v907 = vadd.f32 %v812, %v878
        %v908 = vadd.f32 %v813, %v880
        %v909 = vadd.f32 %v814, %v882
        %v910 = vadd.f32 %v815, %v884
        %v911 = vadd.f32 %v816, %v886
        %v912 = vadd.f32 %v817, %v888
        %v913 = vlaneseq
        %v914 = vshrl.u32 %v913, 7
        %v915 = vsub.s32 4, %v914
        %v916 = vrot.slane %v588, %v915
        %918 = vbcast.lane.b32.xlu0 %v916, 256
        %v919 = vpop.permute.xlu0 %918
        %v920 = vlaneseq
        %v921 = vshrl.u32 %v920, 7
        %v922 = vsub.s32 0, %v921
        %v923 = vrot.slane %v919, %v922
        %v924 = vlaneseq
        %v925 = vshrl.u32 %v924, 7
        %v926 = vsub.s32 1, %v925
        %v927 = vrot.slane %v919, %v926
        %v928 = vlaneseq
        %v929 = vshrl.u32 %v928, 7
        %v930 = vsub.s32 2, %v929
        %v931 = vrot.slane %v919, %v930
        %v932 = vlaneseq
        %v933 = vshrl.u32 %v932, 7
        %v934 = vsub.s32 3, %v933
        %v935 = vrot.slane %v919, %v934
        %v936 = vmul.f32 %v572, %v923
        %v937 = vmul.f32 %v573, %v923
        %v938 = vmul.f32 %v574, %v923
        %v939 = vmul.f32 %v576, %v927
        %v940 = vmul.f32 %v577, %v927
        %v941 = vmul.f32 %v578, %v927
        %v942 = vmul.f32 %v580, %v931
        %v943 = vmul.f32 %v581, %v931
        %v944 = vmul.f32 %v582, %v931
        %v945 = vmul.f32 %v584, %v935
        %v946 = vmul.f32 %v585, %v935
        %v947 = vmul.f32 %v586, %v935
        %v960 = vrot.slane %v936, 1
        %v961 = vrot.slane %v937, 1
        %v962 = vsel %vm681, %v960, %v961
        %v963 = vrot.slane %v938, 1
        %v964 = vsel %vm681, %v961, %v963
        %v965 = vrot.slane %v939, 1
        %v966 = vrot.slane %v940, 1
        %v967 = vsel %vm681, %v965, %v966
        %v968 = vrot.slane %v941, 1
        %v969 = vsel %vm681, %v966, %v968
        %v970 = vrot.slane %v942, 1
        %v971 = vrot.slane %v943, 1
        %v972 = vsel %vm681, %v970, %v971
        %v973 = vrot.slane %v944, 1
        %v974 = vsel %vm681, %v971, %v973
        %v975 = vrot.slane %v945, 1
        %v976 = vrot.slane %v946, 1
        %v977 = vsel %vm681, %v975, %v976
        %v978 = vrot.slane %v947, 1
        %v979 = vsel %vm681, %v976, %v978
        %980 = vrot.lane.b32.xlu0 %v962, 127
        %v981 = vpop.permute.xlu0 %980
        %982 = vrot.lane.b32.xlu0 %v964, 127
        %v983 = vpop.permute.xlu0 %982
        %984 = vrot.lane.b32.xlu0 %v963, 127
        %v985 = vpop.permute.xlu0 %984
        %986 = vrot.lane.b32.xlu0 %v967, 127
        %v987 = vpop.permute.xlu0 %986
        %988 = vrot.lane.b32.xlu0 %v969, 127
        %v989 = vpop.permute.xlu0 %988
        %990 = vrot.lane.b32.xlu0 %v968, 127
        %v991 = vpop.permute.xlu0 %990
        %992 = vrot.lane.b32.xlu0 %v972, 127
        %v993 = vpop.permute.xlu0 %992
        %994 = vrot.lane.b32.xlu0 %v974, 127
        %v995 = vpop.permute.xlu0 %994
        %996 = vrot.lane.b32.xlu0 %v973, 127
        %v997 = vpop.permute.xlu0 %996
        %998 = vrot.lane.b32.xlu0 %v977, 127
        %v999 = vpop.permute.xlu0 %998
        %1000 = vrot.lane.b32.xlu0 %v979, 127
        %v1001 = vpop.permute.xlu0 %1000
        %1002 = vrot.lane.b32.xlu0 %v978, 127
        %v1003 = vpop.permute.xlu0 %1002
        %v1016 = vadd.f32 %v901, %v981
        %v1017 = vadd.f32 %v902, %v983
        %v1018 = vadd.f32 %v903, %v985
        %v1019 = vadd.f32 %v904, %v987
        %v1020 = vadd.f32 %v905, %v989
        %v1021 = vadd.f32 %v906, %v991
        %v1022 = vadd.f32 %v907, %v993
        %v1023 = vadd.f32 %v908, %v995
        %v1024 = vadd.f32 %v909, %v997
        %v1025 = vadd.f32 %v910, %v999
        %v1026 = vadd.f32 %v911, %v1001
        %v1027 = vadd.f32 %v912, %v1003
        %v1028 = vlaneseq
        %v1029 = vshrl.u32 %v1028, 7
        %v1030 = vsub.s32 7, %v1029
        %v1031 = vrot.slane %v588, %v1030
        %1033 = vbcast.lane.b32.xlu0 %v1031, 256
        %v1034 = vpop.permute.xlu0 %1033
        %v1035 = vlaneseq
        %v1036 = vshrl.u32 %v1035, 7
        %v1037 = vsub.s32 0, %v1036
        %v1038 = vrot.slane %v1034, %v1037
        %v1039 = vlaneseq
        %v1040 = vshrl.u32 %v1039, 7
        %v1041 = vsub.s32 1, %v1040
        %v1042 = vrot.slane %v1034, %v1041
        %v1043 = vlaneseq
        %v1044 = vshrl.u32 %v1043, 7
        %v1045 = vsub.s32 2, %v1044
        %v1046 = vrot.slane %v1034, %v1045
        %v1047 = vlaneseq
        %v1048 = vshrl.u32 %v1047, 7
        %v1049 = vsub.s32 3, %v1048
        %v1050 = vrot.slane %v1034, %v1049
        %v1051 = vmul.f32 %v572, %v1038
        %v1052 = vmul.f32 %v573, %v1038
        %v1053 = vmul.f32 %v574, %v1038
        %v1054 = vmul.f32 %v576, %v1042
        %v1055 = vmul.f32 %v577, %v1042
        %v1056 = vmul.f32 %v578, %v1042
        %v1057 = vmul.f32 %v580, %v1046
        %v1058 = vmul.f32 %v581, %v1046
        %v1059 = vmul.f32 %v582, %v1046
        %v1060 = vmul.f32 %v584, %v1050
        %v1061 = vmul.f32 %v585, %v1050
        %v1062 = vmul.f32 %v586, %v1050
        %v1075 = vrot.slane %v1051, 2
        %v1076 = vrot.slane %v1052, 2
        %v1077 = vsel %vm773, %v1075, %v1076
        %v1078 = vrot.slane %v1053, 2
        %v1079 = vsel %vm773, %v1076, %v1078
        %v1080 = vrot.slane %v1054, 2
        %v1081 = vrot.slane %v1055, 2
        %v1082 = vsel %vm773, %v1080, %v1081
        %v1083 = vrot.slane %v1056, 2
        %v1084 = vsel %vm773, %v1081, %v1083
        %v1085 = vrot.slane %v1057, 2
        %v1086 = vrot.slane %v1058, 2
        %v1087 = vsel %vm773, %v1085, %v1086
        %v1088 = vrot.slane %v1059, 2
        %v1089 = vsel %vm773, %v1086, %v1088
        %v1090 = vrot.slane %v1060, 2
        %v1091 = vrot.slane %v1061, 2
        %v1092 = vsel %vm773, %v1090, %v1091
        %v1093 = vrot.slane %v1062, 2
        %v1094 = vsel %vm773, %v1091, %v1093
        %1095 = vrot.lane.b32.xlu0 %v1077, 127
        %v1096 = vpop.permute.xlu0 %1095
        %1097 = vrot.lane.b32.xlu0 %v1079, 127
        %v1098 = vpop.permute.xlu0 %1097
        %1099 = vrot.lane.b32.xlu0 %v1078, 127
        %v1100 = vpop.permute.xlu0 %1099
        %1101 = vrot.lane.b32.xlu0 %v1082, 127
        %v1102 = vpop.permute.xlu0 %1101
        %1103 = vrot.lane.b32.xlu0 %v1084, 127
        %v1104 = vpop.permute.xlu0 %1103
        %1105 = vrot.lane.b32.xlu0 %v1083, 127
        %v1106 = vpop.permute.xlu0 %1105
        %1107 = vrot.lane.b32.xlu0 %v1087, 127
        %v1108 = vpop.permute.xlu0 %1107
        %1109 = vrot.lane.b32.xlu0 %v1089, 127
        %v1110 = vpop.permute.xlu0 %1109
        %1111 = vrot.lane.b32.xlu0 %v1088, 127
        %v1112 = vpop.permute.xlu0 %1111
        %1113 = vrot.lane.b32.xlu0 %v1092, 127
        %v1114 = vpop.permute.xlu0 %1113
        %1115 = vrot.lane.b32.xlu0 %v1094, 127
        %v1116 = vpop.permute.xlu0 %1115
        %1117 = vrot.lane.b32.xlu0 %v1093, 127
        %v1118 = vpop.permute.xlu0 %1117
        %v1131 = vadd.f32 %v1016, %v1096
        %v1132 = vadd.f32 %v1017, %v1098
        %v1133 = vadd.f32 %v1018, %v1100
        %v1134 = vadd.f32 %v1019, %v1102
        %v1135 = vadd.f32 %v1020, %v1104
        %v1136 = vadd.f32 %v1021, %v1106
        %v1137 = vadd.f32 %v1022, %v1108
        %v1138 = vadd.f32 %v1023, %v1110
        %v1139 = vadd.f32 %v1024, %v1112
        %v1140 = vadd.f32 %v1025, %v1114
        %v1141 = vadd.f32 %v1026, %v1116
        %v1142 = vadd.f32 %v1027, %v1118
        %v1143 = vlaneseq
        %v1144 = vshrl.u32 %v1143, 7
        %v1145 = vsub.s32 2, %v1144
        %v1146 = vrot.slane %v588, %v1145
        %1148 = vbcast.lane.b32.xlu0 %v1146, 256
        %v1149 = vpop.permute.xlu0 %1148
        %v1150 = vlaneseq
        %v1151 = vshrl.u32 %v1150, 7
        %v1152 = vsub.s32 0, %v1151
        %v1153 = vrot.slane %v1149, %v1152
        %v1154 = vlaneseq
        %v1155 = vshrl.u32 %v1154, 7
        %v1156 = vsub.s32 1, %v1155
        %v1157 = vrot.slane %v1149, %v1156
        %v1158 = vlaneseq
        %v1159 = vshrl.u32 %v1158, 7
        %v1160 = vsub.s32 2, %v1159
        %v1161 = vrot.slane %v1149, %v1160
        %v1162 = vlaneseq
        %v1163 = vshrl.u32 %v1162, 7
        %v1164 = vsub.s32 3, %v1163
        %v1165 = vrot.slane %v1149, %v1164
        %v1166 = vmul.f32 %v572, %v1153
        %v1167 = vmul.f32 %v573, %v1153
        %v1168 = vmul.f32 %v574, %v1153
        %v1169 = vmul.f32 %v576, %v1157
        %v1170 = vmul.f32 %v577, %v1157
        %v1171 = vmul.f32 %v578, %v1157
        %v1172 = vmul.f32 %v580, %v1161
        %v1173 = vmul.f32 %v581, %v1161
        %v1174 = vmul.f32 %v582, %v1161
        %v1175 = vmul.f32 %v584, %v1165
        %v1176 = vmul.f32 %v585, %v1165
        %v1177 = vmul.f32 %v586, %v1165
        %1190 = vrot.lane.b32.xlu0 %v1166, 126
        %v1191 = vpop.permute.xlu0 %1190
        %1192 = vrot.lane.b32.xlu0 %v1167, 126
        %v1193 = vpop.permute.xlu0 %1192
        %1194 = vrot.lane.b32.xlu0 %v1168, 126
        %v1195 = vpop.permute.xlu0 %1194
        %1196 = vrot.lane.b32.xlu0 %v1169, 126
        %v1197 = vpop.permute.xlu0 %1196
        %1198 = vrot.lane.b32.xlu0 %v1170, 126
        %v1199 = vpop.permute.xlu0 %1198
        %1200 = vrot.lane.b32.xlu0 %v1171, 126
        %v1201 = vpop.permute.xlu0 %1200
        %1202 = vrot.lane.b32.xlu0 %v1172, 126
        %v1203 = vpop.permute.xlu0 %1202
        %1204 = vrot.lane.b32.xlu0 %v1173, 126
        %v1205 = vpop.permute.xlu0 %1204
        %1206 = vrot.lane.b32.xlu0 %v1174, 126
        %v1207 = vpop.permute.xlu0 %1206
        %1208 = vrot.lane.b32.xlu0 %v1175, 126
        %v1209 = vpop.permute.xlu0 %1208
        %1210 = vrot.lane.b32.xlu0 %v1176, 126
        %v1211 = vpop.permute.xlu0 %1210
        %1212 = vrot.lane.b32.xlu0 %v1177, 126
        %v1213 = vpop.permute.xlu0 %1212
        %v1226 = vadd.f32 %v1131, %v1191
        %v1227 = vadd.f32 %v1132, %v1193
        %v1228 = vadd.f32 %v1133, %v1195
        %v1229 = vadd.f32 %v1134, %v1197
        %v1230 = vadd.f32 %v1135, %v1199
        %v1231 = vadd.f32 %v1136, %v1201
        %v1232 = vadd.f32 %v1137, %v1203
        %v1233 = vadd.f32 %v1138, %v1205
        %v1234 = vadd.f32 %v1139, %v1207
        %v1235 = vadd.f32 %v1140, %v1209
        %v1236 = vadd.f32 %v1141, %v1211
        %v1237 = vadd.f32 %v1142, %v1213
        %v1238 = vlaneseq
        %v1239 = vshrl.u32 %v1238, 7
        %v1240 = vsub.s32 5, %v1239
        %v1241 = vrot.slane %v588, %v1240
        %1243 = vbcast.lane.b32.xlu0 %v1241, 256
        %v1244 = vpop.permute.xlu0 %1243
        %v1245 = vlaneseq
        %v1246 = vshrl.u32 %v1245, 7
        %v1247 = vsub.s32 0, %v1246
        %v1248 = vrot.slane %v1244, %v1247
        %v1249 = vlaneseq
        %v1250 = vshrl.u32 %v1249, 7
        %v1251 = vsub.s32 1, %v1250
        %v1252 = vrot.slane %v1244, %v1251
        %v1253 = vlaneseq
        %v1254 = vshrl.u32 %v1253, 7
        %v1255 = vsub.s32 2, %v1254
        %v1256 = vrot.slane %v1244, %v1255
        %v1257 = vlaneseq
        %v1258 = vshrl.u32 %v1257, 7
        %v1259 = vsub.s32 3, %v1258
        %v1260 = vrot.slane %v1244, %v1259
        %v1261 = vmul.f32 %v572, %v1248
        %v1262 = vmul.f32 %v573, %v1248
        %v1263 = vmul.f32 %v574, %v1248
        %v1264 = vmul.f32 %v576, %v1252
        %v1265 = vmul.f32 %v577, %v1252
        %v1266 = vmul.f32 %v578, %v1252
        %v1267 = vmul.f32 %v580, %v1256
        %v1268 = vmul.f32 %v581, %v1256
        %v1269 = vmul.f32 %v582, %v1256
        %v1270 = vmul.f32 %v584, %v1260
        %v1271 = vmul.f32 %v585, %v1260
        %v1272 = vmul.f32 %v586, %v1260
        %v1285 = vrot.slane %v1261, 1
        %v1286 = vrot.slane %v1262, 1
        %v1287 = vsel %vm681, %v1285, %v1286
        %v1288 = vrot.slane %v1263, 1
        %v1289 = vsel %vm681, %v1286, %v1288
        %v1290 = vrot.slane %v1264, 1
        %v1291 = vrot.slane %v1265, 1
        %v1292 = vsel %vm681, %v1290, %v1291
        %v1293 = vrot.slane %v1266, 1
        %v1294 = vsel %vm681, %v1291, %v1293
        %v1295 = vrot.slane %v1267, 1
        %v1296 = vrot.slane %v1268, 1
        %v1297 = vsel %vm681, %v1295, %v1296
        %v1298 = vrot.slane %v1269, 1
        %v1299 = vsel %vm681, %v1296, %v1298
        %v1300 = vrot.slane %v1270, 1
        %v1301 = vrot.slane %v1271, 1
        %v1302 = vsel %vm681, %v1300, %v1301
        %v1303 = vrot.slane %v1272, 1
        %v1304 = vsel %vm681, %v1301, %v1303
        %1305 = vrot.lane.b32.xlu0 %v1287, 126
        %v1306 = vpop.permute.xlu0 %1305
        %1307 = vrot.lane.b32.xlu0 %v1289, 126
        %v1308 = vpop.permute.xlu0 %1307
        %1309 = vrot.lane.b32.xlu0 %v1288, 126
        %v1310 = vpop.permute.xlu0 %1309
        %1311 = vrot.lane.b32.xlu0 %v1292, 126
        %v1312 = vpop.permute.xlu0 %1311
        %1313 = vrot.lane.b32.xlu0 %v1294, 126
        %v1314 = vpop.permute.xlu0 %1313
        %1315 = vrot.lane.b32.xlu0 %v1293, 126
        %v1316 = vpop.permute.xlu0 %1315
        %1317 = vrot.lane.b32.xlu0 %v1297, 126
        %v1318 = vpop.permute.xlu0 %1317
        %1319 = vrot.lane.b32.xlu0 %v1299, 126
        %v1320 = vpop.permute.xlu0 %1319
        %1321 = vrot.lane.b32.xlu0 %v1298, 126
        %v1322 = vpop.permute.xlu0 %1321
        %1323 = vrot.lane.b32.xlu0 %v1302, 126
        %v1324 = vpop.permute.xlu0 %1323
        %1325 = vrot.lane.b32.xlu0 %v1304, 126
        %v1326 = vpop.permute.xlu0 %1325
        %1327 = vrot.lane.b32.xlu0 %v1303, 126
        %v1328 = vpop.permute.xlu0 %1327
        %v1341 = vadd.f32 %v1226, %v1306
        %v1342 = vadd.f32 %v1227, %v1308
        %v1343 = vadd.f32 %v1228, %v1310
        %v1344 = vadd.f32 %v1229, %v1312
        %v1345 = vadd.f32 %v1230, %v1314
        %v1346 = vadd.f32 %v1231, %v1316
        %v1347 = vadd.f32 %v1232, %v1318
        %v1348 = vadd.f32 %v1233, %v1320
        %v1349 = vadd.f32 %v1234, %v1322
        %v1350 = vadd.f32 %v1235, %v1324
        %v1351 = vadd.f32 %v1236, %v1326
        %v1352 = vadd.f32 %v1237, %v1328
        %v1353 = vlaneseq
        %v1354 = vshrl.u32 %v1353, 7
        %v1355 = vsub.s32 0, %v1354
        %v1356 = vrot.slane %v589, %v1355
        %1358 = vbcast.lane.b32.xlu0 %v1356, 256
        %v1359 = vpop.permute.xlu0 %1358
        %v1360 = vlaneseq
        %v1361 = vshrl.u32 %v1360, 7
        %v1362 = vsub.s32 0, %v1361
        %v1363 = vrot.slane %v1359, %v1362
        %v1364 = vlaneseq
        %v1365 = vshrl.u32 %v1364, 7
        %v1366 = vsub.s32 1, %v1365
        %v1367 = vrot.slane %v1359, %v1366
        %v1368 = vlaneseq
        %v1369 = vshrl.u32 %v1368, 7
        %v1370 = vsub.s32 2, %v1369
        %v1371 = vrot.slane %v1359, %v1370
        %v1372 = vlaneseq
        %v1373 = vshrl.u32 %v1372, 7
        %v1374 = vsub.s32 3, %v1373
        %v1375 = vrot.slane %v1359, %v1374
        %v1376 = vmul.f32 %v572, %v1363
        %v1377 = vmul.f32 %v573, %v1363
        %v1378 = vmul.f32 %v574, %v1363
        %v1379 = vmul.f32 %v576, %v1367
        %v1380 = vmul.f32 %v577, %v1367
        %v1381 = vmul.f32 %v578, %v1367
        %v1382 = vmul.f32 %v580, %v1371
        %v1383 = vmul.f32 %v581, %v1371
        %v1384 = vmul.f32 %v582, %v1371
        %v1385 = vmul.f32 %v584, %v1375
        %v1386 = vmul.f32 %v585, %v1375
        %v1387 = vmul.f32 %v586, %v1375
        %v1400 = vrot.slane %v1376, 2
        %v1401 = vrot.slane %v1377, 2
        %v1402 = vsel %vm773, %v1400, %v1401
        %v1403 = vrot.slane %v1378, 2
        %v1404 = vsel %vm773, %v1401, %v1403
        %v1405 = vrot.slane %v1379, 2
        %v1406 = vrot.slane %v1380, 2
        %v1407 = vsel %vm773, %v1405, %v1406
        %v1408 = vrot.slane %v1381, 2
        %v1409 = vsel %vm773, %v1406, %v1408
        %v1410 = vrot.slane %v1382, 2
        %v1411 = vrot.slane %v1383, 2
        %v1412 = vsel %vm773, %v1410, %v1411
        %v1413 = vrot.slane %v1384, 2
        %v1414 = vsel %vm773, %v1411, %v1413
        %v1415 = vrot.slane %v1385, 2
        %v1416 = vrot.slane %v1386, 2
        %v1417 = vsel %vm773, %v1415, %v1416
        %v1418 = vrot.slane %v1387, 2
        %v1419 = vsel %vm773, %v1416, %v1418
        %1420 = vrot.lane.b32.xlu0 %v1402, 126
        %v1421 = vpop.permute.xlu0 %1420
        %1422 = vrot.lane.b32.xlu0 %v1404, 126
        %v1423 = vpop.permute.xlu0 %1422
        %1424 = vrot.lane.b32.xlu0 %v1403, 126
        %v1425 = vpop.permute.xlu0 %1424
        %1426 = vrot.lane.b32.xlu0 %v1407, 126
        %v1427 = vpop.permute.xlu0 %1426
        %1428 = vrot.lane.b32.xlu0 %v1409, 126
        %v1429 = vpop.permute.xlu0 %1428
        %1430 = vrot.lane.b32.xlu0 %v1408, 126
        %v1431 = vpop.permute.xlu0 %1430
        %1432 = vrot.lane.b32.xlu0 %v1412, 126
        %v1433 = vpop.permute.xlu0 %1432
        %1434 = vrot.lane.b32.xlu0 %v1414, 126
        %v1435 = vpop.permute.xlu0 %1434
        %1436 = vrot.lane.b32.xlu0 %v1413, 126
        %v1437 = vpop.permute.xlu0 %1436
        %1438 = vrot.lane.b32.xlu0 %v1417, 126
        %v1439 = vpop.permute.xlu0 %1438
        %1440 = vrot.lane.b32.xlu0 %v1419, 126
        %v1441 = vpop.permute.xlu0 %1440
        %1442 = vrot.lane.b32.xlu0 %v1418, 126
        %v1443 = vpop.permute.xlu0 %1442
        %v1456 = vadd.f32 %v1341, %v1421
        %v1457 = vadd.f32 %v1342, %v1423
        %v1458 = vadd.f32 %v1343, %v1425
        %v1459 = vadd.f32 %v1344, %v1427
        %v1460 = vadd.f32 %v1345, %v1429
        %v1461 = vadd.f32 %v1346, %v1431
        %v1462 = vadd.f32 %v1347, %v1433
        %v1463 = vadd.f32 %v1348, %v1435
        %v1464 = vadd.f32 %v1349, %v1437
        %v1465 = vadd.f32 %v1350, %v1439
        %v1466 = vadd.f32 %v1351, %v1441
        %v1467 = vadd.f32 %v1352, %v1443
        %vm1480 = vcmask 1043456
        %v1481 = vrot.slane %v1456, 4
        %v1482 = vrot.slane %v1457, 4
        %v1483 = vsel %vm1480, %v1481, %v1482
        %v1484 = vrot.slane %v1458, 4
        %v1485 = vsel %vm1480, %v1482, %v1484
        %v1486 = vrot.slane %v1459, 4
        %v1487 = vrot.slane %v1460, 4
        %v1488 = vsel %vm1480, %v1486, %v1487
        %v1489 = vrot.slane %v1461, 4
        %v1490 = vsel %vm1480, %v1487, %v1489
        %v1491 = vrot.slane %v1462, 4
        %v1492 = vrot.slane %v1463, 4
        %v1493 = vsel %vm1480, %v1491, %v1492
        %v1494 = vrot.slane %v1464, 4
        %v1495 = vsel %vm1480, %v1492, %v1494
        %v1496 = vrot.slane %v1465, 4
        %v1497 = vrot.slane %v1466, 4
        %v1498 = vsel %vm1480, %v1496, %v1497
        %v1499 = vrot.slane %v1467, 4
        %v1500 = vsel %vm1480, %v1497, %v1499
        %1501 = vrot.lane.b32.xlu0 %v1483, 124
        %v1502 = vpop.permute.xlu0 %1501
        %1503 = vrot.lane.b32.xlu0 %v1485, 124
        %v1504 = vpop.permute.xlu0 %1503
        %1505 = vrot.lane.b32.xlu0 %v1488, 124
        %v1506 = vpop.permute.xlu0 %1505
        %1507 = vrot.lane.b32.xlu0 %v1490, 124
        %v1508 = vpop.permute.xlu0 %1507
        %1509 = vrot.lane.b32.xlu0 %v1493, 124
        %v1510 = vpop.permute.xlu0 %1509
        %1511 = vrot.lane.b32.xlu0 %v1495, 124
        %v1512 = vpop.permute.xlu0 %1511
        %1513 = vrot.lane.b32.xlu0 %v1498, 124
        %v1514 = vpop.permute.xlu0 %1513
        %1515 = vrot.lane.b32.xlu0 %v1500, 124
        %v1516 = vpop.permute.xlu0 %1515
        %v1525 = vcombine.low %v1502, %v1510
        %v1526 = vcombine.high %v1502, %v1510
        %v1528 = vunpack.c.l.s4 1983009808
        %v1529 = vunpack.c.0.s8 %v1528
        %v1530 = vlaneseq
        %v1531 = vshrl.u32 %v1530, 7
        %v1532 = vsub.s32 %v1529, %v1531
        %v1533 = vrot.slane %v1525, %v1532
        %v1535 = vunpack.c.l.s4 1983009808
        %v1536 = vunpack.c.0.s8 %v1535
        %v1537 = vlaneseq
        %v1538 = vshrl.u32 %v1537, 7
        %v1539 = vsub.s32 %v1536, %v1538
        %v1540 = vrot.slane %v1526, %v1539
        %v1541 = vcombine.low %v1506, %v1514
        %v1542 = vcombine.high %v1506, %v1514
        %v1544 = vunpack.c.l.s4 1983009808
        %v1545 = vunpack.c.0.s8 %v1544
        %v1546 = vlaneseq
        %v1547 = vshrl.u32 %v1546, 7
        %v1548 = vsub.s32 %v1545, %v1547
        %v1549 = vrot.slane %v1541, %v1548
        %v1551 = vunpack.c.l.s4 1983009808
        %v1552 = vunpack.c.0.s8 %v1551
        %v1553 = vlaneseq
        %v1554 = vshrl.u32 %v1553, 7
        %v1555 = vsub.s32 %v1552, %v1554
        %v1556 = vrot.slane %v1542, %v1555
        %v1557 = vcombine.low %v1533, %v1549
        %v1558 = vcombine.high %v1533, %v1549
        %v1560 = vunpack.c.l.s4 1934713408
        %v1561 = vunpack.c.0.s8 %v1560
        %v1562 = vlaneseq
        %v1563 = vshrl.u32 %v1562, 7
        %v1564 = vsub.s32 %v1561, %v1563
        %v1565 = vrot.slane %v1557, %v1564
        %v1567 = vunpack.c.l.s4 1934713408
        %v1568 = vunpack.c.0.s8 %v1567
        %v1569 = vlaneseq
        %v1570 = vshrl.u32 %v1569, 7
        %v1571 = vsub.s32 %v1568, %v1570
        %v1572 = vrot.slane %v1558, %v1571
        %v1573 = vcombine.low %v1540, %v1556
        %v1574 = vcombine.high %v1540, %v1556
        %v1576 = vunpack.c.l.s4 1934713408
        %v1577 = vunpack.c.0.s8 %v1576
        %v1578 = vlaneseq
        %v1579 = vshrl.u32 %v1578, 7
        %v1580 = vsub.s32 %v1577, %v1579
        %v1581 = vrot.slane %v1573, %v1580
        %v1583 = vunpack.c.l.s4 1934713408
        %v1584 = vunpack.c.0.s8 %v1583
        %v1585 = vlaneseq
        %v1586 = vshrl.u32 %v1585, 7
        %v1587 = vsub.s32 %v1584, %v1586
        %v1588 = vrot.slane %v1574, %v1587
        %v1589 = vcombine.high %v1565, 0.0
        %v1590 = vcombine.high %v1572, 0.0
        %v1591 = vcombine.high %v1581, 0.0
        %v1592 = vcombine.high %v1588, 0.0
        %v1593 = vcombine.low %v1504, %v1512
        %v1594 = vcombine.high %v1504, %v1512
        %v1596 = vunpack.c.l.s4 1983009808
        %v1597 = vunpack.c.0.s8 %v1596
        %v1598 = vlaneseq
        %v1599 = vshrl.u32 %v1598, 7
        %v1600 = vsub.s32 %v1597, %v1599
        %v1601 = vrot.slane %v1593, %v1600
        %v1603 = vunpack.c.l.s4 1983009808
        %v1604 = vunpack.c.0.s8 %v1603
        %v1605 = vlaneseq
        %v1606 = vshrl.u32 %v1605, 7
        %v1607 = vsub.s32 %v1604, %v1606
        %v1608 = vrot.slane %v1594, %v1607
        %v1609 = vcombine.low %v1508, %v1516
        %v1610 = vcombine.high %v1508, %v1516
        %v1612 = vunpack.c.l.s4 1983009808
        %v1613 = vunpack.c.0.s8 %v1612
        %v1614 = vlaneseq
        %v1615 = vshrl.u32 %v1614, 7
        %v1616 = vsub.s32 %v1613, %v1615
        %v1617 = vrot.slane %v1609, %v1616
        %v1619 = vunpack.c.l.s4 1983009808
        %v1620 = vunpack.c.0.s8 %v1619
        %v1621 = vlaneseq
        %v1622 = vshrl.u32 %v1621, 7
        %v1623 = vsub.s32 %v1620, %v1622
        %v1624 = vrot.slane %v1610, %v1623
        %v1625 = vcombine.low %v1601, %v1617
        %v1626 = vcombine.high %v1601, %v1617
        %v1628 = vunpack.c.l.s4 1934713408
        %v1629 = vunpack.c.0.s8 %v1628
        %v1630 = vlaneseq
        %v1631 = vshrl.u32 %v1630, 7
        %v1632 = vsub.s32 %v1629, %v1631
        %v1633 = vrot.slane %v1625, %v1632
        %v1635 = vunpack.c.l.s4 1934713408
        %v1636 = vunpack.c.0.s8 %v1635
        %v1637 = vlaneseq
        %v1638 = vshrl.u32 %v1637, 7
        %v1639 = vsub.s32 %v1636, %v1638
        %v1640 = vrot.slane %v1626, %v1639
        %v1641 = vcombine.low %v1608, %v1624
        %v1642 = vcombine.high %v1608, %v1624
        %v1644 = vunpack.c.l.s4 1934713408
        %v1645 = vunpack.c.0.s8 %v1644
        %v1646 = vlaneseq
        %v1647 = vshrl.u32 %v1646, 7
        %v1648 = vsub.s32 %v1645, %v1647
        %v1649 = vrot.slane %v1641, %v1648
        %v1651 = vunpack.c.l.s4 1934713408
        %v1652 = vunpack.c.0.s8 %v1651
        %v1653 = vlaneseq
        %v1654 = vshrl.u32 %v1653, 7
        %v1655 = vsub.s32 %v1652, %v1654
        %v1656 = vrot.slane %v1642, %v1655
        %v1657 = vcombine.high %v1633, 0.0
        %v1658 = vcombine.high %v1640, 0.0
        %v1659 = vcombine.high %v1649, 0.0
        %v1660 = vcombine.high %v1656, 0.0
        %1662 = vrot.lane.b32.xlu0 %v1589, 16
        %v1663 = vpop.permute.xlu0 %1662
        %1666 = vrot.lane.b32.xlu0 %v1572, 32
        %v1667 = vpop.permute.xlu0 %1666
        %1670 = vrot.lane.b32.xlu0 %v1590, 48
        %v1671 = vpop.permute.xlu0 %1670
        %1674 = vrot.lane.b32.xlu0 %v1581, 64
        %v1675 = vpop.permute.xlu0 %1674
        %1678 = vrot.lane.b32.xlu0 %v1591, 80
        %v1679 = vpop.permute.xlu0 %1678
        %1682 = vrot.lane.b32.xlu0 %v1588, 96
        %v1683 = vpop.permute.xlu0 %1682
        %1686 = vrot.lane.b32.xlu0 %v1592, 112
        %v1687 = vpop.permute.xlu0 %1686
        %1690 = vrot.lane.b32.xlu0 %v1657, 16
        %v1691 = vpop.permute.xlu0 %1690
        %1694 = vrot.lane.b32.xlu0 %v1640, 32
        %v1695 = vpop.permute.xlu0 %1694
        %1698 = vrot.lane.b32.xlu0 %v1658, 48
        %v1699 = vpop.permute.xlu0 %1698
        %1702 = vrot.lane.b32.xlu0 %v1649, 64
        %v1703 = vpop.permute.xlu0 %1702
        %1706 = vrot.lane.b32.xlu0 %v1659, 80
        %v1707 = vpop.permute.xlu0 %1706
        %1710 = vrot.lane.b32.xlu0 %v1656, 96
        %v1711 = vpop.permute.xlu0 %1710
        %1714 = vrot.lane.b32.xlu0 %v1660, 112
        %v1715 = vpop.permute.xlu0 %1714
        %vm1717 = vcmask 130048
        %v1718 = vsel %vm1717, %v1565, %v1663
        %vm1719 = vcmask 261120
        %v1720 = vsel %vm1719, %v1718, %v1667
        %vm1721 = vcmask 392192
        %v1722 = vsel %vm1721, %v1720, %v1671
        %vm1723 = vcmask 523264
        %v1724 = vsel %vm1723, %v1722, %v1675
        %vm1725 = vcmask 654336
        %v1726 = vsel %vm1725, %v1724, %v1679
        %vm1727 = vcmask 785408
        %v1728 = vsel %vm1727, %v1726, %v1683
        %vm1729 = vcmask 916480
        %v1730 = vsel %vm1729, %v1728, %v1687
        %v1731 = vsel %vm1717, %v1633, %v1691
        %v1732 = vsel %vm1719, %v1731, %v1695
        %v1733 = vsel %vm1721, %v1732, %v1699
        %v1734 = vsel %vm1723, %v1733, %v1703
        %v1735 = vsel %vm1725, %v1734, %v1707
        %v1736 = vsel %vm1727, %v1735, %v1711
        %v1737 = vsel %vm1729, %v1736, %v1715
        %vm1738 = vcmask 31744
        %v1740 = vsel %vm1738, %v592, 0
        %v1743 = vsel %vm1480, %v1730, 0
        %v1746 = vsel %vm1480, %v1737, 0
        %1748 = vmatprep.subr.mxu0 %v1746
        %1749 = vmatpush1.msra.mxu0 %v1743
        %1750 = vmatprep.subr.mxu0 0.0
        %1751 = vmatpush1.msra.mxu0 0.0
        %1752 = vmatprep.subr.mxu0 0.0
        %1753 = vmatpush1.msra.mxu0 0.0
        %1754 = vmatprep.subr.mxu0 0.0
        %1755 = vmatpush1.msra.mxu0 0.0
        %1756 = vmatprep.subr.mxu0 0.0
        %1757 = vmatpush1.msra.mxu0 0.0
        %1758 = vmatprep.subr.mxu0 0.0
        %1759 = vmatpush1.msra.mxu0 0.0
        %1760 = vmatprep.subr.mxu0 0.0
        %1761 = vmatpush1.msra.mxu0 0.0
        %1762 = vmatprep.subr.mxu0 0.0
        %1763 = vmatpush1.msra.mxu0 0.0
        %1764 = vmatprep.subr.mxu0 0.0
        %1765 = vmatpush1.msra.mxu0 0.0
        %1766 = vmatprep.subr.mxu0 0.0
        %1767 = vmatpush1.msra.mxu0 0.0
        %1768 = vmatprep.subr.mxu0 0.0
        %1769 = vmatpush1.msra.mxu0 0.0
        %1770 = vmatprep.subr.mxu0 0.0
        %1771 = vmatpush1.msra.mxu0 0.0
        %1772 = vmatprep.subr.mxu0 0.0
        %1773 = vmatpush1.msra.mxu0 0.0
        %1774 = vmatprep.subr.mxu0 0.0
        %1775 = vmatpush1.msra.mxu0 0.0
        %1776 = vmatprep.subr.mxu0 0.0
        %1777 = vmatpush1.msra.mxu0 0.0
        %1778 = vmatprep.subr.mxu0 0.0
        %1779 = vmatpush1.msra.mxu0 0.0
        %1780 = vmatprep.subr.mxu0 0.0
        %1781 = vmatpush1.msra.mxu0 0.0
        %1782 = vmatprep.subr.mxu0 0.0
        %1783 = vmatpush1.msra.mxu0 0.0
        %1784 = vmatprep.subr.mxu0 0.0
        %1785 = vmatpush1.msra.mxu0 0.0
        %1786 = vmatprep.subr.mxu0 0.0
        %1787 = vmatpush1.msra.mxu0 0.0
        %1788 = vmatprep.subr.mxu0 0.0
        %1789 = vmatpush1.msra.mxu0 0.0
        %1790 = vmatprep.subr.mxu0 0.0
        %1791 = vmatpush1.msra.mxu0 0.0
        %1792 = vmatprep.subr.mxu0 0.0
        %1793 = vmatpush1.msra.mxu0 0.0
        %1794 = vmatprep.subr.mxu0 0.0
        %1795 = vmatpush1.msra.mxu0 0.0
        %1796 = vmatprep.subr.mxu0 0.0
        %1797 = vmatpush1.msra.mxu0 0.0
        %1798 = vmatprep.subr.mxu0 0.0
        %1799 = vmatpush1.msra.mxu0 0.0
        %1800 = vmatprep.subr.mxu0 0.0
        %1801 = vmatpush1.msra.mxu0 0.0
        %1802 = vmatprep.subr.mxu0 0.0
        %1803 = vmatpush1.msra.mxu0 0.0
        %1804 = vmatprep.subr.mxu0 0.0
        %1805 = vmatpush1.msra.mxu0 0.0
        %1806 = vmatprep.subr.mxu0 0.0
        %1807 = vmatpush1.msra.mxu0 0.0
        %1808 = vmatprep.subr.mxu0 0.0
        %1809 = vmatpush1.msra.mxu0 0.0
        %1810 = vmatprep.subr.mxu0 0.0
        %1811 = vmatpush1.msra.mxu0 0.0
        %1812 = vmatprep.mubr.f32.mxu0 0.0
        %1813 = vmatmul.mubr.f32.gmra.mrb[0].mxu0 %v1740
        %v1814 = vpop.f32.mrb[0].mxu0
        %v1815 = vadd.f32 0.0, %v1814
        %v1816 = vpop.f32.mrb[0].mxu0
        %v1817 = vadd.f32 0.0, %v1816
        %1818 = vdwg.mxu0
        %v1819 = vadd.f32 %v597, %v1815
        %v1820 = vadd.f32 %v597, %v1817
        %v1821 = vlaneseq
        %v1822 = vshrl.u32 %v1821, 7
        %v1823 = vsub.s32 1, %v1822
        %v1824 = vrot.slane %v589, %v1823
        %1826 = vbcast.lane.b32.xlu0 %v1824, 256
        %v1827 = vpop.permute.xlu0 %1826
        %v1828 = vlaneseq
        %v1829 = vshrl.u32 %v1828, 7
        %v1830 = vsub.s32 0, %v1829
        %v1831 = vrot.slane %v1827, %v1830
        %v1832 = vlaneseq
        %v1833 = vshrl.u32 %v1832, 7
        %v1834 = vsub.s32 1, %v1833
        %v1835 = vrot.slane %v1827, %v1834
        %v1836 = vlaneseq
        %v1837 = vshrl.u32 %v1836, 7
        %v1838 = vsub.s32 2, %v1837
        %v1839 = vrot.slane %v1827, %v1838
        %v1840 = vlaneseq
        %v1841 = vshrl.u32 %v1840, 7
        %v1842 = vsub.s32 3, %v1841
        %v1843 = vrot.slane %v1827, %v1842
        %v1844 = vmul.f32 %v572, %v1831
        %v1845 = vmul.f32 %v573, %v1831
        %v1846 = vmul.f32 %v574, %v1831
        %v1847 = vmul.f32 %v576, %v1835
        %v1848 = vmul.f32 %v577, %v1835
        %v1849 = vmul.f32 %v578, %v1835
        %v1850 = vmul.f32 %v580, %v1839
        %v1851 = vmul.f32 %v581, %v1839
        %v1852 = vmul.f32 %v582, %v1839
        %v1853 = vmul.f32 %v584, %v1843
        %v1854 = vmul.f32 %v585, %v1843
        %v1855 = vmul.f32 %v586, %v1843
        %v1856 = vlaneseq
        %v1857 = vshrl.u32 %v1856, 7
        %v1858 = vsub.s32 4, %v1857
        %v1859 = vrot.slane %v589, %v1858
        %1861 = vbcast.lane.b32.xlu0 %v1859, 256
        %v1862 = vpop.permute.xlu0 %1861
        %v1863 = vlaneseq
        %v1864 = vshrl.u32 %v1863, 7
        %v1865 = vsub.s32 0, %v1864
        %v1866 = vrot.slane %v1862, %v1865
        %v1867 = vlaneseq
        %v1868 = vshrl.u32 %v1867, 7
        %v1869 = vsub.s32 1, %v1868
        %v1870 = vrot.slane %v1862, %v1869
        %v1871 = vlaneseq
        %v1872 = vshrl.u32 %v1871, 7
        %v1873 = vsub.s32 2, %v1872
        %v1874 = vrot.slane %v1862, %v1873
        %v1875 = vlaneseq
        %v1876 = vshrl.u32 %v1875, 7
        %v1877 = vsub.s32 3, %v1876
        %v1878 = vrot.slane %v1862, %v1877
        %v1879 = vmul.f32 %v572, %v1866
        %v1880 = vmul.f32 %v573, %v1866
        %v1881 = vmul.f32 %v574, %v1866
        %v1882 = vmul.f32 %v576, %v1870
        %v1883 = vmul.f32 %v577, %v1870
        %v1884 = vmul.f32 %v578, %v1870
        %v1885 = vmul.f32 %v580, %v1874
        %v1886 = vmul.f32 %v581, %v1874
        %v1887 = vmul.f32 %v582, %v1874
        %v1888 = vmul.f32 %v584, %v1878
        %v1889 = vmul.f32 %v585, %v1878
        %v1890 = vmul.f32 %v586, %v1878
        %v1903 = vrot.slane %v1879, 3
        %v1904 = vrot.slane %v1880, 3
        %v1905 = vsel %vm457, %v1903, %v1904
        %v1906 = vrot.slane %v1881, 3
        %v1907 = vsel %vm457, %v1904, %v1906
        %v1908 = vrot.slane %v1882, 3
        %v1909 = vrot.slane %v1883, 3
        %v1910 = vsel %vm457, %v1908, %v1909
        %v1911 = vrot.slane %v1884, 3
        %v1912 = vsel %vm457, %v1909, %v1911
        %v1913 = vrot.slane %v1885, 3
        %v1914 = vrot.slane %v1886, 3
        %v1915 = vsel %vm457, %v1913, %v1914
        %v1916 = vrot.slane %v1887, 3
        %v1917 = vsel %vm457, %v1914, %v1916
        %v1918 = vrot.slane %v1888, 3
        %v1919 = vrot.slane %v1889, 3
        %v1920 = vsel %vm457, %v1918, %v1919
        %v1921 = vrot.slane %v1890, 3
        %v1922 = vsel %vm457, %v1919, %v1921
        %v1935 = vadd.f32 %v1844, %v1905
        %v1936 = vadd.f32 %v1845, %v1907
        %v1937 = vadd.f32 %v1846, %v1906
        %v1938 = vadd.f32 %v1847, %v1910
        %v1939 = vadd.f32 %v1848, %v1912
        %v1940 = vadd.f32 %v1849, %v1911
        %v1941 = vadd.f32 %v1850, %v1915
        %v1942 = vadd.f32 %v1851, %v1917
        %v1943 = vadd.f32 %v1852, %v1916
        %v1944 = vadd.f32 %v1853, %v1920
        %v1945 = vadd.f32 %v1854, %v1922
        %v1946 = vadd.f32 %v1855, %v1921
        %v1947 = vlaneseq
        %v1948 = vshrl.u32 %v1947, 7
        %v1949 = vsub.s32 7, %v1948
        %v1950 = vrot.slane %v589, %v1949
        %1952 = vbcast.lane.b32.xlu0 %v1950, 256
        %v1953 = vpop.permute.xlu0 %1952
        %v1954 = vlaneseq
        %v1955 = vshrl.u32 %v1954, 7
        %v1956 = vsub.s32 0, %v1955
        %v1957 = vrot.slane %v1953, %v1956
        %v1958 = vlaneseq
        %v1959 = vshrl.u32 %v1958, 7
        %v1960 = vsub.s32 1, %v1959
        %v1961 = vrot.slane %v1953, %v1960
        %v1962 = vlaneseq
        %v1963 = vshrl.u32 %v1962, 7
        %v1964 = vsub.s32 2, %v1963
        %v1965 = vrot.slane %v1953, %v1964
        %v1966 = vlaneseq
        %v1967 = vshrl.u32 %v1966, 7
        %v1968 = vsub.s32 3, %v1967
        %v1969 = vrot.slane %v1953, %v1968
        %v1970 = vmul.f32 %v573, %v1957
        %v1971 = vmul.f32 %v574, %v1957
        %v1972 = vmul.f32 %v577, %v1961
        %v1973 = vmul.f32 %v578, %v1961
        %v1974 = vmul.f32 %v581, %v1965
        %v1975 = vmul.f32 %v582, %v1965
        %v1976 = vmul.f32 %v585, %v1969
        %v1977 = vmul.f32 %v586, %v1969
        %vm1986 = vcmask 1041408
        %v1987 = vrot.slane %v1970, 6
        %v1988 = vrot.slane %v1971, 6
        %v1989 = vsel %vm1986, %v1987, %v1988
        %v1990 = vrot.slane %v1972, 6
        %v1991 = vrot.slane %v1973, 6
        %v1992 = vsel %vm1986, %v1990, %v1991
        %v1993 = vrot.slane %v1974, 6
        %v1994 = vrot.slane %v1975, 6
        %v1995 = vsel %vm1986, %v1993, %v1994
        %v1996 = vrot.slane %v1976, 6
        %v1997 = vrot.slane %v1977, 6
        %v1998 = vsel %vm1986, %v1996, %v1997
        %v2011 = vadd.f32 %v1935, %v1987
        %v2012 = vadd.f32 %v1936, %v1989
        %v2013 = vadd.f32 %v1937, %v1988
        %v2014 = vadd.f32 %v1938, %v1990
        %v2015 = vadd.f32 %v1939, %v1992
        %v2016 = vadd.f32 %v1940, %v1991
        %v2017 = vadd.f32 %v1941, %v1993
        %v2018 = vadd.f32 %v1942, %v1995
        %v2019 = vadd.f32 %v1943, %v1994
        %v2020 = vadd.f32 %v1944, %v1996
        %v2021 = vadd.f32 %v1945, %v1998
        %v2022 = vadd.f32 %v1946, %v1997
        %v2023 = vlaneseq
        %v2024 = vshrl.u32 %v2023, 7
        %v2025 = vsub.s32 2, %v2024
        %v2026 = vrot.slane %v589, %v2025
        %2028 = vbcast.lane.b32.xlu0 %v2026, 256
        %v2029 = vpop.permute.xlu0 %2028
        %v2030 = vlaneseq
        %v2031 = vshrl.u32 %v2030, 7
        %v2032 = vsub.s32 0, %v2031
        %v2033 = vrot.slane %v2029, %v2032
        %v2034 = vlaneseq
        %v2035 = vshrl.u32 %v2034, 7
        %v2036 = vsub.s32 1, %v2035
        %v2037 = vrot.slane %v2029, %v2036
        %v2038 = vlaneseq
        %v2039 = vshrl.u32 %v2038, 7
        %v2040 = vsub.s32 2, %v2039
        %v2041 = vrot.slane %v2029, %v2040
        %v2042 = vlaneseq
        %v2043 = vshrl.u32 %v2042, 7
        %v2044 = vsub.s32 3, %v2043
        %v2045 = vrot.slane %v2029, %v2044
        %v2046 = vmul.f32 %v572, %v2033
        %v2047 = vmul.f32 %v573, %v2033
        %v2048 = vmul.f32 %v574, %v2033
        %v2049 = vmul.f32 %v576, %v2037
        %v2050 = vmul.f32 %v577, %v2037
        %v2051 = vmul.f32 %v578, %v2037
        %v2052 = vmul.f32 %v580, %v2041
        %v2053 = vmul.f32 %v581, %v2041
        %v2054 = vmul.f32 %v582, %v2041
        %v2055 = vmul.f32 %v584, %v2045
        %v2056 = vmul.f32 %v585, %v2045
        %v2057 = vmul.f32 %v586, %v2045
        %2070 = vrot.lane.b32.xlu0 %v2046, 125
        %v2071 = vpop.permute.xlu0 %2070
        %2072 = vrot.lane.b32.xlu0 %v2047, 125
        %v2073 = vpop.permute.xlu0 %2072
        %2074 = vrot.lane.b32.xlu0 %v2048, 125
        %v2075 = vpop.permute.xlu0 %2074
        %2076 = vrot.lane.b32.xlu0 %v2049, 125
        %v2077 = vpop.permute.xlu0 %2076
        %2078 = vrot.lane.b32.xlu0 %v2050, 125
        %v2079 = vpop.permute.xlu0 %2078
        %2080 = vrot.lane.b32.xlu0 %v2051, 125
        %v2081 = vpop.permute.xlu0 %2080
        %2082 = vrot.lane.b32.xlu0 %v2052, 125
        %v2083 = vpop.permute.xlu0 %2082
        %2084 = vrot.lane.b32.xlu0 %v2053, 125
        %v2085 = vpop.permute.xlu0 %2084
        %2086 = vrot.lane.b32.xlu0 %v2054, 125
        %v2087 = vpop.permute.xlu0 %2086
        %2088 = vrot.lane.b32.xlu0 %v2055, 125
        %v2089 = vpop.permute.xlu0 %2088
        %2090 = vrot.lane.b32.xlu0 %v2056, 125
        %v2091 = vpop.permute.xlu0 %2090
        %2092 = vrot.lane.b32.xlu0 %v2057, 125
        %v2093 = vpop.permute.xlu0 %2092
        %v2106 = vadd.f32 %v2011, %v2071
        %v2107 = vadd.f32 %v2012, %v2073
        %v2108 = vadd.f32 %v2013, %v2075
        %v2109 = vadd.f32 %v2014, %v2077
        %v2110 = vadd.f32 %v2015, %v2079
        %v2111 = vadd.f32 %v2016, %v2081
        %v2112 = vadd.f32 %v2017, %v2083
        %v2113 = vadd.f32 %v2018, %v2085
        %v2114 = vadd.f32 %v2019, %v2087
        %v2115 = vadd.f32 %v2020, %v2089
        %v2116 = vadd.f32 %v2021, %v2091
        %v2117 = vadd.f32 %v2022, %v2093
        %v2118 = vlaneseq
        %v2119 = vshrl.u32 %v2118, 7
        %v2120 = vsub.s32 5, %v2119
        %v2121 = vrot.slane %v589, %v2120
        %2123 = vbcast.lane.b32.xlu0 %v2121, 256
        %v2124 = vpop.permute.xlu0 %2123
        %v2125 = vlaneseq
        %v2126 = vshrl.u32 %v2125, 7
        %v2127 = vsub.s32 0, %v2126
        %v2128 = vrot.slane %v2124, %v2127
        %v2129 = vlaneseq
        %v2130 = vshrl.u32 %v2129, 7
        %v2131 = vsub.s32 1, %v2130
        %v2132 = vrot.slane %v2124, %v2131
        %v2133 = vlaneseq
        %v2134 = vshrl.u32 %v2133, 7
        %v2135 = vsub.s32 2, %v2134
        %v2136 = vrot.slane %v2124, %v2135
        %v2137 = vlaneseq
        %v2138 = vshrl.u32 %v2137, 7
        %v2139 = vsub.s32 3, %v2138
        %v2140 = vrot.slane %v2124, %v2139
        %v2141 = vmul.f32 %v572, %v2128
        %v2142 = vmul.f32 %v573, %v2128
        %v2143 = vmul.f32 %v574, %v2128
        %v2144 = vmul.f32 %v576, %v2132
        %v2145 = vmul.f32 %v577, %v2132
        %v2146 = vmul.f32 %v578, %v2132
        %v2147 = vmul.f32 %v580, %v2136
        %v2148 = vmul.f32 %v581, %v2136
        %v2149 = vmul.f32 %v582, %v2136
        %v2150 = vmul.f32 %v584, %v2140
        %v2151 = vmul.f32 %v585, %v2140
        %v2152 = vmul.f32 %v586, %v2140
        %v2165 = vrot.slane %v2141, 3
        %v2166 = vrot.slane %v2142, 3
        %v2167 = vsel %vm457, %v2165, %v2166
        %v2168 = vrot.slane %v2143, 3
        %v2169 = vsel %vm457, %v2166, %v2168
        %v2170 = vrot.slane %v2144, 3
        %v2171 = vrot.slane %v2145, 3
        %v2172 = vsel %vm457, %v2170, %v2171
        %v2173 = vrot.slane %v2146, 3
        %v2174 = vsel %vm457, %v2171, %v2173
        %v2175 = vrot.slane %v2147, 3
        %v2176 = vrot.slane %v2148, 3
        %v2177 = vsel %vm457, %v2175, %v2176
        %v2178 = vrot.slane %v2149, 3
        %v2179 = vsel %vm457, %v2176, %v2178
        %v2180 = vrot.slane %v2150, 3
        %v2181 = vrot.slane %v2151, 3
        %v2182 = vsel %vm457, %v2180, %v2181
        %v2183 = vrot.slane %v2152, 3
        %v2184 = vsel %vm457, %v2181, %v2183
        %2185 = vrot.lane.b32.xlu0 %v2167, 125
        %v2186 = vpop.permute.xlu0 %2185
        %2187 = vrot.lane.b32.xlu0 %v2169, 125
        %v2188 = vpop.permute.xlu0 %2187
        %2189 = vrot.lane.b32.xlu0 %v2168, 125
        %v2190 = vpop.permute.xlu0 %2189
        %2191 = vrot.lane.b32.xlu0 %v2172, 125
        %v2192 = vpop.permute.xlu0 %2191
        %2193 = vrot.lane.b32.xlu0 %v2174, 125
        %v2194 = vpop.permute.xlu0 %2193
        %2195 = vrot.lane.b32.xlu0 %v2173, 125
        %v2196 = vpop.permute.xlu0 %2195
        %2197 = vrot.lane.b32.xlu0 %v2177, 125
        %v2198 = vpop.permute.xlu0 %2197
        %2199 = vrot.lane.b32.xlu0 %v2179, 125
        %v2200 = vpop.permute.xlu0 %2199
        %2201 = vrot.lane.b32.xlu0 %v2178, 125
        %v2202 = vpop.permute.xlu0 %2201
        %2203 = vrot.lane.b32.xlu0 %v2182, 125
        %v2204 = vpop.permute.xlu0 %2203
        %2205 = vrot.lane.b32.xlu0 %v2184, 125
        %v2206 = vpop.permute.xlu0 %2205
        %2207 = vrot.lane.b32.xlu0 %v2183, 125
        %v2208 = vpop.permute.xlu0 %2207
        %v2221 = vadd.f32 %v2106, %v2186
        %v2222 = vadd.f32 %v2107, %v2188
        %v2223 = vadd.f32 %v2108, %v2190
        %v2224 = vadd.f32 %v2109, %v2192
        %v2225 = vadd.f32 %v2110, %v2194
        %v2226 = vadd.f32 %v2111, %v2196
        %v2227 = vadd.f32 %v2112, %v2198
        %v2228 = vadd.f32 %v2113, %v2200
        %v2229 = vadd.f32 %v2114, %v2202
        %v2230 = vadd.f32 %v2115, %v2204
        %v2231 = vadd.f32 %v2116, %v2206
        %v2232 = vadd.f32 %v2117, %v2208
        %v2233 = vlaneseq
        %v2234 = vshrl.u32 %v2233, 7
        %v2235 = vsub.s32 0, %v2234
        %v2236 = vrot.slane %v590, %v2235
        %2238 = vbcast.lane.b32.xlu0 %v2236, 256
        %v2239 = vpop.permute.xlu0 %2238
        %v2240 = vlaneseq
        %v2241 = vshrl.u32 %v2240, 7
        %v2242 = vsub.s32 0, %v2241
        %v2243 = vrot.slane %v2239, %v2242
        %v2244 = vlaneseq
        %v2245 = vshrl.u32 %v2244, 7
        %v2246 = vsub.s32 1, %v2245
        %v2247 = vrot.slane %v2239, %v2246
        %v2248 = vlaneseq
        %v2249 = vshrl.u32 %v2248, 7
        %v2250 = vsub.s32 2, %v2249
        %v2251 = vrot.slane %v2239, %v2250
        %v2252 = vlaneseq
        %v2253 = vshrl.u32 %v2252, 7
        %v2254 = vsub.s32 3, %v2253
        %v2255 = vrot.slane %v2239, %v2254
        %v2256 = vmul.f32 %v573, %v2243
        %v2257 = vmul.f32 %v574, %v2243
        %v2258 = vmul.f32 %v577, %v2247
        %v2259 = vmul.f32 %v578, %v2247
        %v2260 = vmul.f32 %v581, %v2251
        %v2261 = vmul.f32 %v582, %v2251
        %v2262 = vmul.f32 %v585, %v2255
        %v2263 = vmul.f32 %v586, %v2255
        %v2272 = vrot.slane %v2256, 6
        %v2273 = vrot.slane %v2257, 6
        %v2274 = vsel %vm1986, %v2272, %v2273
        %v2275 = vrot.slane %v2258, 6
        %v2276 = vrot.slane %v2259, 6
        %v2277 = vsel %vm1986, %v2275, %v2276
        %v2278 = vrot.slane %v2260, 6
        %v2279 = vrot.slane %v2261, 6
        %v2280 = vsel %vm1986, %v2278, %v2279
        %v2281 = vrot.slane %v2262, 6
        %v2282 = vrot.slane %v2263, 6
        %v2283 = vsel %vm1986, %v2281, %v2282
        %2284 = vrot.lane.b32.xlu0 %v2272, 125
        %v2285 = vpop.permute.xlu0 %2284
        %2286 = vrot.lane.b32.xlu0 %v2274, 125
        %v2287 = vpop.permute.xlu0 %2286
        %2288 = vrot.lane.b32.xlu0 %v2273, 125
        %v2289 = vpop.permute.xlu0 %2288
        %2290 = vrot.lane.b32.xlu0 %v2275, 125
        %v2291 = vpop.permute.xlu0 %2290
        %2292 = vrot.lane.b32.xlu0 %v2277, 125
        %v2293 = vpop.permute.xlu0 %2292
        %2294 = vrot.lane.b32.xlu0 %v2276, 125
        %v2295 = vpop.permute.xlu0 %2294
        %2296 = vrot.lane.b32.xlu0 %v2278, 125
        %v2297 = vpop.permute.xlu0 %2296
        %2298 = vrot.lane.b32.xlu0 %v2280, 125
        %v2299 = vpop.permute.xlu0 %2298
        %2300 = vrot.lane.b32.xlu0 %v2279, 125
        %v2301 = vpop.permute.xlu0 %2300
        %2302 = vrot.lane.b32.xlu0 %v2281, 125
        %v2303 = vpop.permute.xlu0 %2302
        %2304 = vrot.lane.b32.xlu0 %v2283, 125
        %v2305 = vpop.permute.xlu0 %2304
        %2306 = vrot.lane.b32.xlu0 %v2282, 125
        %v2307 = vpop.permute.xlu0 %2306
        %v2320 = vadd.f32 %v2221, %v2285
        %v2321 = vadd.f32 %v2222, %v2287
        %v2322 = vadd.f32 %v2223, %v2289
        %v2323 = vadd.f32 %v2224, %v2291
        %v2324 = vadd.f32 %v2225, %v2293
        %v2325 = vadd.f32 %v2226, %v2295
        %v2326 = vadd.f32 %v2227, %v2297
        %v2327 = vadd.f32 %v2228, %v2299
        %v2328 = vadd.f32 %v2229, %v2301
        %v2329 = vadd.f32 %v2230, %v2303
        %v2330 = vadd.f32 %v2231, %v2305
        %v2331 = vadd.f32 %v2232, %v2307
        %v2332 = vlaneseq
        %v2333 = vshrl.u32 %v2332, 7
        %v2334 = vsub.s32 3, %v2333
        %v2335 = vrot.slane %v589, %v2334
        %2337 = vbcast.lane.b32.xlu0 %v2335, 256
        %v2338 = vpop.permute.xlu0 %2337
        %v2339 = vlaneseq
        %v2340 = vshrl.u32 %v2339, 7
        %v2341 = vsub.s32 0, %v2340
        %v2342 = vrot.slane %v2338, %v2341
        %v2343 = vlaneseq
        %v2344 = vshrl.u32 %v2343, 7
        %v2345 = vsub.s32 1, %v2344
        %v2346 = vrot.slane %v2338, %v2345
        %v2347 = vlaneseq
        %v2348 = vshrl.u32 %v2347, 7
        %v2349 = vsub.s32 2, %v2348
        %v2350 = vrot.slane %v2338, %v2349
        %v2351 = vlaneseq
        %v2352 = vshrl.u32 %v2351, 7
        %v2353 = vsub.s32 3, %v2352
        %v2354 = vrot.slane %v2338, %v2353
        %v2355 = vmul.f32 %v572, %v2342
        %v2356 = vmul.f32 %v573, %v2342
        %v2357 = vmul.f32 %v574, %v2342
        %v2358 = vmul.f32 %v576, %v2346
        %v2359 = vmul.f32 %v577, %v2346
        %v2360 = vmul.f32 %v578, %v2346
        %v2361 = vmul.f32 %v580, %v2350
        %v2362 = vmul.f32 %v581, %v2350
        %v2363 = vmul.f32 %v582, %v2350
        %v2364 = vmul.f32 %v584, %v2354
        %v2365 = vmul.f32 %v585, %v2354
        %v2366 = vmul.f32 %v586, %v2354
        %2379 = vrot.lane.b32.xlu0 %v2355, 122
        %v2380 = vpop.permute.xlu0 %2379
        %2381 = vrot.lane.b32.xlu0 %v2356, 122
        %v2382 = vpop.permute.xlu0 %2381
        %2383 = vrot.lane.b32.xlu0 %v2357, 122
        %v2384 = vpop.permute.xlu0 %2383
        %2385 = vrot.lane.b32.xlu0 %v2358, 122
        %v2386 = vpop.permute.xlu0 %2385
        %2387 = vrot.lane.b32.xlu0 %v2359, 122
        %v2388 = vpop.permute.xlu0 %2387
        %2389 = vrot.lane.b32.xlu0 %v2360, 122
        %v2390 = vpop.permute.xlu0 %2389
        %2391 = vrot.lane.b32.xlu0 %v2361, 122
        %v2392 = vpop.permute.xlu0 %2391
        %2393 = vrot.lane.b32.xlu0 %v2362, 122
        %v2394 = vpop.permute.xlu0 %2393
        %2395 = vrot.lane.b32.xlu0 %v2363, 122
        %v2396 = vpop.permute.xlu0 %2395
        %2397 = vrot.lane.b32.xlu0 %v2364, 122
        %v2398 = vpop.permute.xlu0 %2397
        %2399 = vrot.lane.b32.xlu0 %v2365, 122
        %v2400 = vpop.permute.xlu0 %2399
        %2401 = vrot.lane.b32.xlu0 %v2366, 122
        %v2402 = vpop.permute.xlu0 %2401
        %v2415 = vadd.f32 %v2320, %v2380
        %v2416 = vadd.f32 %v2321, %v2382
        %v2417 = vadd.f32 %v2322, %v2384
        %v2418 = vadd.f32 %v2323, %v2386
        %v2419 = vadd.f32 %v2324, %v2388
        %v2420 = vadd.f32 %v2325, %v2390
        %v2421 = vadd.f32 %v2326, %v2392
        %v2422 = vadd.f32 %v2327, %v2394
        %v2423 = vadd.f32 %v2328, %v2396
        %v2424 = vadd.f32 %v2329, %v2398
        %v2425 = vadd.f32 %v2330, %v2400
        %v2426 = vadd.f32 %v2331, %v2402
        %v2427 = vlaneseq
        %v2428 = vshrl.u32 %v2427, 7
        %v2429 = vsub.s32 6, %v2428
        %v2430 = vrot.slane %v589, %v2429
        %2432 = vbcast.lane.b32.xlu0 %v2430, 256
        %v2433 = vpop.permute.xlu0 %2432
        %v2434 = vlaneseq
        %v2435 = vshrl.u32 %v2434, 7
        %v2436 = vsub.s32 0, %v2435
        %v2437 = vrot.slane %v2433, %v2436
        %v2438 = vlaneseq
        %v2439 = vshrl.u32 %v2438, 7
        %v2440 = vsub.s32 1, %v2439
        %v2441 = vrot.slane %v2433, %v2440
        %v2442 = vlaneseq
        %v2443 = vshrl.u32 %v2442, 7
        %v2444 = vsub.s32 2, %v2443
        %v2445 = vrot.slane %v2433, %v2444
        %v2446 = vlaneseq
        %v2447 = vshrl.u32 %v2446, 7
        %v2448 = vsub.s32 3, %v2447
        %v2449 = vrot.slane %v2433, %v2448
        %v2450 = vmul.f32 %v572, %v2437
        %v2451 = vmul.f32 %v573, %v2437
        %v2452 = vmul.f32 %v574, %v2437
        %v2453 = vmul.f32 %v576, %v2441
        %v2454 = vmul.f32 %v577, %v2441
        %v2455 = vmul.f32 %v578, %v2441
        %v2456 = vmul.f32 %v580, %v2445
        %v2457 = vmul.f32 %v581, %v2445
        %v2458 = vmul.f32 %v582, %v2445
        %v2459 = vmul.f32 %v584, %v2449
        %v2460 = vmul.f32 %v585, %v2449
        %v2461 = vmul.f32 %v586, %v2449
        %v2474 = vrot.slane %v2450, 3
        %v2475 = vrot.slane %v2451, 3
        %v2476 = vsel %vm457, %v2474, %v2475
        %v2477 = vrot.slane %v2452, 3
        %v2478 = vsel %vm457, %v2475, %v2477
        %v2479 = vrot.slane %v2453, 3
        %v2480 = vrot.slane %v2454, 3
        %v2481 = vsel %vm457, %v2479, %v2480
        %v2482 = vrot.slane %v2455, 3
        %v2483 = vsel %vm457, %v2480, %v2482
        %v2484 = vrot.slane %v2456, 3
        %v2485 = vrot.slane %v2457, 3
        %v2486 = vsel %vm457, %v2484, %v2485
        %v2487 = vrot.slane %v2458, 3
        %v2488 = vsel %vm457, %v2485, %v2487
        %v2489 = vrot.slane %v2459, 3
        %v2490 = vrot.slane %v2460, 3
        %v2491 = vsel %vm457, %v2489, %v2490
        %v2492 = vrot.slane %v2461, 3
        %v2493 = vsel %vm457, %v2490, %v2492
        %2494 = vrot.lane.b32.xlu0 %v2476, 122
        %v2495 = vpop.permute.xlu0 %2494
        %2496 = vrot.lane.b32.xlu0 %v2478, 122
        %v2497 = vpop.permute.xlu0 %2496
        %2498 = vrot.lane.b32.xlu0 %v2477, 122
        %v2499 = vpop.permute.xlu0 %2498
        %2500 = vrot.lane.b32.xlu0 %v2481, 122
        %v2501 = vpop.permute.xlu0 %2500
        %2502 = vrot.lane.b32.xlu0 %v2483, 122
        %v2503 = vpop.permute.xlu0 %2502
        %2504 = vrot.lane.b32.xlu0 %v2482, 122
        %v2505 = vpop.permute.xlu0 %2504
        %2506 = vrot.lane.b32.xlu0 %v2486, 122
        %v2507 = vpop.permute.xlu0 %2506
        %2508 = vrot.lane.b32.xlu0 %v2488, 122
        %v2509 = vpop.permute.xlu0 %2508
        %2510 = vrot.lane.b32.xlu0 %v2487, 122
        %v2511 = vpop.permute.xlu0 %2510
        %2512 = vrot.lane.b32.xlu0 %v2491, 122
        %v2513 = vpop.permute.xlu0 %2512
        %2514 = vrot.lane.b32.xlu0 %v2493, 122
        %v2515 = vpop.permute.xlu0 %2514
        %2516 = vrot.lane.b32.xlu0 %v2492, 122
        %v2517 = vpop.permute.xlu0 %2516
        %v2530 = vadd.f32 %v2415, %v2495
        %v2531 = vadd.f32 %v2416, %v2497
        %v2532 = vadd.f32 %v2417, %v2499
        %v2533 = vadd.f32 %v2418, %v2501
        %v2534 = vadd.f32 %v2419, %v2503
        %v2535 = vadd.f32 %v2420, %v2505
        %v2536 = vadd.f32 %v2421, %v2507
        %v2537 = vadd.f32 %v2422, %v2509
        %v2538 = vadd.f32 %v2423, %v2511
        %v2539 = vadd.f32 %v2424, %v2513
        %v2540 = vadd.f32 %v2425, %v2515
        %v2541 = vadd.f32 %v2426, %v2517
        %v2542 = vlaneseq
        %v2543 = vshrl.u32 %v2542, 7
        %v2544 = vsub.s32 1, %v2543
        %v2545 = vrot.slane %v590, %v2544
        %2547 = vbcast.lane.b32.xlu0 %v2545, 256
        %v2548 = vpop.permute.xlu0 %2547
        %v2549 = vlaneseq
        %v2550 = vshrl.u32 %v2549, 7
        %v2551 = vsub.s32 0, %v2550
        %v2552 = vrot.slane %v2548, %v2551
        %v2553 = vlaneseq
        %v2554 = vshrl.u32 %v2553, 7
        %v2555 = vsub.s32 1, %v2554
        %v2556 = vrot.slane %v2548, %v2555
        %v2557 = vlaneseq
        %v2558 = vshrl.u32 %v2557, 7
        %v2559 = vsub.s32 2, %v2558
        %v2560 = vrot.slane %v2548, %v2559
        %v2561 = vlaneseq
        %v2562 = vshrl.u32 %v2561, 7
        %v2563 = vsub.s32 3, %v2562
        %v2564 = vrot.slane %v2548, %v2563
        %v2565 = vmul.f32 %v573, %v2552
        %v2566 = vmul.f32 %v574, %v2552
        %v2567 = vmul.f32 %v577, %v2556
        %v2568 = vmul.f32 %v578, %v2556
        %v2569 = vmul.f32 %v581, %v2560
        %v2570 = vmul.f32 %v582, %v2560
        %v2571 = vmul.f32 %v585, %v2564
        %v2572 = vmul.f32 %v586, %v2564
        %v2581 = vrot.slane %v2565, 6
        %v2582 = vrot.slane %v2566, 6
        %v2583 = vsel %vm1986, %v2581, %v2582
        %v2584 = vrot.slane %v2567, 6
        %v2585 = vrot.slane %v2568, 6
        %v2586 = vsel %vm1986, %v2584, %v2585
        %v2587 = vrot.slane %v2569, 6
        %v2588 = vrot.slane %v2570, 6
        %v2589 = vsel %vm1986, %v2587, %v2588
        %v2590 = vrot.slane %v2571, 6
        %v2591 = vrot.slane %v2572, 6
        %v2592 = vsel %vm1986, %v2590, %v2591
        %2593 = vrot.lane.b32.xlu0 %v2581, 122
        %v2594 = vpop.permute.xlu0 %2593
        %2595 = vrot.lane.b32.xlu0 %v2583, 122
        %v2596 = vpop.permute.xlu0 %2595
        %2597 = vrot.lane.b32.xlu0 %v2582, 122
        %v2598 = vpop.permute.xlu0 %2597
        %2599 = vrot.lane.b32.xlu0 %v2584, 122
        %v2600 = vpop.permute.xlu0 %2599
        %2601 = vrot.lane.b32.xlu0 %v2586, 122
        %v2602 = vpop.permute.xlu0 %2601
        %2603 = vrot.lane.b32.xlu0 %v2585, 122
        %v2604 = vpop.permute.xlu0 %2603
        %2605 = vrot.lane.b32.xlu0 %v2587, 122
        %v2606 = vpop.permute.xlu0 %2605
        %2607 = vrot.lane.b32.xlu0 %v2589, 122
        %v2608 = vpop.permute.xlu0 %2607
        %2609 = vrot.lane.b32.xlu0 %v2588, 122
        %v2610 = vpop.permute.xlu0 %2609
        %2611 = vrot.lane.b32.xlu0 %v2590, 122
        %v2612 = vpop.permute.xlu0 %2611
        %2613 = vrot.lane.b32.xlu0 %v2592, 122
        %v2614 = vpop.permute.xlu0 %2613
        %2615 = vrot.lane.b32.xlu0 %v2591, 122
        %v2616 = vpop.permute.xlu0 %2615
        %v2629 = vadd.f32 %v2530, %v2594
        %v2630 = vadd.f32 %v2531, %v2596
        %v2631 = vadd.f32 %v2532, %v2598
        %v2632 = vadd.f32 %v2533, %v2600
        %v2633 = vadd.f32 %v2534, %v2602
        %v2634 = vadd.f32 %v2535, %v2604
        %v2635 = vadd.f32 %v2536, %v2606
        %v2636 = vadd.f32 %v2537, %v2608
        %v2637 = vadd.f32 %v2538, %v2610
        %v2638 = vadd.f32 %v2539, %v2612
        %v2639 = vadd.f32 %v2540, %v2614
        %v2640 = vadd.f32 %v2541, %v2616
        %v2653 = vrot.slane %v2629, 2
        %v2654 = vrot.slane %v2630, 2
        %v2655 = vsel %vm773, %v2653, %v2654
        %v2656 = vrot.slane %v2631, 2
        %v2657 = vsel %vm773, %v2654, %v2656
        %v2658 = vrot.slane %v2632, 2
        %v2659 = vrot.slane %v2633, 2
        %v2660 = vsel %vm773, %v2658, %v2659
        %v2661 = vrot.slane %v2634, 2
        %v2662 = vsel %vm773, %v2659, %v2661
        %v2663 = vrot.slane %v2635, 2
        %v2664 = vrot.slane %v2636, 2
        %v2665 = vsel %vm773, %v2663, %v2664
        %v2666 = vrot.slane %v2637, 2
        %v2667 = vsel %vm773, %v2664, %v2666
        %v2668 = vrot.slane %v2638, 2
        %v2669 = vrot.slane %v2639, 2
        %v2670 = vsel %vm773, %v2668, %v2669
        %v2671 = vrot.slane %v2640, 2
        %v2672 = vsel %vm773, %v2669, %v2671
        %2673 = vrot.lane.b32.xlu0 %v2655, 126
        %v2674 = vpop.permute.xlu0 %2673
        %2675 = vrot.lane.b32.xlu0 %v2657, 126
        %v2676 = vpop.permute.xlu0 %2675
        %2677 = vrot.lane.b32.xlu0 %v2660, 126
        %v2678 = vpop.permute.xlu0 %2677
        %2679 = vrot.lane.b32.xlu0 %v2662, 126
        %v2680 = vpop.permute.xlu0 %2679
        %2681 = vrot.lane.b32.xlu0 %v2665, 126
        %v2682 = vpop.permute.xlu0 %2681
        %2683 = vrot.lane.b32.xlu0 %v2667, 126
        %v2684 = vpop.permute.xlu0 %2683
        %2685 = vrot.lane.b32.xlu0 %v2670, 126
        %v2686 = vpop.permute.xlu0 %2685
        %2687 = vrot.lane.b32.xlu0 %v2672, 126
        %v2688 = vpop.permute.xlu0 %2687
        %v2697 = vcombine.low %v2674, %v2682
        %v2698 = vcombine.high %v2674, %v2682
        %v2700 = vunpack.c.l.s4 1983009808
        %v2701 = vunpack.c.0.s8 %v2700
        %v2702 = vlaneseq
        %v2703 = vshrl.u32 %v2702, 7
        %v2704 = vsub.s32 %v2701, %v2703
        %v2705 = vrot.slane %v2697, %v2704
        %v2707 = vunpack.c.l.s4 1983009808
        %v2708 = vunpack.c.0.s8 %v2707
        %v2709 = vlaneseq
        %v2710 = vshrl.u32 %v2709, 7
        %v2711 = vsub.s32 %v2708, %v2710
        %v2712 = vrot.slane %v2698, %v2711
        %v2713 = vcombine.low %v2678, %v2686
        %v2714 = vcombine.high %v2678, %v2686
        %v2716 = vunpack.c.l.s4 1983009808
        %v2717 = vunpack.c.0.s8 %v2716
        %v2718 = vlaneseq
        %v2719 = vshrl.u32 %v2718, 7
        %v2720 = vsub.s32 %v2717, %v2719
        %v2721 = vrot.slane %v2713, %v2720
        %v2723 = vunpack.c.l.s4 1983009808
        %v2724 = vunpack.c.0.s8 %v2723
        %v2725 = vlaneseq
        %v2726 = vshrl.u32 %v2725, 7
        %v2727 = vsub.s32 %v2724, %v2726
        %v2728 = vrot.slane %v2714, %v2727
        %v2729 = vcombine.low %v2705, %v2721
        %v2730 = vcombine.high %v2705, %v2721
        %v2732 = vunpack.c.l.s4 1934713408
        %v2733 = vunpack.c.0.s8 %v2732
        %v2734 = vlaneseq
        %v2735 = vshrl.u32 %v2734, 7
        %v2736 = vsub.s32 %v2733, %v2735
        %v2737 = vrot.slane %v2729, %v2736
        %v2739 = vunpack.c.l.s4 1934713408
        %v2740 = vunpack.c.0.s8 %v2739
        %v2741 = vlaneseq
        %v2742 = vshrl.u32 %v2741, 7
        %v2743 = vsub.s32 %v2740, %v2742
        %v2744 = vrot.slane %v2730, %v2743
        %v2745 = vcombine.low %v2712, %v2728
        %v2746 = vcombine.high %v2712, %v2728
        %v2748 = vunpack.c.l.s4 1934713408
        %v2749 = vunpack.c.0.s8 %v2748
        %v2750 = vlaneseq
        %v2751 = vshrl.u32 %v2750, 7
        %v2752 = vsub.s32 %v2749, %v2751
        %v2753 = vrot.slane %v2745, %v2752
        %v2755 = vunpack.c.l.s4 1934713408
        %v2756 = vunpack.c.0.s8 %v2755
        %v2757 = vlaneseq
        %v2758 = vshrl.u32 %v2757, 7
        %v2759 = vsub.s32 %v2756, %v2758
        %v2760 = vrot.slane %v2746, %v2759
        %v2761 = vcombine.high %v2737, 0.0
        %v2762 = vcombine.high %v2744, 0.0
        %v2763 = vcombine.high %v2753, 0.0
        %v2764 = vcombine.high %v2760, 0.0
        %v2765 = vcombine.low %v2676, %v2684
        %v2766 = vcombine.high %v2676, %v2684
        %v2768 = vunpack.c.l.s4 1983009808
        %v2769 = vunpack.c.0.s8 %v2768
        %v2770 = vlaneseq
        %v2771 = vshrl.u32 %v2770, 7
        %v2772 = vsub.s32 %v2769, %v2771
        %v2773 = vrot.slane %v2765, %v2772
        %v2775 = vunpack.c.l.s4 1983009808
        %v2776 = vunpack.c.0.s8 %v2775
        %v2777 = vlaneseq
        %v2778 = vshrl.u32 %v2777, 7
        %v2779 = vsub.s32 %v2776, %v2778
        %v2780 = vrot.slane %v2766, %v2779
        %v2781 = vcombine.low %v2680, %v2688
        %v2782 = vcombine.high %v2680, %v2688
        %v2784 = vunpack.c.l.s4 1983009808
        %v2785 = vunpack.c.0.s8 %v2784
        %v2786 = vlaneseq
        %v2787 = vshrl.u32 %v2786, 7
        %v2788 = vsub.s32 %v2785, %v2787
        %v2789 = vrot.slane %v2781, %v2788
        %v2791 = vunpack.c.l.s4 1983009808
        %v2792 = vunpack.c.0.s8 %v2791
        %v2793 = vlaneseq
        %v2794 = vshrl.u32 %v2793, 7
        %v2795 = vsub.s32 %v2792, %v2794
        %v2796 = vrot.slane %v2782, %v2795
        %v2797 = vcombine.low %v2773, %v2789
        %v2798 = vcombine.high %v2773, %v2789
        %v2800 = vunpack.c.l.s4 1934713408
        %v2801 = vunpack.c.0.s8 %v2800
        %v2802 = vlaneseq
        %v2803 = vshrl.u32 %v2802, 7
        %v2804 = vsub.s32 %v2801, %v2803
        %v2805 = vrot.slane %v2797, %v2804
        %v2807 = vunpack.c.l.s4 1934713408
        %v2808 = vunpack.c.0.s8 %v2807
        %v2809 = vlaneseq
        %v2810 = vshrl.u32 %v2809, 7
        %v2811 = vsub.s32 %v2808, %v2810
        %v2812 = vrot.slane %v2798, %v2811
        %v2813 = vcombine.low %v2780, %v2796
        %v2814 = vcombine.high %v2780, %v2796
        %v2816 = vunpack.c.l.s4 1934713408
        %v2817 = vunpack.c.0.s8 %v2816
        %v2818 = vlaneseq
        %v2819 = vshrl.u32 %v2818, 7
        %v2820 = vsub.s32 %v2817, %v2819
        %v2821 = vrot.slane %v2813, %v2820
        %v2823 = vunpack.c.l.s4 1934713408
        %v2824 = vunpack.c.0.s8 %v2823
        %v2825 = vlaneseq
        %v2826 = vshrl.u32 %v2825, 7
        %v2827 = vsub.s32 %v2824, %v2826
        %v2828 = vrot.slane %v2814, %v2827
        %v2829 = vcombine.high %v2805, 0.0
        %v2830 = vcombine.high %v2812, 0.0
        %v2831 = vcombine.high %v2821, 0.0
        %v2832 = vcombine.high %v2828, 0.0
        %2834 = vrot.lane.b32.xlu0 %v2761, 16
        %v2835 = vpop.permute.xlu0 %2834
        %2838 = vrot.lane.b32.xlu0 %v2744, 32
        %v2839 = vpop.permute.xlu0 %2838
        %2842 = vrot.lane.b32.xlu0 %v2762, 48
        %v2843 = vpop.permute.xlu0 %2842
        %2846 = vrot.lane.b32.xlu0 %v2753, 64
        %v2847 = vpop.permute.xlu0 %2846
        %2850 = vrot.lane.b32.xlu0 %v2763, 80
        %v2851 = vpop.permute.xlu0 %2850
        %2854 = vrot.lane.b32.xlu0 %v2760, 96
        %v2855 = vpop.permute.xlu0 %2854
        %2858 = vrot.lane.b32.xlu0 %v2764, 112
        %v2859 = vpop.permute.xlu0 %2858
        %2862 = vrot.lane.b32.xlu0 %v2829, 16
        %v2863 = vpop.permute.xlu0 %2862
        %2866 = vrot.lane.b32.xlu0 %v2812, 32
        %v2867 = vpop.permute.xlu0 %2866
        %2870 = vrot.lane.b32.xlu0 %v2830, 48
        %v2871 = vpop.permute.xlu0 %2870
        %2874 = vrot.lane.b32.xlu0 %v2821, 64
        %v2875 = vpop.permute.xlu0 %2874
        %2878 = vrot.lane.b32.xlu0 %v2831, 80
        %v2879 = vpop.permute.xlu0 %2878
        %2882 = vrot.lane.b32.xlu0 %v2828, 96
        %v2883 = vpop.permute.xlu0 %2882
        %2886 = vrot.lane.b32.xlu0 %v2832, 112
        %v2887 = vpop.permute.xlu0 %2886
        %v2889 = vsel %vm1717, %v2737, %v2835
        %v2890 = vsel %vm1719, %v2889, %v2839
        %v2891 = vsel %vm1721, %v2890, %v2843
        %v2892 = vsel %vm1723, %v2891, %v2847
        %v2893 = vsel %vm1725, %v2892, %v2851
        %v2894 = vsel %vm1727, %v2893, %v2855
        %v2895 = vsel %vm1729, %v2894, %v2859
        %v2896 = vsel %vm1717, %v2805, %v2863
        %v2897 = vsel %vm1719, %v2896, %v2867
        %v2898 = vsel %vm1721, %v2897, %v2871
        %v2899 = vsel %vm1723, %v2898, %v2875
        %v2900 = vsel %vm1725, %v2899, %v2879
        %v2901 = vsel %vm1727, %v2900, %v2883
        %v2902 = vsel %vm1729, %v2901, %v2887
        %2903 = vrot.lane.b32.xlu0 %v592, 124
        %v2904 = vpop.permute.xlu0 %2903
        %v2905 = vsel %vm1738, %v2904, 0
        %v2908 = vsel %vm1480, %v2895, 0
        %v2911 = vsel %vm1480, %v2902, 0
        %2913 = vmatprep.subr.mxu0 %v2911
        %2914 = vmatpush1.msra.mxu0 %v2908
        %2915 = vmatprep.subr.mxu0 0.0
        %2916 = vmatpush1.msra.mxu0 0.0
        %2917 = vmatprep.subr.mxu0 0.0
        %2918 = vmatpush1.msra.mxu0 0.0
        %2919 = vmatprep.subr.mxu0 0.0
        %2920 = vmatpush1.msra.mxu0 0.0
        %2921 = vmatprep.subr.mxu0 0.0
        %2922 = vmatpush1.msra.mxu0 0.0
        %2923 = vmatprep.subr.mxu0 0.0
        %2924 = vmatpush1.msra.mxu0 0.0
        %2925 = vmatprep.subr.mxu0 0.0
        %2926 = vmatpush1.msra.mxu0 0.0
        %2927 = vmatprep.subr.mxu0 0.0
        %2928 = vmatpush1.msra.mxu0 0.0
        %2929 = vmatprep.subr.mxu0 0.0
        %2930 = vmatpush1.msra.mxu0 0.0
        %2931 = vmatprep.subr.mxu0 0.0
        %2932 = vmatpush1.msra.mxu0 0.0
        %2933 = vmatprep.subr.mxu0 0.0
        %2934 = vmatpush1.msra.mxu0 0.0
        %2935 = vmatprep.subr.mxu0 0.0
        %2936 = vmatpush1.msra.mxu0 0.0
        %2937 = vmatprep.subr.mxu0 0.0
        %2938 = vmatpush1.msra.mxu0 0.0
        %2939 = vmatprep.subr.mxu0 0.0
        %2940 = vmatpush1.msra.mxu0 0.0
        %2941 = vmatprep.subr.mxu0 0.0
        %2942 = vmatpush1.msra.mxu0 0.0
        %2943 = vmatprep.subr.mxu0 0.0
        %2944 = vmatpush1.msra.mxu0 0.0
        %2945 = vmatprep.subr.mxu0 0.0
        %2946 = vmatpush1.msra.mxu0 0.0
        %2947 = vmatprep.subr.mxu0 0.0
        %2948 = vmatpush1.msra.mxu0 0.0
        %2949 = vmatprep.subr.mxu0 0.0
        %2950 = vmatpush1.msra.mxu0 0.0
        %2951 = vmatprep.subr.mxu0 0.0
        %2952 = vmatpush1.msra.mxu0 0.0
        %2953 = vmatprep.subr.mxu0 0.0
        %2954 = vmatpush1.msra.mxu0 0.0
        %2955 = vmatprep.subr.mxu0 0.0
        %2956 = vmatpush1.msra.mxu0 0.0
        %2957 = vmatprep.subr.mxu0 0.0
        %2958 = vmatpush1.msra.mxu0 0.0
        %2959 = vmatprep.subr.mxu0 0.0
        %2960 = vmatpush1.msra.mxu0 0.0
        %2961 = vmatprep.subr.mxu0 0.0
        %2962 = vmatpush1.msra.mxu0 0.0
        %2963 = vmatprep.subr.mxu0 0.0
        %2964 = vmatpush1.msra.mxu0 0.0
        %2965 = vmatprep.subr.mxu0 0.0
        %2966 = vmatpush1.msra.mxu0 0.0
        %2967 = vmatprep.subr.mxu0 0.0
        %2968 = vmatpush1.msra.mxu0 0.0
        %2969 = vmatprep.subr.mxu0 0.0
        %2970 = vmatpush1.msra.mxu0 0.0
        %2971 = vmatprep.subr.mxu0 0.0
        %2972 = vmatpush1.msra.mxu0 0.0
        %2973 = vmatprep.subr.mxu0 0.0
        %2974 = vmatpush1.msra.mxu0 0.0
        %2975 = vmatprep.subr.mxu0 0.0
        %2976 = vmatpush1.msra.mxu0 0.0
        %2977 = vmatprep.mubr.f32.mxu0 0.0
        %2978 = vmatmul.mubr.f32.gmra.mrb[0].mxu0 %v2905
        %v2979 = vpop.f32.mrb[0].mxu0
        %v2980 = vadd.f32 0.0, %v2979
        %v2981 = vpop.f32.mrb[0].mxu0
        %v2982 = vadd.f32 0.0, %v2981
        %2983 = vdwg.mxu0
        %v2984 = vadd.f32 %v1819, %v2980
        %v2985 = vadd.f32 %v1820, %v2982
        %v2986 = vlaneseq
        %v2987 = vshrl.u32 %v2986, 7
        %v2988 = vsub.s32 2, %v2987
        %v2989 = vrot.slane %v590, %v2988
        %2991 = vbcast.lane.b32.xlu0 %v2989, 256
        %v2992 = vpop.permute.xlu0 %2991
        %v2993 = vlaneseq
        %v2994 = vshrl.u32 %v2993, 7
        %v2995 = vsub.s32 0, %v2994
        %v2996 = vrot.slane %v2992, %v2995
        %v2997 = vlaneseq
        %v2998 = vshrl.u32 %v2997, 7
        %v2999 = vsub.s32 1, %v2998
        %v3000 = vrot.slane %v2992, %v2999
        %v3001 = vlaneseq
        %v3002 = vshrl.u32 %v3001, 7
        %v3003 = vsub.s32 2, %v3002
        %v3004 = vrot.slane %v2992, %v3003
        %v3005 = vlaneseq
        %v3006 = vshrl.u32 %v3005, 7
        %v3007 = vsub.s32 3, %v3006
        %v3008 = vrot.slane %v2992, %v3007
        %v3009 = vmul.f32 %v572, %v2996
        %v3010 = vmul.f32 %v573, %v2996
        %v3011 = vmul.f32 %v576, %v3000
        %v3012 = vmul.f32 %v577, %v3000
        %v3013 = vmul.f32 %v580, %v3004
        %v3014 = vmul.f32 %v581, %v3004
        %v3015 = vmul.f32 %v584, %v3008
        %v3016 = vmul.f32 %v585, %v3008
        %v3017 = vlaneseq
        %v3018 = vshrl.u32 %v3017, 7
        %v3019 = vsub.s32 5, %v3018
        %v3020 = vrot.slane %v590, %v3019
        %3022 = vbcast.lane.b32.xlu0 %v3020, 256
        %v3023 = vpop.permute.xlu0 %3022
        %v3024 = vlaneseq
        %v3025 = vshrl.u32 %v3024, 7
        %v3026 = vsub.s32 0, %v3025
        %v3027 = vrot.slane %v3023, %v3026
        %v3028 = vlaneseq
        %v3029 = vshrl.u32 %v3028, 7
        %v3030 = vsub.s32 1, %v3029
        %v3031 = vrot.slane %v3023, %v3030
        %v3032 = vlaneseq
        %v3033 = vshrl.u32 %v3032, 7
        %v3034 = vsub.s32 2, %v3033
        %v3035 = vrot.slane %v3023, %v3034
        %v3036 = vlaneseq
        %v3037 = vshrl.u32 %v3036, 7
        %v3038 = vsub.s32 3, %v3037
        %v3039 = vrot.slane %v3023, %v3038
        %v3040 = vmul.f32 %v572, %v3027
        %v3041 = vmul.f32 %v573, %v3027
        %v3042 = vmul.f32 %v574, %v3027
        %v3043 = vmul.f32 %v576, %v3031
        %v3044 = vmul.f32 %v577, %v3031
        %v3045 = vmul.f32 %v578, %v3031
        %v3046 = vmul.f32 %v580, %v3035
        %v3047 = vmul.f32 %v581, %v3035
        %v3048 = vmul.f32 %v582, %v3035
        %v3049 = vmul.f32 %v584, %v3039
        %v3050 = vmul.f32 %v585, %v3039
        %v3051 = vmul.f32 %v586, %v3039
        %vm3064 = vcmask 1042432
        %v3065 = vrot.slane %v3040, 5
        %v3066 = vrot.slane %v3041, 5
        %v3067 = vsel %vm3064, %v3065, %v3066
        %v3068 = vrot.slane %v3042, 5
        %v3069 = vsel %vm3064, %v3066, %v3068
        %v3070 = vrot.slane %v3043, 5
        %v3071 = vrot.slane %v3044, 5
        %v3072 = vsel %vm3064, %v3070, %v3071
        %v3073 = vrot.slane %v3045, 5
        %v3074 = vsel %vm3064, %v3071, %v3073
        %v3075 = vrot.slane %v3046, 5
        %v3076 = vrot.slane %v3047, 5
        %v3077 = vsel %vm3064, %v3075, %v3076
        %v3078 = vrot.slane %v3048, 5
        %v3079 = vsel %vm3064, %v3076, %v3078
        %v3080 = vrot.slane %v3049, 5
        %v3081 = vrot.slane %v3050, 5
        %v3082 = vsel %vm3064, %v3080, %v3081
        %v3083 = vrot.slane %v3051, 5
        %v3084 = vsel %vm3064, %v3081, %v3083
        %v3093 = vadd.f32 %v3009, %v3067
        %v3094 = vadd.f32 %v3010, %v3069
        %v3095 = vadd.f32 %v3011, %v3072
        %v3096 = vadd.f32 %v3012, %v3074
        %v3097 = vadd.f32 %v3013, %v3077
        %v3098 = vadd.f32 %v3014, %v3079
        %v3099 = vadd.f32 %v3015, %v3082
        %v3100 = vadd.f32 %v3016, %v3084
        %v3101 = vlaneseq
        %v3102 = vshrl.u32 %v3101, 7
        %v3103 = vsub.s32 0, %v3102
        %v3104 = vrot.slane %v591, %v3103
        %3106 = vbcast.lane.b32.xlu0 %v3104, 256
        %v3107 = vpop.permute.xlu0 %3106
        %v3108 = vlaneseq
        %v3109 = vshrl.u32 %v3108, 7
        %v3110 = vsub.s32 0, %v3109
        %v3111 = vrot.slane %v3107, %v3110
        %v3112 = vlaneseq
        %v3113 = vshrl.u32 %v3112, 7
        %v3114 = vsub.s32 1, %v3113
        %v3115 = vrot.slane %v3107, %v3114
        %v3116 = vlaneseq
        %v3117 = vshrl.u32 %v3116, 7
        %v3118 = vsub.s32 2, %v3117
        %v3119 = vrot.slane %v3107, %v3118
        %v3120 = vlaneseq
        %v3121 = vshrl.u32 %v3120, 7
        %v3122 = vsub.s32 3, %v3121
        %v3123 = vrot.slane %v3107, %v3122
        %v3124 = vmul.f32 %v573, %v3111
        %v3125 = vmul.f32 %v574, %v3111
        %v3126 = vmul.f32 %v575, %v3111
        %v3127 = vmul.f32 %v577, %v3115
        %v3128 = vmul.f32 %v578, %v3115
        %v3129 = vmul.f32 %v579, %v3115
        %v3130 = vmul.f32 %v581, %v3119
        %v3131 = vmul.f32 %v582, %v3119
        %v3132 = vmul.f32 %v583, %v3119
        %v3133 = vmul.f32 %v585, %v3123
        %v3134 = vmul.f32 %v586, %v3123
        %v3135 = vmul.f32 %v587, %v3123
        %v3148 = vrot.slane %v3124, 2
        %v3149 = vrot.slane %v3125, 2
        %v3150 = vsel %vm773, %v3148, %v3149
        %v3151 = vrot.slane %v3126, 2
        %v3152 = vsel %vm773, %v3149, %v3151
        %v3153 = vrot.slane %v3127, 2
        %v3154 = vrot.slane %v3128, 2
        %v3155 = vsel %vm773, %v3153, %v3154
        %v3156 = vrot.slane %v3129, 2
        %v3157 = vsel %vm773, %v3154, %v3156
        %v3158 = vrot.slane %v3130, 2
        %v3159 = vrot.slane %v3131, 2
        %v3160 = vsel %vm773, %v3158, %v3159
        %v3161 = vrot.slane %v3132, 2
        %v3162 = vsel %vm773, %v3159, %v3161
        %v3163 = vrot.slane %v3133, 2
        %v3164 = vrot.slane %v3134, 2
        %v3165 = vsel %vm773, %v3163, %v3164
        %v3166 = vrot.slane %v3135, 2
        %v3167 = vsel %vm773, %v3164, %v3166
        %v3176 = vadd.f32 %v3093, %v3150
        %v3177 = vadd.f32 %v3094, %v3152
        %v3178 = vadd.f32 %v3095, %v3155
        %v3179 = vadd.f32 %v3096, %v3157
        %v3180 = vadd.f32 %v3097, %v3160
        %v3181 = vadd.f32 %v3098, %v3162
        %v3182 = vadd.f32 %v3099, %v3165
        %v3183 = vadd.f32 %v3100, %v3167
        %v3184 = vlaneseq
        %v3185 = vshrl.u32 %v3184, 7
        %v3186 = vsub.s32 3, %v3185
        %v3187 = vrot.slane %v590, %v3186
        %3189 = vbcast.lane.b32.xlu0 %v3187, 256
        %v3190 = vpop.permute.xlu0 %3189
        %v3191 = vlaneseq
        %v3192 = vshrl.u32 %v3191, 7
        %v3193 = vsub.s32 0, %v3192
        %v3194 = vrot.slane %v3190, %v3193
        %v3195 = vlaneseq
        %v3196 = vshrl.u32 %v3195, 7
        %v3197 = vsub.s32 1, %v3196
        %v3198 = vrot.slane %v3190, %v3197
        %v3199 = vlaneseq
        %v3200 = vshrl.u32 %v3199, 7
        %v3201 = vsub.s32 2, %v3200
        %v3202 = vrot.slane %v3190, %v3201
        %v3203 = vlaneseq
        %v3204 = vshrl.u32 %v3203, 7
        %v3205 = vsub.s32 3, %v3204
        %v3206 = vrot.slane %v3190, %v3205
        %v3207 = vmul.f32 %v572, %v3194
        %v3208 = vmul.f32 %v573, %v3194
        %v3209 = vmul.f32 %v576, %v3198
        %v3210 = vmul.f32 %v577, %v3198
        %v3211 = vmul.f32 %v580, %v3202
        %v3212 = vmul.f32 %v581, %v3202
        %v3213 = vmul.f32 %v584, %v3206
        %v3214 = vmul.f32 %v585, %v3206
        %3223 = vrot.lane.b32.xlu0 %v3207, 123
        %v3224 = vpop.permute.xlu0 %3223
        %3225 = vrot.lane.b32.xlu0 %v3208, 123
        %v3226 = vpop.permute.xlu0 %3225
        %3227 = vrot.lane.b32.xlu0 %v3209, 123
        %v3228 = vpop.permute.xlu0 %3227
        %3229 = vrot.lane.b32.xlu0 %v3210, 123
        %v3230 = vpop.permute.xlu0 %3229
        %3231 = vrot.lane.b32.xlu0 %v3211, 123
        %v3232 = vpop.permute.xlu0 %3231
        %3233 = vrot.lane.b32.xlu0 %v3212, 123
        %v3234 = vpop.permute.xlu0 %3233
        %3235 = vrot.lane.b32.xlu0 %v3213, 123
        %v3236 = vpop.permute.xlu0 %3235
        %3237 = vrot.lane.b32.xlu0 %v3214, 123
        %v3238 = vpop.permute.xlu0 %3237
        %v3247 = vadd.f32 %v3176, %v3224
        %v3248 = vadd.f32 %v3177, %v3226
        %v3249 = vadd.f32 %v3178, %v3228
        %v3250 = vadd.f32 %v3179, %v3230
        %v3251 = vadd.f32 %v3180, %v3232
        %v3252 = vadd.f32 %v3181, %v3234
        %v3253 = vadd.f32 %v3182, %v3236
        %v3254 = vadd.f32 %v3183, %v3238
        %v3255 = vlaneseq
        %v3256 = vshrl.u32 %v3255, 7
        %v3257 = vsub.s32 6, %v3256
        %v3258 = vrot.slane %v590, %v3257
        %3260 = vbcast.lane.b32.xlu0 %v3258, 256
        %v3261 = vpop.permute.xlu0 %3260
        %v3262 = vlaneseq
        %v3263 = vshrl.u32 %v3262, 7
        %v3264 = vsub.s32 0, %v3263
        %v3265 = vrot.slane %v3261, %v3264
        %v3266 = vlaneseq
        %v3267 = vshrl.u32 %v3266, 7
        %v3268 = vsub.s32 1, %v3267
        %v3269 = vrot.slane %v3261, %v3268
        %v3270 = vlaneseq
        %v3271 = vshrl.u32 %v3270, 7
        %v3272 = vsub.s32 2, %v3271
        %v3273 = vrot.slane %v3261, %v3272
        %v3274 = vlaneseq
        %v3275 = vshrl.u32 %v3274, 7
        %v3276 = vsub.s32 3, %v3275
        %v3277 = vrot.slane %v3261, %v3276
        %v3278 = vmul.f32 %v572, %v3265
        %v3279 = vmul.f32 %v573, %v3265
        %v3280 = vmul.f32 %v574, %v3265
        %v3281 = vmul.f32 %v576, %v3269
        %v3282 = vmul.f32 %v577, %v3269
        %v3283 = vmul.f32 %v578, %v3269
        %v3284 = vmul.f32 %v580, %v3273
        %v3285 = vmul.f32 %v581, %v3273
        %v3286 = vmul.f32 %v582, %v3273
        %v3287 = vmul.f32 %v584, %v3277
        %v3288 = vmul.f32 %v585, %v3277
        %v3289 = vmul.f32 %v586, %v3277
        %v3302 = vrot.slane %v3278, 5
        %v3303 = vrot.slane %v3279, 5
        %v3304 = vsel %vm3064, %v3302, %v3303
        %v3305 = vrot.slane %v3280, 5
        %v3306 = vsel %vm3064, %v3303, %v3305
        %v3307 = vrot.slane %v3281, 5
        %v3308 = vrot.slane %v3282, 5
        %v3309 = vsel %vm3064, %v3307, %v3308
        %v3310 = vrot.slane %v3283, 5
        %v3311 = vsel %vm3064, %v3308, %v3310
        %v3312 = vrot.slane %v3284, 5
        %v3313 = vrot.slane %v3285, 5
        %v3314 = vsel %vm3064, %v3312, %v3313
        %v3315 = vrot.slane %v3286, 5
        %v3316 = vsel %vm3064, %v3313, %v3315
        %v3317 = vrot.slane %v3287, 5
        %v3318 = vrot.slane %v3288, 5
        %v3319 = vsel %vm3064, %v3317, %v3318
        %v3320 = vrot.slane %v3289, 5
        %v3321 = vsel %vm3064, %v3318, %v3320
        %3322 = vrot.lane.b32.xlu0 %v3304, 123
        %v3323 = vpop.permute.xlu0 %3322
        %3324 = vrot.lane.b32.xlu0 %v3306, 123
        %v3325 = vpop.permute.xlu0 %3324
        %3326 = vrot.lane.b32.xlu0 %v3309, 123
        %v3327 = vpop.permute.xlu0 %3326
        %3328 = vrot.lane.b32.xlu0 %v3311, 123
        %v3329 = vpop.permute.xlu0 %3328
        %3330 = vrot.lane.b32.xlu0 %v3314, 123
        %v3331 = vpop.permute.xlu0 %3330
        %3332 = vrot.lane.b32.xlu0 %v3316, 123
        %v3333 = vpop.permute.xlu0 %3332
        %3334 = vrot.lane.b32.xlu0 %v3319, 123
        %v3335 = vpop.permute.xlu0 %3334
        %3336 = vrot.lane.b32.xlu0 %v3321, 123
        %v3337 = vpop.permute.xlu0 %3336
        %v3346 = vadd.f32 %v3247, %v3323
        %v3347 = vadd.f32 %v3248, %v3325
        %v3348 = vadd.f32 %v3249, %v3327
        %v3349 = vadd.f32 %v3250, %v3329
        %v3350 = vadd.f32 %v3251, %v3331
        %v3351 = vadd.f32 %v3252, %v3333
        %v3352 = vadd.f32 %v3253, %v3335
        %v3353 = vadd.f32 %v3254, %v3337
        %v3354 = vlaneseq
        %v3355 = vshrl.u32 %v3354, 7
        %v3356 = vsub.s32 1, %v3355
        %v3357 = vrot.slane %v591, %v3356
        %3359 = vbcast.lane.b32.xlu0 %v3357, 256
        %v3360 = vpop.permute.xlu0 %3359
        %v3361 = vlaneseq
        %v3362 = vshrl.u32 %v3361, 7
        %v3363 = vsub.s32 0, %v3362
        %v3364 = vrot.slane %v3360, %v3363
        %v3365 = vlaneseq
        %v3366 = vshrl.u32 %v3365, 7
        %v3367 = vsub.s32 1, %v3366
        %v3368 = vrot.slane %v3360, %v3367
        %v3369 = vlaneseq
        %v3370 = vshrl.u32 %v3369, 7
        %v3371 = vsub.s32 2, %v3370
        %v3372 = vrot.slane %v3360, %v3371
        %v3373 = vlaneseq
        %v3374 = vshrl.u32 %v3373, 7
        %v3375 = vsub.s32 3, %v3374
        %v3376 = vrot.slane %v3360, %v3375
        %v3377 = vmul.f32 %v573, %v3364
        %v3378 = vmul.f32 %v574, %v3364
        %v3379 = vmul.f32 %v575, %v3364
        %v3380 = vmul.f32 %v577, %v3368
        %v3381 = vmul.f32 %v578, %v3368
        %v3382 = vmul.f32 %v579, %v3368
        %v3383 = vmul.f32 %v581, %v3372
        %v3384 = vmul.f32 %v582, %v3372
        %v3385 = vmul.f32 %v583, %v3372
        %v3386 = vmul.f32 %v585, %v3376
        %v3387 = vmul.f32 %v586, %v3376
        %v3388 = vmul.f32 %v587, %v3376
        %v3401 = vrot.slane %v3377, 2
        %v3402 = vrot.slane %v3378, 2
        %v3403 = vsel %vm773, %v3401, %v3402
        %v3404 = vrot.slane %v3379, 2
        %v3405 = vsel %vm773, %v3402, %v3404
        %v3406 = vrot.slane %v3380, 2
        %v3407 = vrot.slane %v3381, 2
        %v3408 = vsel %vm773, %v3406, %v3407
        %v3409 = vrot.slane %v3382, 2
        %v3410 = vsel %vm773, %v3407, %v3409
        %v3411 = vrot.slane %v3383, 2
        %v3412 = vrot.slane %v3384, 2
        %v3413 = vsel %vm773, %v3411, %v3412
        %v3414 = vrot.slane %v3385, 2
        %v3415 = vsel %vm773, %v3412, %v3414
        %v3416 = vrot.slane %v3386, 2
        %v3417 = vrot.slane %v3387, 2
        %v3418 = vsel %vm773, %v3416, %v3417
        %v3419 = vrot.slane %v3388, 2
        %v3420 = vsel %vm773, %v3417, %v3419
        %3421 = vrot.lane.b32.xlu0 %v3403, 123
        %v3422 = vpop.permute.xlu0 %3421
        %3423 = vrot.lane.b32.xlu0 %v3405, 123
        %v3424 = vpop.permute.xlu0 %3423
        %3425 = vrot.lane.b32.xlu0 %v3408, 123
        %v3426 = vpop.permute.xlu0 %3425
        %3427 = vrot.lane.b32.xlu0 %v3410, 123
        %v3428 = vpop.permute.xlu0 %3427
        %3429 = vrot.lane.b32.xlu0 %v3413, 123
        %v3430 = vpop.permute.xlu0 %3429
        %3431 = vrot.lane.b32.xlu0 %v3415, 123
        %v3432 = vpop.permute.xlu0 %3431
        %3433 = vrot.lane.b32.xlu0 %v3418, 123
        %v3434 = vpop.permute.xlu0 %3433
        %3435 = vrot.lane.b32.xlu0 %v3420, 123
        %v3436 = vpop.permute.xlu0 %3435
        %v3445 = vadd.f32 %v3346, %v3422
        %v3446 = vadd.f32 %v3347, %v3424
        %v3447 = vadd.f32 %v3348, %v3426
        %v3448 = vadd.f32 %v3349, %v3428
        %v3449 = vadd.f32 %v3350, %v3430
        %v3450 = vadd.f32 %v3351, %v3432
        %v3451 = vadd.f32 %v3352, %v3434
        %v3452 = vadd.f32 %v3353, %v3436
        %v3453 = vlaneseq
        %v3454 = vshrl.u32 %v3453, 7
        %v3455 = vsub.s32 4, %v3454
        %v3456 = vrot.slane %v590, %v3455
        %3458 = vbcast.lane.b32.xlu0 %v3456, 256
        %v3459 = vpop.permute.xlu0 %3458
        %v3460 = vlaneseq
        %v3461 = vshrl.u32 %v3460, 7
        %v3462 = vsub.s32 0, %v3461
        %v3463 = vrot.slane %v3459, %v3462
        %v3464 = vlaneseq
        %v3465 = vshrl.u32 %v3464, 7
        %v3466 = vsub.s32 1, %v3465
        %v3467 = vrot.slane %v3459, %v3466
        %v3468 = vlaneseq
        %v3469 = vshrl.u32 %v3468, 7
        %v3470 = vsub.s32 2, %v3469
        %v3471 = vrot.slane %v3459, %v3470
        %v3472 = vlaneseq
        %v3473 = vshrl.u32 %v3472, 7
        %v3474 = vsub.s32 3, %v3473
        %v3475 = vrot.slane %v3459, %v3474
        %v3476 = vmul.f32 %v572, %v3463
        %v3477 = vmul.f32 %v573, %v3463
        %v3478 = vmul.f32 %v576, %v3467
        %v3479 = vmul.f32 %v577, %v3467
        %v3480 = vmul.f32 %v580, %v3471
        %v3481 = vmul.f32 %v581, %v3471
        %v3482 = vmul.f32 %v584, %v3475
        %v3483 = vmul.f32 %v585, %v3475
        %3492 = vrot.lane.b32.xlu0 %v3476, 118
        %v3493 = vpop.permute.xlu0 %3492
        %3494 = vrot.lane.b32.xlu0 %v3477, 118
        %v3495 = vpop.permute.xlu0 %3494
        %3496 = vrot.lane.b32.xlu0 %v3478, 118
        %v3497 = vpop.permute.xlu0 %3496
        %3498 = vrot.lane.b32.xlu0 %v3479, 118
        %v3499 = vpop.permute.xlu0 %3498
        %3500 = vrot.lane.b32.xlu0 %v3480, 118
        %v3501 = vpop.permute.xlu0 %3500
        %3502 = vrot.lane.b32.xlu0 %v3481, 118
        %v3503 = vpop.permute.xlu0 %3502
        %3504 = vrot.lane.b32.xlu0 %v3482, 118
        %v3505 = vpop.permute.xlu0 %3504
        %3506 = vrot.lane.b32.xlu0 %v3483, 118
        %v3507 = vpop.permute.xlu0 %3506
        %v3516 = vadd.f32 %v3445, %v3493
        %v3517 = vadd.f32 %v3446, %v3495
        %v3518 = vadd.f32 %v3447, %v3497
        %v3519 = vadd.f32 %v3448, %v3499
        %v3520 = vadd.f32 %v3449, %v3501
        %v3521 = vadd.f32 %v3450, %v3503
        %v3522 = vadd.f32 %v3451, %v3505
        %v3523 = vadd.f32 %v3452, %v3507
        %v3524 = vlaneseq
        %v3525 = vshrl.u32 %v3524, 7
        %v3526 = vsub.s32 7, %v3525
        %v3527 = vrot.slane %v590, %v3526
        %3529 = vbcast.lane.b32.xlu0 %v3527, 256
        %v3530 = vpop.permute.xlu0 %3529
        %v3531 = vlaneseq
        %v3532 = vshrl.u32 %v3531, 7
        %v3533 = vsub.s32 0, %v3532
        %v3534 = vrot.slane %v3530, %v3533
        %v3535 = vlaneseq
        %v3536 = vshrl.u32 %v3535, 7
        %v3537 = vsub.s32 1, %v3536
        %v3538 = vrot.slane %v3530, %v3537
        %v3539 = vlaneseq
        %v3540 = vshrl.u32 %v3539, 7
        %v3541 = vsub.s32 2, %v3540
        %v3542 = vrot.slane %v3530, %v3541
        %v3543 = vlaneseq
        %v3544 = vshrl.u32 %v3543, 7
        %v3545 = vsub.s32 3, %v3544
        %v3546 = vrot.slane %v3530, %v3545
        %v3547 = vmul.f32 %v572, %v3534
        %v3548 = vmul.f32 %v573, %v3534
        %v3549 = vmul.f32 %v574, %v3534
        %v3550 = vmul.f32 %v576, %v3538
        %v3551 = vmul.f32 %v577, %v3538
        %v3552 = vmul.f32 %v578, %v3538
        %v3553 = vmul.f32 %v580, %v3542
        %v3554 = vmul.f32 %v581, %v3542
        %v3555 = vmul.f32 %v582, %v3542
        %v3556 = vmul.f32 %v584, %v3546
        %v3557 = vmul.f32 %v585, %v3546
        %v3558 = vmul.f32 %v586, %v3546
        %v3571 = vrot.slane %v3547, 5
        %v3572 = vrot.slane %v3548, 5
        %v3573 = vsel %vm3064, %v3571, %v3572
        %v3574 = vrot.slane %v3549, 5
        %v3575 = vsel %vm3064, %v3572, %v3574
        %v3576 = vrot.slane %v3550, 5
        %v3577 = vrot.slane %v3551, 5
        %v3578 = vsel %vm3064, %v3576, %v3577
        %v3579 = vrot.slane %v3552, 5
        %v3580 = vsel %vm3064, %v3577, %v3579
        %v3581 = vrot.slane %v3553, 5
        %v3582 = vrot.slane %v3554, 5
        %v3583 = vsel %vm3064, %v3581, %v3582
        %v3584 = vrot.slane %v3555, 5
        %v3585 = vsel %vm3064, %v3582, %v3584
        %v3586 = vrot.slane %v3556, 5
        %v3587 = vrot.slane %v3557, 5
        %v3588 = vsel %vm3064, %v3586, %v3587
        %v3589 = vrot.slane %v3558, 5
        %v3590 = vsel %vm3064, %v3587, %v3589
        %3591 = vrot.lane.b32.xlu0 %v3573, 118
        %v3592 = vpop.permute.xlu0 %3591
        %3593 = vrot.lane.b32.xlu0 %v3575, 118
        %v3594 = vpop.permute.xlu0 %3593
        %3595 = vrot.lane.b32.xlu0 %v3578, 118
        %v3596 = vpop.permute.xlu0 %3595
        %3597 = vrot.lane.b32.xlu0 %v3580, 118
        %v3598 = vpop.permute.xlu0 %3597
        %3599 = vrot.lane.b32.xlu0 %v3583, 118
        %v3600 = vpop.permute.xlu0 %3599
        %3601 = vrot.lane.b32.xlu0 %v3585, 118
        %v3602 = vpop.permute.xlu0 %3601
        %3603 = vrot.lane.b32.xlu0 %v3588, 118
        %v3604 = vpop.permute.xlu0 %3603
        %3605 = vrot.lane.b32.xlu0 %v3590, 118
        %v3606 = vpop.permute.xlu0 %3605
        %v3615 = vadd.f32 %v3516, %v3592
        %v3616 = vadd.f32 %v3517, %v3594
        %v3617 = vadd.f32 %v3518, %v3596
        %v3618 = vadd.f32 %v3519, %v3598
        %v3619 = vadd.f32 %v3520, %v3600
        %v3620 = vadd.f32 %v3521, %v3602
        %v3621 = vadd.f32 %v3522, %v3604
        %v3622 = vadd.f32 %v3523, %v3606
        %v3623 = vlaneseq
        %v3624 = vshrl.u32 %v3623, 7
        %v3625 = vsub.s32 2, %v3624
        %v3626 = vrot.slane %v591, %v3625
        %3628 = vbcast.lane.b32.xlu0 %v3626, 256
        %v3629 = vpop.permute.xlu0 %3628
        %v3630 = vlaneseq
        %v3631 = vshrl.u32 %v3630, 7
        %v3632 = vsub.s32 0, %v3631
        %v3633 = vrot.slane %v3629, %v3632
        %v3634 = vlaneseq
        %v3635 = vshrl.u32 %v3634, 7
        %v3636 = vsub.s32 1, %v3635
        %v3637 = vrot.slane %v3629, %v3636
        %v3638 = vlaneseq
        %v3639 = vshrl.u32 %v3638, 7
        %v3640 = vsub.s32 2, %v3639
        %v3641 = vrot.slane %v3629, %v3640
        %v3642 = vlaneseq
        %v3643 = vshrl.u32 %v3642, 7
        %v3644 = vsub.s32 3, %v3643
        %v3645 = vrot.slane %v3629, %v3644
        %v3646 = vmul.f32 %v573, %v3633
        %v3647 = vmul.f32 %v574, %v3633
        %v3648 = vmul.f32 %v575, %v3633
        %v3649 = vmul.f32 %v577, %v3637
        %v3650 = vmul.f32 %v578, %v3637
        %v3651 = vmul.f32 %v579, %v3637
        %v3652 = vmul.f32 %v581, %v3641
        %v3653 = vmul.f32 %v582, %v3641
        %v3654 = vmul.f32 %v583, %v3641
        %v3655 = vmul.f32 %v585, %v3645
        %v3656 = vmul.f32 %v586, %v3645
        %v3657 = vmul.f32 %v587, %v3645
        %v3670 = vrot.slane %v3646, 2
        %v3671 = vrot.slane %v3647, 2
        %v3672 = vsel %vm773, %v3670, %v3671
        %v3673 = vrot.slane %v3648, 2
        %v3674 = vsel %vm773, %v3671, %v3673
        %v3675 = vrot.slane %v3649, 2
        %v3676 = vrot.slane %v3650, 2
        %v3677 = vsel %vm773, %v3675, %v3676
        %v3678 = vrot.slane %v3651, 2
        %v3679 = vsel %vm773, %v3676, %v3678
        %v3680 = vrot.slane %v3652, 2
        %v3681 = vrot.slane %v3653, 2
        %v3682 = vsel %vm773, %v3680, %v3681
        %v3683 = vrot.slane %v3654, 2
        %v3684 = vsel %vm773, %v3681, %v3683
        %v3685 = vrot.slane %v3655, 2
        %v3686 = vrot.slane %v3656, 2
        %v3687 = vsel %vm773, %v3685, %v3686
        %v3688 = vrot.slane %v3657, 2
        %v3689 = vsel %vm773, %v3686, %v3688
        %3690 = vrot.lane.b32.xlu0 %v3672, 118
        %v3691 = vpop.permute.xlu0 %3690
        %3692 = vrot.lane.b32.xlu0 %v3674, 118
        %v3693 = vpop.permute.xlu0 %3692
        %3694 = vrot.lane.b32.xlu0 %v3677, 118
        %v3695 = vpop.permute.xlu0 %3694
        %3696 = vrot.lane.b32.xlu0 %v3679, 118
        %v3697 = vpop.permute.xlu0 %3696
        %3698 = vrot.lane.b32.xlu0 %v3682, 118
        %v3699 = vpop.permute.xlu0 %3698
        %3700 = vrot.lane.b32.xlu0 %v3684, 118
        %v3701 = vpop.permute.xlu0 %3700
        %3702 = vrot.lane.b32.xlu0 %v3687, 118
        %v3703 = vpop.permute.xlu0 %3702
        %3704 = vrot.lane.b32.xlu0 %v3689, 118
        %v3705 = vpop.permute.xlu0 %3704
        %v3714 = vadd.f32 %v3615, %v3691
        %v3715 = vadd.f32 %v3616, %v3693
        %v3716 = vadd.f32 %v3617, %v3695
        %v3717 = vadd.f32 %v3618, %v3697
        %v3718 = vadd.f32 %v3619, %v3699
        %v3719 = vadd.f32 %v3620, %v3701
        %v3720 = vadd.f32 %v3621, %v3703
        %v3721 = vadd.f32 %v3622, %v3705
        %v3722 = vcombine.low %v3714, %v3718
        %v3723 = vcombine.high %v3714, %v3718
        %v3725 = vunpack.c.l.s4 1983009808
        %v3726 = vunpack.c.0.s8 %v3725
        %v3727 = vlaneseq
        %v3728 = vshrl.u32 %v3727, 7
        %v3729 = vsub.s32 %v3726, %v3728
        %v3730 = vrot.slane %v3722, %v3729
        %v3732 = vunpack.c.l.s4 1983009808
        %v3733 = vunpack.c.0.s8 %v3732
        %v3734 = vlaneseq
        %v3735 = vshrl.u32 %v3734, 7
        %v3736 = vsub.s32 %v3733, %v3735
        %v3737 = vrot.slane %v3723, %v3736
        %v3738 = vcombine.low %v3716, %v3720
        %v3739 = vcombine.high %v3716, %v3720
        %v3741 = vunpack.c.l.s4 1983009808
        %v3742 = vunpack.c.0.s8 %v3741
        %v3743 = vlaneseq
        %v3744 = vshrl.u32 %v3743, 7
        %v3745 = vsub.s32 %v3742, %v3744
        %v3746 = vrot.slane %v3738, %v3745
        %v3748 = vunpack.c.l.s4 1983009808
        %v3749 = vunpack.c.0.s8 %v3748
        %v3750 = vlaneseq
        %v3751 = vshrl.u32 %v3750, 7
        %v3752 = vsub.s32 %v3749, %v3751
        %v3753 = vrot.slane %v3739, %v3752
        %v3754 = vcombine.low %v3730, %v3746
        %v3755 = vcombine.high %v3730, %v3746
        %v3757 = vunpack.c.l.s4 1934713408
        %v3758 = vunpack.c.0.s8 %v3757
        %v3759 = vlaneseq
        %v3760 = vshrl.u32 %v3759, 7
        %v3761 = vsub.s32 %v3758, %v3760
        %v3762 = vrot.slane %v3754, %v3761
        %v3764 = vunpack.c.l.s4 1934713408
        %v3765 = vunpack.c.0.s8 %v3764
        %v3766 = vlaneseq
        %v3767 = vshrl.u32 %v3766, 7
        %v3768 = vsub.s32 %v3765, %v3767
        %v3769 = vrot.slane %v3755, %v3768
        %v3770 = vcombine.low %v3737, %v3753
        %v3771 = vcombine.high %v3737, %v3753
        %v3773 = vunpack.c.l.s4 1934713408
        %v3774 = vunpack.c.0.s8 %v3773
        %v3775 = vlaneseq
        %v3776 = vshrl.u32 %v3775, 7
        %v3777 = vsub.s32 %v3774, %v3776
        %v3778 = vrot.slane %v3770, %v3777
        %v3780 = vunpack.c.l.s4 1934713408
        %v3781 = vunpack.c.0.s8 %v3780
        %v3782 = vlaneseq
        %v3783 = vshrl.u32 %v3782, 7
        %v3784 = vsub.s32 %v3781, %v3783
        %v3785 = vrot.slane %v3771, %v3784
        %v3786 = vcombine.high %v3762, 0.0
        %v3787 = vcombine.high %v3769, 0.0
        %v3788 = vcombine.high %v3778, 0.0
        %v3789 = vcombine.high %v3785, 0.0
        %v3790 = vcombine.low %v3715, %v3719
        %v3791 = vcombine.high %v3715, %v3719
        %v3793 = vunpack.c.l.s4 1983009808
        %v3794 = vunpack.c.0.s8 %v3793
        %v3795 = vlaneseq
        %v3796 = vshrl.u32 %v3795, 7
        %v3797 = vsub.s32 %v3794, %v3796
        %v3798 = vrot.slane %v3790, %v3797
        %v3800 = vunpack.c.l.s4 1983009808
        %v3801 = vunpack.c.0.s8 %v3800
        %v3802 = vlaneseq
        %v3803 = vshrl.u32 %v3802, 7
        %v3804 = vsub.s32 %v3801, %v3803
        %v3805 = vrot.slane %v3791, %v3804
        %v3806 = vcombine.low %v3717, %v3721
        %v3807 = vcombine.high %v3717, %v3721
        %v3809 = vunpack.c.l.s4 1983009808
        %v3810 = vunpack.c.0.s8 %v3809
        %v3811 = vlaneseq
        %v3812 = vshrl.u32 %v3811, 7
        %v3813 = vsub.s32 %v3810, %v3812
        %v3814 = vrot.slane %v3806, %v3813
        %v3816 = vunpack.c.l.s4 1983009808
        %v3817 = vunpack.c.0.s8 %v3816
        %v3818 = vlaneseq
        %v3819 = vshrl.u32 %v3818, 7
        %v3820 = vsub.s32 %v3817, %v3819
        %v3821 = vrot.slane %v3807, %v3820
        %v3822 = vcombine.low %v3798, %v3814
        %v3823 = vcombine.high %v3798, %v3814
        %v3825 = vunpack.c.l.s4 1934713408
        %v3826 = vunpack.c.0.s8 %v3825
        %v3827 = vlaneseq
        %v3828 = vshrl.u32 %v3827, 7
        %v3829 = vsub.s32 %v3826, %v3828
        %v3830 = vrot.slane %v3822, %v3829
        %v3832 = vunpack.c.l.s4 1934713408
        %v3833 = vunpack.c.0.s8 %v3832
        %v3834 = vlaneseq
        %v3835 = vshrl.u32 %v3834, 7
        %v3836 = vsub.s32 %v3833, %v3835
        %v3837 = vrot.slane %v3823, %v3836
        %v3838 = vcombine.low %v3805, %v3821
        %v3839 = vcombine.high %v3805, %v3821
        %v3841 = vunpack.c.l.s4 1934713408
        %v3842 = vunpack.c.0.s8 %v3841
        %v3843 = vlaneseq
        %v3844 = vshrl.u32 %v3843, 7
        %v3845 = vsub.s32 %v3842, %v3844
        %v3846 = vrot.slane %v3838, %v3845
        %v3848 = vunpack.c.l.s4 1934713408
        %v3849 = vunpack.c.0.s8 %v3848
        %v3850 = vlaneseq
        %v3851 = vshrl.u32 %v3850, 7
        %v3852 = vsub.s32 %v3849, %v3851
        %v3853 = vrot.slane %v3839, %v3852
        %v3854 = vcombine.high %v3830, 0.0
        %v3855 = vcombine.high %v3837, 0.0
        %v3856 = vcombine.high %v3846, 0.0
        %v3857 = vcombine.high %v3853, 0.0
        %3859 = vrot.lane.b32.xlu0 %v3786, 16
        %v3860 = vpop.permute.xlu0 %3859
        %3863 = vrot.lane.b32.xlu0 %v3769, 32
        %v3864 = vpop.permute.xlu0 %3863
        %3867 = vrot.lane.b32.xlu0 %v3787, 48
        %v3868 = vpop.permute.xlu0 %3867
        %3871 = vrot.lane.b32.xlu0 %v3778, 64
        %v3872 = vpop.permute.xlu0 %3871
        %3875 = vrot.lane.b32.xlu0 %v3788, 80
        %v3876 = vpop.permute.xlu0 %3875
        %3879 = vrot.lane.b32.xlu0 %v3785, 96
        %v3880 = vpop.permute.xlu0 %3879
        %3883 = vrot.lane.b32.xlu0 %v3789, 112
        %v3884 = vpop.permute.xlu0 %3883
        %3887 = vrot.lane.b32.xlu0 %v3854, 16
        %v3888 = vpop.permute.xlu0 %3887
        %3891 = vrot.lane.b32.xlu0 %v3837, 32
        %v3892 = vpop.permute.xlu0 %3891
        %3895 = vrot.lane.b32.xlu0 %v3855, 48
        %v3896 = vpop.permute.xlu0 %3895
        %3899 = vrot.lane.b32.xlu0 %v3846, 64
        %v3900 = vpop.permute.xlu0 %3899
        %3903 = vrot.lane.b32.xlu0 %v3856, 80
        %v3904 = vpop.permute.xlu0 %3903
        %3907 = vrot.lane.b32.xlu0 %v3853, 96
        %v3908 = vpop.permute.xlu0 %3907
        %3911 = vrot.lane.b32.xlu0 %v3857, 112
        %v3912 = vpop.permute.xlu0 %3911
        %v3914 = vsel %vm1717, %v3762, %v3860
        %v3915 = vsel %vm1719, %v3914, %v3864
        %v3916 = vsel %vm1721, %v3915, %v3868
        %v3917 = vsel %vm1723, %v3916, %v3872
        %v3918 = vsel %vm1725, %v3917, %v3876
        %v3919 = vsel %vm1727, %v3918, %v3880
        %v3920 = vsel %vm1729, %v3919, %v3884
        %v3921 = vsel %vm1717, %v3830, %v3888
        %v3922 = vsel %vm1719, %v3921, %v3892
        %v3923 = vsel %vm1721, %v3922, %v3896
        %v3924 = vsel %vm1723, %v3923, %v3900
        %v3925 = vsel %vm1725, %v3924, %v3904
        %v3926 = vsel %vm1727, %v3925, %v3908
        %v3927 = vsel %vm1729, %v3926, %v3912
        %3928 = vrot.lane.b32.xlu0 %v592, 120
        %v3929 = vpop.permute.xlu0 %3928
        %v3930 = vsel %vm1738, %v3929, 0
        %v3933 = vsel %vm1480, %v3920, 0
        %v3936 = vsel %vm1480, %v3927, 0
        %3938 = vmatprep.subr.mxu0 %v3936
        %3939 = vmatpush1.msra.mxu0 %v3933
        %3940 = vmatprep.subr.mxu0 0.0
        %3941 = vmatpush1.msra.mxu0 0.0
        %3942 = vmatprep.subr.mxu0 0.0
        %3943 = vmatpush1.msra.mxu0 0.0
        %3944 = vmatprep.subr.mxu0 0.0
        %3945 = vmatpush1.msra.mxu0 0.0
        %3946 = vmatprep.subr.mxu0 0.0
        %3947 = vmatpush1.msra.mxu0 0.0
        %3948 = vmatprep.subr.mxu0 0.0
        %3949 = vmatpush1.msra.mxu0 0.0
        %3950 = vmatprep.subr.mxu0 0.0
        %3951 = vmatpush1.msra.mxu0 0.0
        %3952 = vmatprep.subr.mxu0 0.0
        %3953 = vmatpush1.msra.mxu0 0.0
        %3954 = vmatprep.subr.mxu0 0.0
        %3955 = vmatpush1.msra.mxu0 0.0
        %3956 = vmatprep.subr.mxu0 0.0
        %3957 = vmatpush1.msra.mxu0 0.0
        %3958 = vmatprep.subr.mxu0 0.0
        %3959 = vmatpush1.msra.mxu0 0.0
        %3960 = vmatprep.subr.mxu0 0.0
        %3961 = vmatpush1.msra.mxu0 0.0
        %3962 = vmatprep.subr.mxu0 0.0
        %3963 = vmatpush1.msra.mxu0 0.0
        %3964 = vmatprep.subr.mxu0 0.0
        %3965 = vmatpush1.msra.mxu0 0.0
        %3966 = vmatprep.subr.mxu0 0.0
        %3967 = vmatpush1.msra.mxu0 0.0
        %3968 = vmatprep.subr.mxu0 0.0
        %3969 = vmatpush1.msra.mxu0 0.0
        %3970 = vmatprep.subr.mxu0 0.0
        %3971 = vmatpush1.msra.mxu0 0.0
        %3972 = vmatprep.subr.mxu0 0.0
        %3973 = vmatpush1.msra.mxu0 0.0
        %3974 = vmatprep.subr.mxu0 0.0
        %3975 = vmatpush1.msra.mxu0 0.0
        %3976 = vmatprep.subr.mxu0 0.0
        %3977 = vmatpush1.msra.mxu0 0.0
        %3978 = vmatprep.subr.mxu0 0.0
        %3979 = vmatpush1.msra.mxu0 0.0
        %3980 = vmatprep.subr.mxu0 0.0
        %3981 = vmatpush1.msra.mxu0 0.0
        %3982 = vmatprep.subr.mxu0 0.0
        %3983 = vmatpush1.msra.mxu0 0.0
        %3984 = vmatprep.subr.mxu0 0.0
        %3985 = vmatpush1.msra.mxu0 0.0
        %3986 = vmatprep.subr.mxu0 0.0
        %3987 = vmatpush1.msra.mxu0 0.0
        %3988 = vmatprep.subr.mxu0 0.0
        %3989 = vmatpush1.msra.mxu0 0.0
        %3990 = vmatprep.subr.mxu0 0.0
        %3991 = vmatpush1.msra.mxu0 0.0
        %3992 = vmatprep.subr.mxu0 0.0
        %3993 = vmatpush1.msra.mxu0 0.0
        %3994 = vmatprep.subr.mxu0 0.0
        %3995 = vmatpush1.msra.mxu0 0.0
        %3996 = vmatprep.subr.mxu0 0.0
        %3997 = vmatpush1.msra.mxu0 0.0
        %3998 = vmatprep.subr.mxu0 0.0
        %3999 = vmatpush1.msra.mxu0 0.0
        %4000 = vmatprep.subr.mxu0 0.0
        %4001 = vmatpush1.msra.mxu0 0.0
        %4002 = vmatprep.mubr.f32.mxu0 0.0
        %4003 = vmatmul.mubr.f32.gmra.mrb[0].mxu0 %v3930
        %v4004 = vpop.f32.mrb[0].mxu0
        %v4005 = vadd.f32 0.0, %v4004
        %v4006 = vpop.f32.mrb[0].mxu0
        %v4007 = vadd.f32 0.0, %v4006
        %4008 = vdwg.mxu0
        %v4009 = vadd.f32 %v2984, %v4005
        %v4010 = vadd.f32 %v2985, %v4007
        %4011 = vst [vmem:[%s394] sm:$0xff] %v4009
        %4012 = vst [vmem:[%s394 + $0x8] sm:$0xff] %v4010
        %s4013 = sand.u32 %s211, 1
        %s4014 = scalar_lea.sflag [#allocation4], %s4013
        %s4015 = sand.u32 %s211, 1
        %s4016 = smul.addr %s4015, 16
        %s4017 = scalar_lea.vmem [#allocation8], %s4016
        // Predicated region
        $region57: #{tpu_custom_call.1} parent=43 // pred_check
          %p4018 = pneg %p221
        $region58: #{tpu_custom_call.1} parent=43 // pred_check_branch
          %4020 = sbr.rel (%p4018) target = $region60
        $region59: #{tpu_custom_call.1} parent=43 // pred_region
          %s4021 = smul.u32 2, %s31
          %s4023 = ssub.s32 256, 256
          %4024 = vsyncadd %s4014, %s4023
          %s4025 = smul.addr %s30, 2
          %s4026 = sadd.s32 %s4021, %s4025
          %s4027 = smul.addr %s4026, 128
          %s4028 = scalar_lea.hbm %s6, %s4027
          %s4030 = sshll.u32 %s4017, 4
          %s4031 = int_to_ptr.vmem [resolvable:$true] %s4030
          %4033 = dma.vmem_to_hbm [thread:$0]  %s4031, 256, %s4028, %s4014
        $region60: #{tpu_custom_call.1} parent=43 // pred_fallthru
          _
      $region44: #{tpu_custom_call.1} parent=5 // pred_fallthru
        _
      %p4034 = scmp.le.s32.totalorder 2, %s21
      // Predicated region
      $region61: #{tpu_custom_call.1} parent=5 // pred_check
        %p4035 = pneg %p4034
      $region62: #{tpu_custom_call.1} parent=5 // pred_check_branch
        %4037 = sbr.rel (%p4035) target = $region64
      $region63: #{tpu_custom_call.1} parent=5 // pred_region
        %s4038 = ssub.s32 %s21, 2
        // Predicated region
        $region65: #{tpu_custom_call.1} parent=63 // pred_check
          %p4039 = pneg %p227
        $region66: #{tpu_custom_call.1} parent=63 // pred_check_branch
          %4041 = sbr.rel (%p4039) target = $region68
        $region67: #{tpu_custom_call.1} parent=63 // pred_region
          %s4042 = sand.u32 %s212, 1
          %s4043 = scalar_lea.sflag [#allocation4], %s4042
          %s4044 = sand.u32 %s212, 1
          %s4045 = smul.addr %s4044, 16
          %s4046 = scalar_lea.vmem [#allocation8], %s4045
          %4047 = dma.done %s4043, 256
        $region68: #{tpu_custom_call.1} parent=63 // pred_fallthru
          _
      $region64: #{tpu_custom_call.1} parent=5 // pred_fallthru
        _
    $region6: #{tpu_custom_call.1} parent=1 // loop_footer
      %s25 = sadd.s32 1, %s21
    $region7: #{tpu_custom_call.1} parent=1 // loop_footer_branch
      %20 = sbr.rel target = $region3
    $region8: #{tpu_custom_call.1} parent=1 // loop_exit
      _
    %4048 = vsyncpa [#allocation3], 1
    %s4049 = scalar_lea.sflag [#allocation3], 1
    %4050 = vsyncpa %s4049, 1
    %4051 = vsyncpa [#allocation6], 1
    %s4052 = scalar_lea.sflag [#allocation6], 1
    %4053 = vsyncpa %s4052, 1
    %4054 = vsyncpa [#allocation4], 1
    %s4055 = scalar_lea.sflag [#allocation4], 1
    %4056 = vsyncpa %s4055, 1

</llo_original>
